<compile_context>
chip_gen: v5e
topology: v5e:2x2
jax: 0.10.0
libtpu: 0.0.40
codegen_flags: <defaults>
</compile_context>

<pallas_src>
import functools

import jax
import jax.numpy as jnp
from jax.experimental import pallas as pl
from jax.experimental.pallas import tpu as pltpu

_EPS = 1e-5
_SQRT1_2 = 0.7071067811865476
_LANE = 128


# --------------------------------- helpers -----------------------------------

def _round_up(n, m):
    return ((n + m - 1) // m) * m


def _pad_cols(a, target):
    d = target - a.shape[-1]
    if d <= 0:
        return a
    return jnp.pad(a, [(0, 0)] * (a.ndim - 1) + [(0, d)])


def _pad_rows(a, target):
    d = target - a.shape[0]
    if d <= 0:
        return a
    return jnp.pad(a, [(0, d)] + [(0, 0)] * (a.ndim - 1))


def _const_index_map(ndim):
    def index_map(i):
        return (0,) * ndim
    return index_map


def _elementwise_dtype(operand_dtype):
    """bf16 VPU/EUP path on chips that have it (v6e / v7x); f32 elsewhere."""
    if jnp.dtype(operand_dtype) != jnp.dtype(jnp.bfloat16):
        return jnp.float32
    try:
        kind = jax.devices()[0].device_kind.lower()
    except Exception:
        return jnp.float32
    if any(old in kind for old in ("v2", "v3", "v4", "v5")):
        return jnp.float32          # no native bf16 VPU/EUP on v5e and earlier
    return jnp.bfloat16


# ------------------------------ in-kernel math --------------------------------

def _recip(x):
    """Reciprocal on the EUP (free slot next to exp); Newton-refined in f32."""
    t = pl.reciprocal(x.astype(jnp.float32), approx=True)
    if x.dtype == jnp.float32:
        return t * (2.0 - x * t)     # one NR step -> ~full f32 accuracy
    return t.astype(x.dtype)


def _gelu(x):
    """Exact-erf GELU (PyTorch nn.GELU default); erf via Abramowitz-Stegun 7.1.26."""
    a1, a2, a3, a4, a5 = 0.254829592, -0.284496736, 1.421413741, -1.453152027, 1.061405429
    za = jnp.abs(x) * _SQRT1_2
    t = _recip(1.0 + 0.3275911 * za)
    poly = ((((a5 * t + a4) * t + a3) * t + a2) * t + a1) * t
    e = 1.0 - poly * jnp.exp(-za * za)               # erf(|x|/sqrt(2)) in [0, 1)
    cdf = 0.5 * (1.0 + jnp.where(x >= 0, e, -e))     # single select restores the sign
    return x * cdf


def _layernorm(x, gamma, beta, out_dtype):
    """Stats in f32; scale/shift in out_dtype (bf16 on v6e/v7x when operands are bf16)."""
    xf = x.astype(jnp.float32)
    mean = jnp.mean(xf, axis=-1, keepdims=True)
    cen = xf - mean
    var = jnp.mean(cen * cen, axis=-1, keepdims=True)
    y = (cen * jax.lax.rsqrt(var + _EPS)).astype(out_dtype)
    return y * gamma.astype(out_dtype) + beta.astype(out_dtype)


def _transpose_images(x2d, n_images, rows_per_image):
    """(n*r, c) -> (n*c, r): transpose each image's (r, c) slab independently."""
    if n_images == 1:
        return x2d.T
    return jnp.concatenate(
        [x2d[i * rows_per_image:(i + 1) * rows_per_image, :].T for i in range(n_images)],
        axis=0)


# ------------------------------ fused kernel ----------------------------------

def _make_mixer_kernel(*, depth, bt, seq, patch_dim, dim, ew_dtype):
    """Kernel processing `bt` images end-to-end (embed -> blocks -> head) per grid step."""
    f32 = jnp.float32
    rows = bt * seq

    def kernel(tok_ref, *rest):
        out_ref = rest[-1]
        it = iter(rest[:-1])
        embed_w, embed_b = next(it), next(it)

        # ---- patch embedding: Linear(patch_dim -> dim), f32 residual stream ----
        tokens = tok_ref[...].reshape(rows, patch_dim)
        x = jnp.dot(tokens.astype(embed_w.dtype), embed_w[...],
                    preferred_element_type=f32) + embed_b[...].astype(f32)

        for _ in range(depth):
            tg, tb = next(it), next(it)
            tw1, tb1, tw2, tb2 = next(it), next(it), next(it), next(it)
            cg, cb = next(it), next(it)
            cw1, cb1, cw2, cb2 = next(it), next(it), next(it), next(it)

            # ---- token-mixing FF (Conv1d k=1 over patches), PreNorm + residual ----
            y = _layernorm(x, tg[...], tb[...], ew_dtype)            # (rows, dim)
            yt = _transpose_images(y, bt, seq)                        # (bt*dim, seq)
            h = jnp.dot(yt.astype(tw1.dtype), tw1[...],
                        preferred_element_type=f32) + tb1[...].astype(f32)
            h = _gelu(h.astype(ew_dtype))                             # lane-dense (Ht_pad)
            o = jnp.dot(h.astype(tw2.dtype), tw2[...],
                        preferred_element_type=f32) + tb2[...].astype(f32)
            x = x + _transpose_images(o, bt, dim)                     # back to (rows, dim)

            # ---- channel-mixing FF (Linear), PreNorm + residual ----
            y = _layernorm(x, cg[...], cb[...], ew_dtype)
            h = jnp.dot(y.astype(cw1.dtype), cw1[...],
                        preferred_element_type=f32) + cb1[...].astype(f32)
            h = _gelu(h.astype(ew_dtype))                             # lane-dense (Hc_pad)
            x = x + (jnp.dot(h.astype(cw2.dtype), cw2[...],
                             preferred_element_type=f32) + cb2[...].astype(f32))

        # ---- head: LayerNorm -> mean over patches -> Linear -> log_softmax ----
        hg, hb, hw, hbias = next(it), next(it), next(it), next(it)
        y = _layernorm(x, hg[...], hb[...], f32)
        if bt == 1:
            pooled = jnp.mean(y, axis=0, keepdims=True)               # (1, dim)
        else:
            pooled = jnp.concatenate(
                [jnp.mean(y[i * seq:(i + 1) * seq, :], axis=0, keepdims=True)
                 for i in range(bt)], axis=0)                         # (bt, dim)
        logits = jnp.dot(pooled.astype(hw.dtype), hw[...],
                         preferred_element_type=f32) + hbias[...].astype(f32)
        # padded classes carry a -1e9 bias -> exp underflows to 0, softmax unaffected
        z = logits - jnp.max(logits, axis=-1, keepdims=True)
        lse = jnp.log(jnp.sum(jnp.exp(z), axis=-1, keepdims=True))
        out_ref[0] = (z - lse).astype(out_ref.dtype)

    return kernel


# --------------------------------- wrapper ------------------------------------

@functools.partial(jax.jit, static_argnames=("patch_size", "batch_tile"))
def mixer_forward(x, params, *, patch_size, batch_tile=None):
    """MLPMixer_extract.forward: log-probabilities of shape (batch, num_classes)."""
    B, C, H, W = x.shape
    p = patch_size
    hh, ww = H // p, W // p
    S, P = hh * ww, p * p * C
    D = params["embed_w"].shape[1]
    depth = len(params["blocks"])
    n_cls = params["head_w"].shape[1]
    Ht = params["blocks"][0]["tok_w1"].shape[0] if depth else 1
    Hc = params["blocks"][0]["chn_w1"].shape[1] if depth else 1

    # Rearrange 'b c (h p1) (w p2) -> b (h w) (p1 p2 c)'  (pure layout plumbing).
    tokens = x.reshape(B, C, hh, p, ww, p).transpose(0, 2, 4, 3, 5, 1).reshape(B, S, P)

    # Batch tile: ~256 activation rows per grid step, capped so unrolled per-image
    # transposes stay small, and >= 2 grid steps whenever B >= 2 (v7x megacore).
    if batch_tile is None:
        bt = max(1, min(256 // max(S, 1), 16))
        if B >= 2:
            bt = min(bt, (B + 1) // 2)
        bt = max(1, min(bt, B))
    else:
        bt = batch_tile
    n_tiles = pl.cdiv(B, bt)
    b_pad = n_tiles * bt
    if b_pad != B:
        # Single pad at the network input; padded images never mix with real ones
        # (token mixing is per-image) and their output rows are sliced off below.
        tokens = jnp.pad(tokens, ((0, b_pad - B), (0, 0), (0, 0)))

    ht_pad = _round_up(max(Ht, 1), _LANE)
    hc_pad = _round_up(max(Hc, 1), _LANE)
    c_pad = _round_up(n_cls, _LANE)

    # ---- parameter prep: reshape / transpose / lane-pad once (tiny, grid-invariant) ----
    flat = [params["embed_w"], params["embed_b"].reshape(1, D)]
    for blk in params["blocks"]:
        flat += [
            blk["tok_g"].reshape(1, D), blk["tok_b"].reshape(1, D),
            _pad_cols(blk["tok_w1"].T, ht_pad),                    # (S, Ht_pad)
            _pad_cols(blk["tok_b1"].reshape(1, -1), ht_pad),       # (1, Ht_pad)
            _pad_rows(blk["tok_w2"].T, ht_pad),                    # (Ht_pad, S)
            blk["tok_b2"].reshape(1, -1),                          # (1, S)
            blk["chn_g"].reshape(1, D), blk["chn_b"].reshape(1, D),
            _pad_cols(blk["chn_w1"], hc_pad),                      # (D, Hc_pad)
            _pad_cols(blk["chn_b1"].reshape(1, -1), hc_pad),       # (1, Hc_pad)
            _pad_rows(blk["chn_w2"], hc_pad),                      # (Hc_pad, D)
            blk["chn_b2"].reshape(1, D),
        ]
    head_bias = params["head_bias"].reshape(1, n_cls)
    if c_pad != n_cls:
        head_bias = jnp.pad(head_bias, ((0, 0), (0, c_pad - n_cls)),
                            constant_values=-1e9)
    flat += [params["head_g"].reshape(1, D), params["head_b"].reshape(1, D),
             _pad_cols(params["head_w"], c_pad), head_bias]

    ew_dtype = _elementwise_dtype(params["embed_w"].dtype)
    kernel = _make_mixer_kernel(depth=depth, bt=bt, seq=S, patch_dim=P, dim=D,
                                ew_dtype=ew_dtype)

    in_specs = [pl.BlockSpec((bt, S, P), lambda i: (i, 0, 0))]
    in_specs += [pl.BlockSpec(a.shape, _const_index_map(a.ndim)) for a in flat]
    out_specs = pl.BlockSpec((1, bt, c_pad), lambda i: (i, 0, 0))

    flops = (2 * b_pad * S * P * D
             + depth * (4 * b_pad * D * S * ht_pad + 4 * b_pad * S * D * hc_pad
                        + 20 * b_pad * S * D)
             + 2 * b_pad * D * c_pad)
    trans = depth * (b_pad * D * ht_pad + b_pad * S * hc_pad) + b_pad * c_pad
    prm_bytes = sum(a.size * a.dtype.itemsize for a in flat)
    io_bytes = (tokens.size + n_tiles * bt * c_pad) * tokens.dtype.itemsize

    out = pl.pallas_call(
        kernel,
        out_shape=jax.ShapeDtypeStruct((n_tiles, bt, c_pad), x.dtype),
        grid_spec=pltpu.PrefetchScalarGridSpec(
            num_scalar_prefetch=0,
            grid=(n_tiles,),
            in_specs=in_specs,
            out_specs=out_specs,
        ),
        compiler_params=pltpu.CompilerParams(dimension_semantics=("parallel",)),
        cost_estimate=pl.CostEstimate(flops=int(flops), transcendentals=int(trans),
                                      bytes_accessed=int(io_bytes + prm_bytes)),
    )(tokens, *flat)

    # Lane-dense (., 128) store inside the kernel; slice to real batch/classes here.
    return out.reshape(b_pad, c_pad)[:B, :n_cls]


# --------------------------- reference & parameters ---------------------------

def reference_forward(x, params, *, patch_size):
    """Pure-JAX f32 reference mirroring the PyTorch module (exact-erf GELU, eval mode)."""
    p32 = jax.tree_util.tree_map(lambda a: a.astype(jnp.float32), params)
    B, C, H, W = x.shape
    p = patch_size
    hh, ww = H // p, W // p
    t = x.astype(jnp.float32).reshape(B, C, hh, p, ww, p).transpose(0, 2, 4, 3, 5, 1)
    t = t.reshape(B, hh * ww, p * p * C)
    t = t @ p32["embed_w"] + p32["embed_b"]

    def ln(z, g, b):
        m = jnp.mean(z, axis=-1, keepdims=True)
        v = jnp.mean((z - m) ** 2, axis=-1, keepdims=True)
        return (z - m) * jax.lax.rsqrt(v + _EPS) * g + b

    for blk in p32["blocks"]:
        y = ln(t, blk["tok_g"], blk["tok_b"])
        h = jax.nn.gelu(jnp.einsum("hs,bsd->bhd", blk["tok_w1"], y)
                        + blk["tok_b1"][None, :, None], approximate=False)
        t = t + jnp.einsum("sh,bhd->bsd", blk["tok_w2"], h) + blk["tok_b2"][None, :, None]
        y = ln(t, blk["chn_g"], blk["chn_b"])
        h = jax.nn.gelu(y @ blk["chn_w1"] + blk["chn_b1"], approximate=False)
        t = t + h @ blk["chn_w2"] + blk["chn_b2"]

    y = ln(t, p32["head_g"], p32["head_b"])
    logits = jnp.mean(y, axis=1) @ p32["head_w"] + p32["head_bias"]
    return jax.nn.log_softmax(logits, axis=-1)


def init_params(key, *, channels, patch_size, num_patches, dim, depth, num_classes,
                expansion_factor, expansion_factor_token):
    patch_dim = patch_size * patch_size * channels
    h_tok = num_patches * expansion_factor
    h_chn = int(dim * expansion_factor_token)
    keys = iter(jax.random.split(key, 4 + 8 * depth))

    def dense(fan_in, shape):
        return jax.random.normal(next(keys), shape, jnp.float32) / jnp.sqrt(fan_in)

    def bias(shape):
        return jax.random.normal(next(keys), shape, jnp.float32) * 0.01

    blocks = []
    for _ in range(depth):
        blocks.append(dict(
            tok_g=jnp.ones((dim,), jnp.float32), tok_b=jnp.zeros((dim,), jnp.float32),
            tok_w1=dense(num_patches, (h_tok, num_patches)), tok_b1=bias((h_tok,)),
            tok_w2=dense(h_tok, (num_patches, h_tok)), tok_b2=bias((num_patches,)),
            chn_g=jnp.ones((dim,), jnp.float32), chn_b=jnp.zeros((dim,), jnp.float32),
            chn_w1=dense(dim, (dim, h_chn)), chn_b1=bias((h_chn,)),
            chn_w2=dense(h_chn, (h_chn, dim)), chn_b2=bias((dim,)),
        ))
    return dict(
        embed_w=dense(patch_dim, (patch_dim, dim)), embed_b=bias((dim,)),
        blocks=tuple(blocks),
        head_g=jnp.ones((dim,), jnp.float32), head_b=jnp.zeros((dim,), jnp.float32),
        head_w=dense(dim, (dim, num_classes)), head_bias=bias((num_classes,)),
    )


# ------------------------------------ main ------------------------------------

if __name__ == "__main__":
    IMAGE, CHANNELS, PATCH = 16, 4, 4
    DIM, DEPTH, CLASSES = 128, 2, 10
    EXP, EXP_TOK = 4, 0.5
    BATCH = 2
    NUM_PATCHES = (IMAGE // PATCH) ** 2

    key = jax.random.PRNGKey(0)
    kx, kp, kx3 = jax.random.split(key, 3)
    x = jax.random.normal(kx, (BATCH, CHANNELS, IMAGE, IMAGE), jnp.float32)
    params = init_params(kp, channels=CHANNELS, patch_size=PATCH,
                         num_patches=NUM_PATCHES, dim=DIM, depth=DEPTH,
                         num_classes=CLASSES, expansion_factor=EXP,
                         expansion_factor_token=EXP_TOK)

    # TODO(synk): nn.Dropout inside FeedForward is a train-time stochastic op; the
    # inference forward treats it as identity.

    out = jax.block_until_ready(mixer_forward(x, params, patch_size=PATCH))
    ref = reference_forward(x, params, patch_size=PATCH)
    assert out.shape == (BATCH, CLASSES) and out.dtype == x.dtype
    err = float(jnp.max(jnp.abs(out.astype(jnp.float32) - ref)))
    assert err < 1e-3, f"max |err| vs reference = {err}"

    # Multi-image batch tile + ragged batch: exercises the per-image transpose/concat
    # path and the single front-of-network batch pad.
    x3 = jax.random.normal(kx3, (3, CHANNELS, IMAGE, IMAGE), jnp.float32)
    out3 = jax.block_until_ready(
        mixer_forward(x3, params, patch_size=PATCH, batch_tile=2))
    ref3 = reference_forward(x3, params, patch_size=PATCH)
    err3 = float(jnp.max(jnp.abs(out3.astype(jnp.float32) - ref3)))
    assert out3.shape == (3, CLASSES) and err3 < 1e-3, f"max |err| (bt=2) = {err3}"

    # bf16 smoke run: bf16 MXU operands with f32 accumulation; bf16 elementwise on
    # v6e/v7x, f32 elementwise on v5e and older.
    x16 = x.astype(jnp.bfloat16)
    p16 = jax.tree_util.tree_map(lambda a: a.astype(jnp.bfloat16), params)
    out16 = jax.block_until_ready(mixer_forward(x16, p16, patch_size=PATCH))
    assert out16.dtype == jnp.bfloat16
    assert bool(jnp.all(jnp.isfinite(out16.astype(jnp.float32))))

    print("KERNEL_OK")
</pallas_src>

<mosaic_0001>
module attributes {stable_mosaic.version = 11 : i64} {
  func.func @kernel(%arg0: i32, %arg1: memref<1x16x64xf32, #tpu.memory_space<vmem>>, %arg2: memref<64x128xf32, #tpu.memory_space<vmem>>, %arg3: memref<1x128xf32, #tpu.memory_space<vmem>>, %arg4: memref<1x128xf32, #tpu.memory_space<vmem>>, %arg5: memref<1x128xf32, #tpu.memory_space<vmem>>, %arg6: memref<16x128xf32, #tpu.memory_space<vmem>>, %arg7: memref<1x128xf32, #tpu.memory_space<vmem>>, %arg8: memref<128x16xf32, #tpu.memory_space<vmem>>, %arg9: memref<1x16xf32, #tpu.memory_space<vmem>>, %arg10: memref<1x128xf32, #tpu.memory_space<vmem>>, %arg11: memref<1x128xf32, #tpu.memory_space<vmem>>, %arg12: memref<128x128xf32, #tpu.memory_space<vmem>>, %arg13: memref<1x128xf32, #tpu.memory_space<vmem>>, %arg14: memref<128x128xf32, #tpu.memory_space<vmem>>, %arg15: memref<1x128xf32, #tpu.memory_space<vmem>>, %arg16: memref<1x128xf32, #tpu.memory_space<vmem>>, %arg17: memref<1x128xf32, #tpu.memory_space<vmem>>, %arg18: memref<16x128xf32, #tpu.memory_space<vmem>>, %arg19: memref<1x128xf32, #tpu.memory_space<vmem>>, %arg20: memref<128x16xf32, #tpu.memory_space<vmem>>, %arg21: memref<1x16xf32, #tpu.memory_space<vmem>>, %arg22: memref<1x128xf32, #tpu.memory_space<vmem>>, %arg23: memref<1x128xf32, #tpu.memory_space<vmem>>, %arg24: memref<128x128xf32, #tpu.memory_space<vmem>>, %arg25: memref<1x128xf32, #tpu.memory_space<vmem>>, %arg26: memref<128x128xf32, #tpu.memory_space<vmem>>, %arg27: memref<1x128xf32, #tpu.memory_space<vmem>>, %arg28: memref<1x128xf32, #tpu.memory_space<vmem>>, %arg29: memref<1x128xf32, #tpu.memory_space<vmem>>, %arg30: memref<128x128xf32, #tpu.memory_space<vmem>>, %arg31: memref<1x128xf32, #tpu.memory_space<vmem>>, %arg32: memref<1x1x128xf32, #tpu.memory_space<vmem>>) attributes {dimension_semantics = [#tpu.dimension_semantics<parallel>], iteration_bounds = array<i64: 2>, scalar_prefetch = 0 : i64, scratch_operands = 0 : i64, tpu.core_type = #tpu.core_type<tc>, window_params = [{transform_indices = @transform_0, window_bounds = array<i64: 1, 16, 64>}, {pipeline_mode = #tpu.pipeline_mode<synchronous>, transform_indices = @transform_1, window_bounds = array<i64: 64, 128>}, {pipeline_mode = #tpu.pipeline_mode<synchronous>, transform_indices = @transform_2, window_bounds = array<i64: 1, 128>}, {pipeline_mode = #tpu.pipeline_mode<synchronous>, transform_indices = @transform_3, window_bounds = array<i64: 1, 128>}, {pipeline_mode = #tpu.pipeline_mode<synchronous>, transform_indices = @transform_4, window_bounds = array<i64: 1, 128>}, {pipeline_mode = #tpu.pipeline_mode<synchronous>, transform_indices = @transform_5, window_bounds = array<i64: 16, 128>}, {pipeline_mode = #tpu.pipeline_mode<synchronous>, transform_indices = @transform_6, window_bounds = array<i64: 1, 128>}, {pipeline_mode = #tpu.pipeline_mode<synchronous>, transform_indices = @transform_7, window_bounds = array<i64: 128, 16>}, {pipeline_mode = #tpu.pipeline_mode<synchronous>, transform_indices = @transform_8, window_bounds = array<i64: 1, 16>}, {pipeline_mode = #tpu.pipeline_mode<synchronous>, transform_indices = @transform_9, window_bounds = array<i64: 1, 128>}, {pipeline_mode = #tpu.pipeline_mode<synchronous>, transform_indices = @transform_10, window_bounds = array<i64: 1, 128>}, {pipeline_mode = #tpu.pipeline_mode<synchronous>, transform_indices = @transform_11, window_bounds = array<i64: 128, 128>}, {pipeline_mode = #tpu.pipeline_mode<synchronous>, transform_indices = @transform_12, window_bounds = array<i64: 1, 128>}, {pipeline_mode = #tpu.pipeline_mode<synchronous>, transform_indices = @transform_13, window_bounds = array<i64: 128, 128>}, {pipeline_mode = #tpu.pipeline_mode<synchronous>, transform_indices = @transform_14, window_bounds = array<i64: 1, 128>}, {pipeline_mode = #tpu.pipeline_mode<synchronous>, transform_indices = @transform_15, window_bounds = array<i64: 1, 128>}, {pipeline_mode = #tpu.pipeline_mode<synchronous>, transform_indices = @transform_16, window_bounds = array<i64: 1, 128>}, {pipeline_mode = #tpu.pipeline_mode<synchronous>, transform_indices = @transform_17, window_bounds = array<i64: 16, 128>}, {pipeline_mode = #tpu.pipeline_mode<synchronous>, transform_indices = @transform_18, window_bounds = array<i64: 1, 128>}, {pipeline_mode = #tpu.pipeline_mode<synchronous>, transform_indices = @transform_19, window_bounds = array<i64: 128, 16>}, {pipeline_mode = #tpu.pipeline_mode<synchronous>, transform_indices = @transform_20, window_bounds = array<i64: 1, 16>}, {pipeline_mode = #tpu.pipeline_mode<synchronous>, transform_indices = @transform_21, window_bounds = array<i64: 1, 128>}, {pipeline_mode = #tpu.pipeline_mode<synchronous>, transform_indices = @transform_22, window_bounds = array<i64: 1, 128>}, {pipeline_mode = #tpu.pipeline_mode<synchronous>, transform_indices = @transform_23, window_bounds = array<i64: 128, 128>}, {pipeline_mode = #tpu.pipeline_mode<synchronous>, transform_indices = @transform_24, window_bounds = array<i64: 1, 128>}, {pipeline_mode = #tpu.pipeline_mode<synchronous>, transform_indices = @transform_25, window_bounds = array<i64: 128, 128>}, {pipeline_mode = #tpu.pipeline_mode<synchronous>, transform_indices = @transform_26, window_bounds = array<i64: 1, 128>}, {pipeline_mode = #tpu.pipeline_mode<synchronous>, transform_indices = @transform_27, window_bounds = array<i64: 1, 128>}, {pipeline_mode = #tpu.pipeline_mode<synchronous>, transform_indices = @transform_28, window_bounds = array<i64: 1, 128>}, {pipeline_mode = #tpu.pipeline_mode<synchronous>, transform_indices = @transform_29, window_bounds = array<i64: 128, 128>}, {pipeline_mode = #tpu.pipeline_mode<synchronous>, transform_indices = @transform_30, window_bounds = array<i64: 1, 128>}, {transform_indices = @transform_31, window_bounds = array<i64: 1, 1, 128>}]} {
    %c0 = arith.constant 0 : index
    %c0_0 = arith.constant 0 : index
    %c0_1 = arith.constant 0 : index
    %0 = vector.load %arg1[%c0, %c0_0, %c0_1] : memref<1x16x64xf32, #tpu.memory_space<vmem>>, vector<1x16x64xf32>
    %1 = vector.shape_cast %0 : vector<1x16x64xf32> to vector<16x64xf32>
    %c0_2 = arith.constant 0 : index
    %c0_3 = arith.constant 0 : index
    %2 = vector.load %arg2[%c0_2, %c0_3] : memref<64x128xf32, #tpu.memory_space<vmem>>, vector<64x128xf32>
    %cst = arith.constant dense<0.000000e+00> : vector<16x128xf32>
    %3 = tpu.matmul %1, %2, %cst {dimension_numbers = #tpu.dot_dimension_numbers<[1], [0], [0], [1], [0, 0, 1, 1], [], []>} : vector<16x64xf32>, vector<64x128xf32>, vector<16x128xf32> -> vector<16x128xf32>
    %c0_4 = arith.constant 0 : index
    %c0_5 = arith.constant 0 : index
    %4 = vector.load %arg3[%c0_4, %c0_5] : memref<1x128xf32, #tpu.memory_space<vmem>>, vector<1x128xf32>
    %5 = vector.broadcast %4 : vector<1x128xf32> to vector<16x128xf32>
    %6 = arith.addf %3, %5 : vector<16x128xf32>
    %c0_6 = arith.constant 0 : index
    %c0_7 = arith.constant 0 : index
    %7 = vector.load %arg4[%c0_6, %c0_7] : memref<1x128xf32, #tpu.memory_space<vmem>>, vector<1x128xf32>
    %c0_8 = arith.constant 0 : index
    %c0_9 = arith.constant 0 : index
    %8 = vector.load %arg5[%c0_8, %c0_9] : memref<1x128xf32, #tpu.memory_space<vmem>>, vector<1x128xf32>
    %cst_10 = arith.constant dense<0.000000e+00> : vector<16xf32>
    %9 = vector.multi_reduction <add>, %6, %cst_10 [1] : vector<16x128xf32> to vector<16xf32>
    %10 = vector.shape_cast %9 : vector<16xf32> to vector<16x1xf32>
    %cst_11 = arith.constant 1.280000e+02 : f32
    %11 = vector.broadcast %cst_11 : f32 to vector<16x1xf32>
    %12 = arith.divf %10, %11 : vector<16x1xf32>
    %13 = vector.broadcast %12 : vector<16x1xf32> to vector<16x128xf32>
    %14 = arith.subf %6, %13 : vector<16x128xf32>
    %15 = arith.mulf %14, %14 : vector<16x128xf32>
    %cst_12 = arith.constant dense<0.000000e+00> : vector<16xf32>
    %16 = vector.multi_reduction <add>, %15, %cst_12 [1] : vector<16x128xf32> to vector<16xf32>
    %17 = vector.shape_cast %16 : vector<16xf32> to vector<16x1xf32>
    %cst_13 = arith.constant 1.280000e+02 : f32
    %18 = vector.broadcast %cst_13 : f32 to vector<16x1xf32>
    %19 = arith.divf %17, %18 : vector<16x1xf32>
    %cst_14 = arith.constant 9.99999974E-6 : f32
    %20 = vector.broadcast %cst_14 : f32 to vector<16x1xf32>
    %21 = arith.addf %19, %20 : vector<16x1xf32>
    %22 = math.rsqrt %21 : vector<16x1xf32>
    %23 = vector.broadcast %22 : vector<16x1xf32> to vector<16x128xf32>
    %24 = arith.mulf %14, %23 : vector<16x128xf32>
    %25 = vector.broadcast %7 : vector<1x128xf32> to vector<16x128xf32>
    %26 = arith.mulf %24, %25 : vector<16x128xf32>
    %27 = vector.broadcast %8 : vector<1x128xf32> to vector<16x128xf32>
    %28 = arith.addf %26, %27 : vector<16x128xf32>
    %29 = tpu.transpose %28, [1, 0] : vector<16x128xf32> -> vector<128x16xf32>
    %c0_15 = arith.constant 0 : index
    %c0_16 = arith.constant 0 : index
    %30 = vector.load %arg6[%c0_15, %c0_16] : memref<16x128xf32, #tpu.memory_space<vmem>>, vector<16x128xf32>
    %cst_17 = arith.constant dense<0.000000e+00> : vector<128x128xf32>
    %31 = tpu.matmul %29, %30, %cst_17 {dimension_numbers = #tpu.dot_dimension_numbers<[1], [0], [0], [1], [0, 0, 1, 1], [], []>} : vector<128x16xf32>, vector<16x128xf32>, vector<128x128xf32> -> vector<128x128xf32>
    %c0_18 = arith.constant 0 : index
    %c0_19 = arith.constant 0 : index
    %32 = vector.load %arg7[%c0_18, %c0_19] : memref<1x128xf32, #tpu.memory_space<vmem>>, vector<1x128xf32>
    %33 = vector.broadcast %32 : vector<1x128xf32> to vector<128x128xf32>
    %34 = arith.addf %31, %33 : vector<128x128xf32>
    %35 = math.absf %34 : vector<128x128xf32>
    %cst_20 = arith.constant 0.707106769 : f32
    %36 = vector.broadcast %cst_20 : f32 to vector<128x128xf32>
    %37 = arith.mulf %35, %36 : vector<128x128xf32>
    %cst_21 = arith.constant 0.327591091 : f32
    %38 = vector.broadcast %cst_21 : f32 to vector<128x128xf32>
    %39 = arith.mulf %38, %37 : vector<128x128xf32>
    %cst_22 = arith.constant 1.000000e+00 : f32
    %40 = vector.broadcast %cst_22 : f32 to vector<128x128xf32>
    %41 = arith.addf %40, %39 : vector<128x128xf32>
    %42 = tpu.reciprocal %41 {approx = true} : vector<128x128xf32> -> vector<128x128xf32>
    %43 = arith.mulf %41, %42 : vector<128x128xf32>
    %cst_23 = arith.constant 2.000000e+00 : f32
    %44 = vector.broadcast %cst_23 : f32 to vector<128x128xf32>
    %45 = arith.subf %44, %43 : vector<128x128xf32>
    %46 = arith.mulf %42, %45 : vector<128x128xf32>
    %cst_24 = arith.constant 1.06140542 : f32
    %47 = vector.broadcast %cst_24 : f32 to vector<128x128xf32>
    %48 = arith.mulf %47, %46 : vector<128x128xf32>
    %cst_25 = arith.constant -1.45315206 : f32
    %49 = vector.broadcast %cst_25 : f32 to vector<128x128xf32>
    %50 = arith.addf %48, %49 : vector<128x128xf32>
    %51 = arith.mulf %50, %46 : vector<128x128xf32>
    %cst_26 = arith.constant 1.42141378 : f32
    %52 = vector.broadcast %cst_26 : f32 to vector<128x128xf32>
    %53 = arith.addf %51, %52 : vector<128x128xf32>
    %54 = arith.mulf %53, %46 : vector<128x128xf32>
    %cst_27 = arith.constant -0.284496725 : f32
    %55 = vector.broadcast %cst_27 : f32 to vector<128x128xf32>
    %56 = arith.addf %54, %55 : vector<128x128xf32>
    %57 = arith.mulf %56, %46 : vector<128x128xf32>
    %cst_28 = arith.constant 0.254829586 : f32
    %58 = vector.broadcast %cst_28 : f32 to vector<128x128xf32>
    %59 = arith.addf %57, %58 : vector<128x128xf32>
    %60 = arith.mulf %59, %46 : vector<128x128xf32>
    %cst_29 = arith.constant 0.000000e+00 : f32
    %61 = vector.broadcast %cst_29 : f32 to vector<128x128xf32>
    %62 = arith.subf %61, %37 : vector<128x128xf32>
    %63 = arith.mulf %62, %37 : vector<128x128xf32>
    %64 = math.exp %63 : vector<128x128xf32>
    %65 = arith.mulf %60, %64 : vector<128x128xf32>
    %cst_30 = arith.constant 1.000000e+00 : f32
    %66 = vector.broadcast %cst_30 : f32 to vector<128x128xf32>
    %67 = arith.subf %66, %65 : vector<128x128xf32>
    %cst_31 = arith.constant 0.000000e+00 : f32
    %68 = vector.broadcast %cst_31 : f32 to vector<128x128xf32>
    %69 = arith.cmpf oge, %34, %68 : vector<128x128xf32>
    %cst_32 = arith.constant 0.000000e+00 : f32
    %70 = vector.broadcast %cst_32 : f32 to vector<128x128xf32>
    %71 = arith.subf %70, %67 : vector<128x128xf32>
    %72 = arith.select %69, %67, %71 : vector<128x128xi1>, vector<128x128xf32>
    %cst_33 = arith.constant 1.000000e+00 : f32
    %73 = vector.broadcast %cst_33 : f32 to vector<128x128xf32>
    %74 = arith.addf %73, %72 : vector<128x128xf32>
    %cst_34 = arith.constant 5.000000e-01 : f32
    %75 = vector.broadcast %cst_34 : f32 to vector<128x128xf32>
    %76 = arith.mulf %75, %74 : vector<128x128xf32>
    %77 = arith.mulf %34, %76 : vector<128x128xf32>
    %c0_35 = arith.constant 0 : index
    %c0_36 = arith.constant 0 : index
    %78 = vector.load %arg8[%c0_35, %c0_36] : memref<128x16xf32, #tpu.memory_space<vmem>>, vector<128x16xf32>
    %cst_37 = arith.constant dense<0.000000e+00> : vector<128x16xf32>
    %79 = tpu.matmul %77, %78, %cst_37 {dimension_numbers = #tpu.dot_dimension_numbers<[1], [0], [0], [1], [0, 0, 1, 1], [], []>} : vector<128x128xf32>, vector<128x16xf32>, vector<128x16xf32> -> vector<128x16xf32>
    %c0_38 = arith.constant 0 : index
    %c0_39 = arith.constant 0 : index
    %80 = vector.load %arg9[%c0_38, %c0_39] : memref<1x16xf32, #tpu.memory_space<vmem>>, vector<1x16xf32>
    %81 = vector.broadcast %80 : vector<1x16xf32> to vector<128x16xf32>
    %82 = arith.addf %79, %81 : vector<128x16xf32>
    %83 = tpu.transpose %82, [1, 0] : vector<128x16xf32> -> vector<16x128xf32>
    %84 = arith.addf %6, %83 : vector<16x128xf32>
    %c0_40 = arith.constant 0 : index
    %c0_41 = arith.constant 0 : index
    %85 = vector.load %arg10[%c0_40, %c0_41] : memref<1x128xf32, #tpu.memory_space<vmem>>, vector<1x128xf32>
    %c0_42 = arith.constant 0 : index
    %c0_43 = arith.constant 0 : index
    %86 = vector.load %arg11[%c0_42, %c0_43] : memref<1x128xf32, #tpu.memory_space<vmem>>, vector<1x128xf32>
    %cst_44 = arith.constant dense<0.000000e+00> : vector<16xf32>
    %87 = vector.multi_reduction <add>, %84, %cst_44 [1] : vector<16x128xf32> to vector<16xf32>
    %88 = vector.shape_cast %87 : vector<16xf32> to vector<16x1xf32>
    %cst_45 = arith.constant 1.280000e+02 : f32
    %89 = vector.broadcast %cst_45 : f32 to vector<16x1xf32>
    %90 = arith.divf %88, %89 : vector<16x1xf32>
    %91 = vector.broadcast %90 : vector<16x1xf32> to vector<16x128xf32>
    %92 = arith.subf %84, %91 : vector<16x128xf32>
    %93 = arith.mulf %92, %92 : vector<16x128xf32>
    %cst_46 = arith.constant dense<0.000000e+00> : vector<16xf32>
    %94 = vector.multi_reduction <add>, %93, %cst_46 [1] : vector<16x128xf32> to vector<16xf32>
    %95 = vector.shape_cast %94 : vector<16xf32> to vector<16x1xf32>
    %cst_47 = arith.constant 1.280000e+02 : f32
    %96 = vector.broadcast %cst_47 : f32 to vector<16x1xf32>
    %97 = arith.divf %95, %96 : vector<16x1xf32>
    %cst_48 = arith.constant 9.99999974E-6 : f32
    %98 = vector.broadcast %cst_48 : f32 to vector<16x1xf32>
    %99 = arith.addf %97, %98 : vector<16x1xf32>
    %100 = math.rsqrt %99 : vector<16x1xf32>
    %101 = vector.broadcast %100 : vector<16x1xf32> to vector<16x128xf32>
    %102 = arith.mulf %92, %101 : vector<16x128xf32>
    %103 = vector.broadcast %85 : vector<1x128xf32> to vector<16x128xf32>
    %104 = arith.mulf %102, %103 : vector<16x128xf32>
    %105 = vector.broadcast %86 : vector<1x128xf32> to vector<16x128xf32>
    %106 = arith.addf %104, %105 : vector<16x128xf32>
    %c0_49 = arith.constant 0 : index
    %c0_50 = arith.constant 0 : index
    %107 = vector.load %arg12[%c0_49, %c0_50] : memref<128x128xf32, #tpu.memory_space<vmem>>, vector<128x128xf32>
    %cst_51 = arith.constant dense<0.000000e+00> : vector<16x128xf32>
    %108 = tpu.matmul %106, %107, %cst_51 {dimension_numbers = #tpu.dot_dimension_numbers<[1], [0], [0], [1], [0, 0, 1, 1], [], []>} : vector<16x128xf32>, vector<128x128xf32>, vector<16x128xf32> -> vector<16x128xf32>
    %c0_52 = arith.constant 0 : index
    %c0_53 = arith.constant 0 : index
    %109 = vector.load %arg13[%c0_52, %c0_53] : memref<1x128xf32, #tpu.memory_space<vmem>>, vector<1x128xf32>
    %110 = vector.broadcast %109 : vector<1x128xf32> to vector<16x128xf32>
    %111 = arith.addf %108, %110 : vector<16x128xf32>
    %112 = math.absf %111 : vector<16x128xf32>
    %cst_54 = arith.constant 0.707106769 : f32
    %113 = vector.broadcast %cst_54 : f32 to vector<16x128xf32>
    %114 = arith.mulf %112, %113 : vector<16x128xf32>
    %cst_55 = arith.constant 0.327591091 : f32
    %115 = vector.broadcast %cst_55 : f32 to vector<16x128xf32>
    %116 = arith.mulf %115, %114 : vector<16x128xf32>
    %cst_56 = arith.constant 1.000000e+00 : f32
    %117 = vector.broadcast %cst_56 : f32 to vector<16x128xf32>
    %118 = arith.addf %117, %116 : vector<16x128xf32>
    %119 = tpu.reciprocal %118 {approx = true} : vector<16x128xf32> -> vector<16x128xf32>
    %120 = arith.mulf %118, %119 : vector<16x128xf32>
    %cst_57 = arith.constant 2.000000e+00 : f32
    %121 = vector.broadcast %cst_57 : f32 to vector<16x128xf32>
    %122 = arith.subf %121, %120 : vector<16x128xf32>
    %123 = arith.mulf %119, %122 : vector<16x128xf32>
    %cst_58 = arith.constant 1.06140542 : f32
    %124 = vector.broadcast %cst_58 : f32 to vector<16x128xf32>
    %125 = arith.mulf %124, %123 : vector<16x128xf32>
    %cst_59 = arith.constant -1.45315206 : f32
    %126 = vector.broadcast %cst_59 : f32 to vector<16x128xf32>
    %127 = arith.addf %125, %126 : vector<16x128xf32>
    %128 = arith.mulf %127, %123 : vector<16x128xf32>
    %cst_60 = arith.constant 1.42141378 : f32
    %129 = vector.broadcast %cst_60 : f32 to vector<16x128xf32>
    %130 = arith.addf %128, %129 : vector<16x128xf32>
    %131 = arith.mulf %130, %123 : vector<16x128xf32>
    %cst_61 = arith.constant -0.284496725 : f32
    %132 = vector.broadcast %cst_61 : f32 to vector<16x128xf32>
    %133 = arith.addf %131, %132 : vector<16x128xf32>
    %134 = arith.mulf %133, %123 : vector<16x128xf32>
    %cst_62 = arith.constant 0.254829586 : f32
    %135 = vector.broadcast %cst_62 : f32 to vector<16x128xf32>
    %136 = arith.addf %134, %135 : vector<16x128xf32>
    %137 = arith.mulf %136, %123 : vector<16x128xf32>
    %cst_63 = arith.constant 0.000000e+00 : f32
    %138 = vector.broadcast %cst_63 : f32 to vector<16x128xf32>
    %139 = arith.subf %138, %114 : vector<16x128xf32>
    %140 = arith.mulf %139, %114 : vector<16x128xf32>
    %141 = math.exp %140 : vector<16x128xf32>
    %142 = arith.mulf %137, %141 : vector<16x128xf32>
    %cst_64 = arith.constant 1.000000e+00 : f32
    %143 = vector.broadcast %cst_64 : f32 to vector<16x128xf32>
    %144 = arith.subf %143, %142 : vector<16x128xf32>
    %cst_65 = arith.constant 0.000000e+00 : f32
    %145 = vector.broadcast %cst_65 : f32 to vector<16x128xf32>
    %146 = arith.cmpf oge, %111, %145 : vector<16x128xf32>
    %cst_66 = arith.constant 0.000000e+00 : f32
    %147 = vector.broadcast %cst_66 : f32 to vector<16x128xf32>
    %148 = arith.subf %147, %144 : vector<16x128xf32>
    %149 = arith.select %146, %144, %148 : vector<16x128xi1>, vector<16x128xf32>
    %cst_67 = arith.constant 1.000000e+00 : f32
    %150 = vector.broadcast %cst_67 : f32 to vector<16x128xf32>
    %151 = arith.addf %150, %149 : vector<16x128xf32>
    %cst_68 = arith.constant 5.000000e-01 : f32
    %152 = vector.broadcast %cst_68 : f32 to vector<16x128xf32>
    %153 = arith.mulf %152, %151 : vector<16x128xf32>
    %154 = arith.mulf %111, %153 : vector<16x128xf32>
    %c0_69 = arith.constant 0 : index
    %c0_70 = arith.constant 0 : index
    %155 = vector.load %arg14[%c0_69, %c0_70] : memref<128x128xf32, #tpu.memory_space<vmem>>, vector<128x128xf32>
    %cst_71 = arith.constant dense<0.000000e+00> : vector<16x128xf32>
    %156 = tpu.matmul %154, %155, %cst_71 {dimension_numbers = #tpu.dot_dimension_numbers<[1], [0], [0], [1], [0, 0, 1, 1], [], []>} : vector<16x128xf32>, vector<128x128xf32>, vector<16x128xf32> -> vector<16x128xf32>
    %c0_72 = arith.constant 0 : index
    %c0_73 = arith.constant 0 : index
    %157 = vector.load %arg15[%c0_72, %c0_73] : memref<1x128xf32, #tpu.memory_space<vmem>>, vector<1x128xf32>
    %158 = vector.broadcast %157 : vector<1x128xf32> to vector<16x128xf32>
    %159 = arith.addf %156, %158 : vector<16x128xf32>
    %160 = arith.addf %84, %159 : vector<16x128xf32>
    %c0_74 = arith.constant 0 : index
    %c0_75 = arith.constant 0 : index
    %161 = vector.load %arg16[%c0_74, %c0_75] : memref<1x128xf32, #tpu.memory_space<vmem>>, vector<1x128xf32>
    %c0_76 = arith.constant 0 : index
    %c0_77 = arith.constant 0 : index
    %162 = vector.load %arg17[%c0_76, %c0_77] : memref<1x128xf32, #tpu.memory_space<vmem>>, vector<1x128xf32>
    %cst_78 = arith.constant dense<0.000000e+00> : vector<16xf32>
    %163 = vector.multi_reduction <add>, %160, %cst_78 [1] : vector<16x128xf32> to vector<16xf32>
    %164 = vector.shape_cast %163 : vector<16xf32> to vector<16x1xf32>
    %cst_79 = arith.constant 1.280000e+02 : f32
    %165 = vector.broadcast %cst_79 : f32 to vector<16x1xf32>
    %166 = arith.divf %164, %165 : vector<16x1xf32>
    %167 = vector.broadcast %166 : vector<16x1xf32> to vector<16x128xf32>
    %168 = arith.subf %160, %167 : vector<16x128xf32>
    %169 = arith.mulf %168, %168 : vector<16x128xf32>
    %cst_80 = arith.constant dense<0.000000e+00> : vector<16xf32>
    %170 = vector.multi_reduction <add>, %169, %cst_80 [1] : vector<16x128xf32> to vector<16xf32>
    %171 = vector.shape_cast %170 : vector<16xf32> to vector<16x1xf32>
    %cst_81 = arith.constant 1.280000e+02 : f32
    %172 = vector.broadcast %cst_81 : f32 to vector<16x1xf32>
    %173 = arith.divf %171, %172 : vector<16x1xf32>
    %cst_82 = arith.constant 9.99999974E-6 : f32
    %174 = vector.broadcast %cst_82 : f32 to vector<16x1xf32>
    %175 = arith.addf %173, %174 : vector<16x1xf32>
    %176 = math.rsqrt %175 : vector<16x1xf32>
    %177 = vector.broadcast %176 : vector<16x1xf32> to vector<16x128xf32>
    %178 = arith.mulf %168, %177 : vector<16x128xf32>
    %179 = vector.broadcast %161 : vector<1x128xf32> to vector<16x128xf32>
    %180 = arith.mulf %178, %179 : vector<16x128xf32>
    %181 = vector.broadcast %162 : vector<1x128xf32> to vector<16x128xf32>
    %182 = arith.addf %180, %181 : vector<16x128xf32>
    %183 = tpu.transpose %182, [1, 0] : vector<16x128xf32> -> vector<128x16xf32>
    %c0_83 = arith.constant 0 : index
    %c0_84 = arith.constant 0 : index
    %184 = vector.load %arg18[%c0_83, %c0_84] : memref<16x128xf32, #tpu.memory_space<vmem>>, vector<16x128xf32>
    %cst_85 = arith.constant dense<0.000000e+00> : vector<128x128xf32>
    %185 = tpu.matmul %183, %184, %cst_85 {dimension_numbers = #tpu.dot_dimension_numbers<[1], [0], [0], [1], [0, 0, 1, 1], [], []>} : vector<128x16xf32>, vector<16x128xf32>, vector<128x128xf32> -> vector<128x128xf32>
    %c0_86 = arith.constant 0 : index
    %c0_87 = arith.constant 0 : index
    %186 = vector.load %arg19[%c0_86, %c0_87] : memref<1x128xf32, #tpu.memory_space<vmem>>, vector<1x128xf32>
    %187 = vector.broadcast %186 : vector<1x128xf32> to vector<128x128xf32>
    %188 = arith.addf %185, %187 : vector<128x128xf32>
    %189 = math.absf %188 : vector<128x128xf32>
    %cst_88 = arith.constant 0.707106769 : f32
    %190 = vector.broadcast %cst_88 : f32 to vector<128x128xf32>
    %191 = arith.mulf %189, %190 : vector<128x128xf32>
    %cst_89 = arith.constant 0.327591091 : f32
    %192 = vector.broadcast %cst_89 : f32 to vector<128x128xf32>
    %193 = arith.mulf %192, %191 : vector<128x128xf32>
    %cst_90 = arith.constant 1.000000e+00 : f32
    %194 = vector.broadcast %cst_90 : f32 to vector<128x128xf32>
    %195 = arith.addf %194, %193 : vector<128x128xf32>
    %196 = tpu.reciprocal %195 {approx = true} : vector<128x128xf32> -> vector<128x128xf32>
    %197 = arith.mulf %195, %196 : vector<128x128xf32>
    %cst_91 = arith.constant 2.000000e+00 : f32
    %198 = vector.broadcast %cst_91 : f32 to vector<128x128xf32>
    %199 = arith.subf %198, %197 : vector<128x128xf32>
    %200 = arith.mulf %196, %199 : vector<128x128xf32>
    %cst_92 = arith.constant 1.06140542 : f32
    %201 = vector.broadcast %cst_92 : f32 to vector<128x128xf32>
    %202 = arith.mulf %201, %200 : vector<128x128xf32>
    %cst_93 = arith.constant -1.45315206 : f32
    %203 = vector.broadcast %cst_93 : f32 to vector<128x128xf32>
    %204 = arith.addf %202, %203 : vector<128x128xf32>
    %205 = arith.mulf %204, %200 : vector<128x128xf32>
    %cst_94 = arith.constant 1.42141378 : f32
    %206 = vector.broadcast %cst_94 : f32 to vector<128x128xf32>
    %207 = arith.addf %205, %206 : vector<128x128xf32>
    %208 = arith.mulf %207, %200 : vector<128x128xf32>
    %cst_95 = arith.constant -0.284496725 : f32
    %209 = vector.broadcast %cst_95 : f32 to vector<128x128xf32>
    %210 = arith.addf %208, %209 : vector<128x128xf32>
    %211 = arith.mulf %210, %200 : vector<128x128xf32>
    %cst_96 = arith.constant 0.254829586 : f32
    %212 = vector.broadcast %cst_96 : f32 to vector<128x128xf32>
    %213 = arith.addf %211, %212 : vector<128x128xf32>
    %214 = arith.mulf %213, %200 : vector<128x128xf32>
    %cst_97 = arith.constant 0.000000e+00 : f32
    %215 = vector.broadcast %cst_97 : f32 to vector<128x128xf32>
    %216 = arith.subf %215, %191 : vector<128x128xf32>
    %217 = arith.mulf %216, %191 : vector<128x128xf32>
    %218 = math.exp %217 : vector<128x128xf32>
    %219 = arith.mulf %214, %218 : vector<128x128xf32>
    %cst_98 = arith.constant 1.000000e+00 : f32
    %220 = vector.broadcast %cst_98 : f32 to vector<128x128xf32>
    %221 = arith.subf %220, %219 : vector<128x128xf32>
    %cst_99 = arith.constant 0.000000e+00 : f32
    %222 = vector.broadcast %cst_99 : f32 to vector<128x128xf32>
    %223 = arith.cmpf oge, %188, %222 : vector<128x128xf32>
    %cst_100 = arith.constant 0.000000e+00 : f32
    %224 = vector.broadcast %cst_100 : f32 to vector<128x128xf32>
    %225 = arith.subf %224, %221 : vector<128x128xf32>
    %226 = arith.select %223, %221, %225 : vector<128x128xi1>, vector<128x128xf32>
    %cst_101 = arith.constant 1.000000e+00 : f32
    %227 = vector.broadcast %cst_101 : f32 to vector<128x128xf32>
    %228 = arith.addf %227, %226 : vector<128x128xf32>
    %cst_102 = arith.constant 5.000000e-01 : f32
    %229 = vector.broadcast %cst_102 : f32 to vector<128x128xf32>
    %230 = arith.mulf %229, %228 : vector<128x128xf32>
    %231 = arith.mulf %188, %230 : vector<128x128xf32>
    %c0_103 = arith.constant 0 : index
    %c0_104 = arith.constant 0 : index
    %232 = vector.load %arg20[%c0_103, %c0_104] : memref<128x16xf32, #tpu.memory_space<vmem>>, vector<128x16xf32>
    %cst_105 = arith.constant dense<0.000000e+00> : vector<128x16xf32>
    %233 = tpu.matmul %231, %232, %cst_105 {dimension_numbers = #tpu.dot_dimension_numbers<[1], [0], [0], [1], [0, 0, 1, 1], [], []>} : vector<128x128xf32>, vector<128x16xf32>, vector<128x16xf32> -> vector<128x16xf32>
    %c0_106 = arith.constant 0 : index
    %c0_107 = arith.constant 0 : index
    %234 = vector.load %arg21[%c0_106, %c0_107] : memref<1x16xf32, #tpu.memory_space<vmem>>, vector<1x16xf32>
    %235 = vector.broadcast %234 : vector<1x16xf32> to vector<128x16xf32>
    %236 = arith.addf %233, %235 : vector<128x16xf32>
    %237 = tpu.transpose %236, [1, 0] : vector<128x16xf32> -> vector<16x128xf32>
    %238 = arith.addf %160, %237 : vector<16x128xf32>
    %c0_108 = arith.constant 0 : index
    %c0_109 = arith.constant 0 : index
    %239 = vector.load %arg22[%c0_108, %c0_109] : memref<1x128xf32, #tpu.memory_space<vmem>>, vector<1x128xf32>
    %c0_110 = arith.constant 0 : index
    %c0_111 = arith.constant 0 : index
    %240 = vector.load %arg23[%c0_110, %c0_111] : memref<1x128xf32, #tpu.memory_space<vmem>>, vector<1x128xf32>
    %cst_112 = arith.constant dense<0.000000e+00> : vector<16xf32>
    %241 = vector.multi_reduction <add>, %238, %cst_112 [1] : vector<16x128xf32> to vector<16xf32>
    %242 = vector.shape_cast %241 : vector<16xf32> to vector<16x1xf32>
    %cst_113 = arith.constant 1.280000e+02 : f32
    %243 = vector.broadcast %cst_113 : f32 to vector<16x1xf32>
    %244 = arith.divf %242, %243 : vector<16x1xf32>
    %245 = vector.broadcast %244 : vector<16x1xf32> to vector<16x128xf32>
    %246 = arith.subf %238, %245 : vector<16x128xf32>
    %247 = arith.mulf %246, %246 : vector<16x128xf32>
    %cst_114 = arith.constant dense<0.000000e+00> : vector<16xf32>
    %248 = vector.multi_reduction <add>, %247, %cst_114 [1] : vector<16x128xf32> to vector<16xf32>
    %249 = vector.shape_cast %248 : vector<16xf32> to vector<16x1xf32>
    %cst_115 = arith.constant 1.280000e+02 : f32
    %250 = vector.broadcast %cst_115 : f32 to vector<16x1xf32>
    %251 = arith.divf %249, %250 : vector<16x1xf32>
    %cst_116 = arith.constant 9.99999974E-6 : f32
    %252 = vector.broadcast %cst_116 : f32 to vector<16x1xf32>
    %253 = arith.addf %251, %252 : vector<16x1xf32>
    %254 = math.rsqrt %253 : vector<16x1xf32>
    %255 = vector.broadcast %254 : vector<16x1xf32> to vector<16x128xf32>
    %256 = arith.mulf %246, %255 : vector<16x128xf32>
    %257 = vector.broadcast %239 : vector<1x128xf32> to vector<16x128xf32>
    %258 = arith.mulf %256, %257 : vector<16x128xf32>
    %259 = vector.broadcast %240 : vector<1x128xf32> to vector<16x128xf32>
    %260 = arith.addf %258, %259 : vector<16x128xf32>
    %c0_117 = arith.constant 0 : index
    %c0_118 = arith.constant 0 : index
    %261 = vector.load %arg24[%c0_117, %c0_118] : memref<128x128xf32, #tpu.memory_space<vmem>>, vector<128x128xf32>
    %cst_119 = arith.constant dense<0.000000e+00> : vector<16x128xf32>
    %262 = tpu.matmul %260, %261, %cst_119 {dimension_numbers = #tpu.dot_dimension_numbers<[1], [0], [0], [1], [0, 0, 1, 1], [], []>} : vector<16x128xf32>, vector<128x128xf32>, vector<16x128xf32> -> vector<16x128xf32>
    %c0_120 = arith.constant 0 : index
    %c0_121 = arith.constant 0 : index
    %263 = vector.load %arg25[%c0_120, %c0_121] : memref<1x128xf32, #tpu.memory_space<vmem>>, vector<1x128xf32>
    %264 = vector.broadcast %263 : vector<1x128xf32> to vector<16x128xf32>
    %265 = arith.addf %262, %264 : vector<16x128xf32>
    %266 = math.absf %265 : vector<16x128xf32>
    %cst_122 = arith.constant 0.707106769 : f32
    %267 = vector.broadcast %cst_122 : f32 to vector<16x128xf32>
    %268 = arith.mulf %266, %267 : vector<16x128xf32>
    %cst_123 = arith.constant 0.327591091 : f32
    %269 = vector.broadcast %cst_123 : f32 to vector<16x128xf32>
    %270 = arith.mulf %269, %268 : vector<16x128xf32>
    %cst_124 = arith.constant 1.000000e+00 : f32
    %271 = vector.broadcast %cst_124 : f32 to vector<16x128xf32>
    %272 = arith.addf %271, %270 : vector<16x128xf32>
    %273 = tpu.reciprocal %272 {approx = true} : vector<16x128xf32> -> vector<16x128xf32>
    %274 = arith.mulf %272, %273 : vector<16x128xf32>
    %cst_125 = arith.constant 2.000000e+00 : f32
    %275 = vector.broadcast %cst_125 : f32 to vector<16x128xf32>
    %276 = arith.subf %275, %274 : vector<16x128xf32>
    %277 = arith.mulf %273, %276 : vector<16x128xf32>
    %cst_126 = arith.constant 1.06140542 : f32
    %278 = vector.broadcast %cst_126 : f32 to vector<16x128xf32>
    %279 = arith.mulf %278, %277 : vector<16x128xf32>
    %cst_127 = arith.constant -1.45315206 : f32
    %280 = vector.broadcast %cst_127 : f32 to vector<16x128xf32>
    %281 = arith.addf %279, %280 : vector<16x128xf32>
    %282 = arith.mulf %281, %277 : vector<16x128xf32>
    %cst_128 = arith.constant 1.42141378 : f32
    %283 = vector.broadcast %cst_128 : f32 to vector<16x128xf32>
    %284 = arith.addf %282, %283 : vector<16x128xf32>
    %285 = arith.mulf %284, %277 : vector<16x128xf32>
    %cst_129 = arith.constant -0.284496725 : f32
    %286 = vector.broadcast %cst_129 : f32 to vector<16x128xf32>
    %287 = arith.addf %285, %286 : vector<16x128xf32>
    %288 = arith.mulf %287, %277 : vector<16x128xf32>
    %cst_130 = arith.constant 0.254829586 : f32
    %289 = vector.broadcast %cst_130 : f32 to vector<16x128xf32>
    %290 = arith.addf %288, %289 : vector<16x128xf32>
    %291 = arith.mulf %290, %277 : vector<16x128xf32>
    %cst_131 = arith.constant 0.000000e+00 : f32
    %292 = vector.broadcast %cst_131 : f32 to vector<16x128xf32>
    %293 = arith.subf %292, %268 : vector<16x128xf32>
    %294 = arith.mulf %293, %268 : vector<16x128xf32>
    %295 = math.exp %294 : vector<16x128xf32>
    %296 = arith.mulf %291, %295 : vector<16x128xf32>
    %cst_132 = arith.constant 1.000000e+00 : f32
    %297 = vector.broadcast %cst_132 : f32 to vector<16x128xf32>
    %298 = arith.subf %297, %296 : vector<16x128xf32>
    %cst_133 = arith.constant 0.000000e+00 : f32
    %299 = vector.broadcast %cst_133 : f32 to vector<16x128xf32>
    %300 = arith.cmpf oge, %265, %299 : vector<16x128xf32>
    %cst_134 = arith.constant 0.000000e+00 : f32
    %301 = vector.broadcast %cst_134 : f32 to vector<16x128xf32>
    %302 = arith.subf %301, %298 : vector<16x128xf32>
    %303 = arith.select %300, %298, %302 : vector<16x128xi1>, vector<16x128xf32>
    %cst_135 = arith.constant 1.000000e+00 : f32
    %304 = vector.broadcast %cst_135 : f32 to vector<16x128xf32>
    %305 = arith.addf %304, %303 : vector<16x128xf32>
    %cst_136 = arith.constant 5.000000e-01 : f32
    %306 = vector.broadcast %cst_136 : f32 to vector<16x128xf32>
    %307 = arith.mulf %306, %305 : vector<16x128xf32>
    %308 = arith.mulf %265, %307 : vector<16x128xf32>
    %c0_137 = arith.constant 0 : index
    %c0_138 = arith.constant 0 : index
    %309 = vector.load %arg26[%c0_137, %c0_138] : memref<128x128xf32, #tpu.memory_space<vmem>>, vector<128x128xf32>
    %cst_139 = arith.constant dense<0.000000e+00> : vector<16x128xf32>
    %310 = tpu.matmul %308, %309, %cst_139 {dimension_numbers = #tpu.dot_dimension_numbers<[1], [0], [0], [1], [0, 0, 1, 1], [], []>} : vector<16x128xf32>, vector<128x128xf32>, vector<16x128xf32> -> vector<16x128xf32>
    %c0_140 = arith.constant 0 : index
    %c0_141 = arith.constant 0 : index
    %311 = vector.load %arg27[%c0_140, %c0_141] : memref<1x128xf32, #tpu.memory_space<vmem>>, vector<1x128xf32>
    %312 = vector.broadcast %311 : vector<1x128xf32> to vector<16x128xf32>
    %313 = arith.addf %310, %312 : vector<16x128xf32>
    %314 = arith.addf %238, %313 : vector<16x128xf32>
    %c0_142 = arith.constant 0 : index
    %c0_143 = arith.constant 0 : index
    %315 = vector.load %arg28[%c0_142, %c0_143] : memref<1x128xf32, #tpu.memory_space<vmem>>, vector<1x128xf32>
    %c0_144 = arith.constant 0 : index
    %c0_145 = arith.constant 0 : index
    %316 = vector.load %arg29[%c0_144, %c0_145] : memref<1x128xf32, #tpu.memory_space<vmem>>, vector<1x128xf32>
    %cst_146 = arith.constant dense<0.000000e+00> : vector<16xf32>
    %317 = vector.multi_reduction <add>, %314, %cst_146 [1] : vector<16x128xf32> to vector<16xf32>
    %318 = vector.shape_cast %317 : vector<16xf32> to vector<16x1xf32>
    %cst_147 = arith.constant 1.280000e+02 : f32
    %319 = vector.broadcast %cst_147 : f32 to vector<16x1xf32>
    %320 = arith.divf %318, %319 : vector<16x1xf32>
    %321 = vector.broadcast %320 : vector<16x1xf32> to vector<16x128xf32>
    %322 = arith.subf %314, %321 : vector<16x128xf32>
    %323 = arith.mulf %322, %322 : vector<16x128xf32>
    %cst_148 = arith.constant dense<0.000000e+00> : vector<16xf32>
    %324 = vector.multi_reduction <add>, %323, %cst_148 [1] : vector<16x128xf32> to vector<16xf32>
    %325 = vector.shape_cast %324 : vector<16xf32> to vector<16x1xf32>
    %cst_149 = arith.constant 1.280000e+02 : f32
    %326 = vector.broadcast %cst_149 : f32 to vector<16x1xf32>
    %327 = arith.divf %325, %326 : vector<16x1xf32>
    %cst_150 = arith.constant 9.99999974E-6 : f32
    %328 = vector.broadcast %cst_150 : f32 to vector<16x1xf32>
    %329 = arith.addf %327, %328 : vector<16x1xf32>
    %330 = math.rsqrt %329 : vector<16x1xf32>
    %331 = vector.broadcast %330 : vector<16x1xf32> to vector<16x128xf32>
    %332 = arith.mulf %322, %331 : vector<16x128xf32>
    %333 = vector.broadcast %315 : vector<1x128xf32> to vector<16x128xf32>
    %334 = arith.mulf %332, %333 : vector<16x128xf32>
    %335 = vector.broadcast %316 : vector<1x128xf32> to vector<16x128xf32>
    %336 = arith.addf %334, %335 : vector<16x128xf32>
    %cst_151 = arith.constant dense<0.000000e+00> : vector<128xf32>
    %337 = vector.multi_reduction <add>, %336, %cst_151 [0] : vector<16x128xf32> to vector<128xf32>
    %338 = vector.shape_cast %337 : vector<128xf32> to vector<1x128xf32>
    %cst_152 = arith.constant 1.600000e+01 : f32
    %339 = vector.broadcast %cst_152 : f32 to vector<1x128xf32>
    %340 = arith.divf %338, %339 : vector<1x128xf32>
    %c0_153 = arith.constant 0 : index
    %c0_154 = arith.constant 0 : index
    %341 = vector.load %arg30[%c0_153, %c0_154] : memref<128x128xf32, #tpu.memory_space<vmem>>, vector<128x128xf32>
    %cst_155 = arith.constant dense<0.000000e+00> : vector<1x128xf32>
    %342 = tpu.matmul %340, %341, %cst_155 {dimension_numbers = #tpu.dot_dimension_numbers<[1], [0], [0], [1], [0, 0, 1, 1], [], []>} : vector<1x128xf32>, vector<128x128xf32>, vector<1x128xf32> -> vector<1x128xf32>
    %c0_156 = arith.constant 0 : index
    %c0_157 = arith.constant 0 : index
    %343 = vector.load %arg31[%c0_156, %c0_157] : memref<1x128xf32, #tpu.memory_space<vmem>>, vector<1x128xf32>
    %344 = arith.addf %342, %343 : vector<1x128xf32>
    %cst_158 = arith.constant dense<0xFF800000> : vector<1xf32>
    %345 = vector.multi_reduction <maximumf>, %344, %cst_158 [1] : vector<1x128xf32> to vector<1xf32>
    %346 = vector.shape_cast %345 : vector<1xf32> to vector<1x1xf32>
    %347 = vector.broadcast %346 : vector<1x1xf32> to vector<1x128xf32>
    %348 = arith.subf %344, %347 : vector<1x128xf32>
    %349 = math.exp %348 : vector<1x128xf32>
    %cst_159 = arith.constant dense<0.000000e+00> : vector<1xf32>
    %350 = vector.multi_reduction <add>, %349, %cst_159 [1] : vector<1x128xf32> to vector<1xf32>
    %351 = vector.shape_cast %350 : vector<1xf32> to vector<1x1xf32>
    %352 = math.log %351 : vector<1x1xf32>
    %353 = vector.broadcast %352 : vector<1x1xf32> to vector<1x128xf32>
    %354 = arith.subf %348, %353 : vector<1x128xf32>
    %c0_160 = arith.constant 0 : index
    %c0_161 = arith.constant 0 : index
    %c0_162 = arith.constant 0 : index
    %355 = vector.load %arg32[%c0_160, %c0_161, %c0_162] : memref<1x1x128xf32, #tpu.memory_space<vmem>>, vector<1x1x128xf32>
    %356 = vector.shape_cast %355 : vector<1x1x128xf32> to vector<1x128xf32>
    %357 = vector.shape_cast %354 : vector<1x128xf32> to vector<1x1x128xf32>
    tpu.vector_store %arg32[%c0_160, %c0_161, %c0_162], %357 {strides = array<i32>} : memref<1x1x128xf32, #tpu.memory_space<vmem>>, vector<1x1x128xf32>,
    return
  }
  func.func @transform_0(%arg0: i32) -> (i32, i32, i32) {
    %c0_i32 = arith.constant 0 : i32
    %c0_i32_0 = arith.constant 0 : i32
    %c0_i32_1 = arith.constant 0 : i32
    return %arg0, %c0_i32, %c0_i32_0 : i32, i32, i32
  }
  func.func @transform_1(%arg0: i32) -> (i32, i32) {
    %c0_i32 = arith.constant 0 : i32
    %c0_i32_0 = arith.constant 0 : i32
    %c0_i32_1 = arith.constant 0 : i32
    return %c0_i32, %c0_i32_0 : i32, i32
  }
  func.func @transform_2(%arg0: i32) -> (i32, i32) {
    %c0_i32 = arith.constant 0 : i32
    %c0_i32_0 = arith.constant 0 : i32
    %c0_i32_1 = arith.constant 0 : i32
    return %c0_i32, %c0_i32_0 : i32, i32
  }
  func.func @transform_3(%arg0: i32) -> (i32, i32) {
    %c0_i32 = arith.constant 0 : i32
    %c0_i32_0 = arith.constant 0 : i32
    %c0_i32_1 = arith.constant 0 : i32
    return %c0_i32, %c0_i32_0 : i32, i32
  }
  func.func @transform_4(%arg0: i32) -> (i32, i32) {
    %c0_i32 = arith.constant 0 : i32
    %c0_i32_0 = arith.constant 0 : i32
    %c0_i32_1 = arith.constant 0 : i32
    return %c0_i32, %c0_i32_0 : i32, i32
  }
  func.func @transform_5(%arg0: i32) -> (i32, i32) {
    %c0_i32 = arith.constant 0 : i32
    %c0_i32_0 = arith.constant 0 : i32
    %c0_i32_1 = arith.constant 0 : i32
    return %c0_i32, %c0_i32_0 : i32, i32
  }
  func.func @transform_6(%arg0: i32) -> (i32, i32) {
    %c0_i32 = arith.constant 0 : i32
    %c0_i32_0 = arith.constant 0 : i32
    %c0_i32_1 = arith.constant 0 : i32
    return %c0_i32, %c0_i32_0 : i32, i32
  }
  func.func @transform_7(%arg0: i32) -> (i32, i32) {
    %c0_i32 = arith.constant 0 : i32
    %c0_i32_0 = arith.constant 0 : i32
    %c0_i32_1 = arith.constant 0 : i32
    return %c0_i32, %c0_i32_0 : i32, i32
  }
  func.func @transform_8(%arg0: i32) -> (i32, i32) {
    %c0_i32 = arith.constant 0 : i32
    %c0_i32_0 = arith.constant 0 : i32
    %c0_i32_1 = arith.constant 0 : i32
    return %c0_i32, %c0_i32_0 : i32, i32
  }
  func.func @transform_9(%arg0: i32) -> (i32, i32) {
    %c0_i32 = arith.constant 0 : i32
    %c0_i32_0 = arith.constant 0 : i32
    %c0_i32_1 = arith.constant 0 : i32
    return %c0_i32, %c0_i32_0 : i32, i32
  }
  func.func @transform_10(%arg0: i32) -> (i32, i32) {
    %c0_i32 = arith.constant 0 : i32
    %c0_i32_0 = arith.constant 0 : i32
    %c0_i32_1 = arith.constant 0 : i32
    return %c0_i32, %c0_i32_0 : i32, i32
  }
  func.func @transform_11(%arg0: i32) -> (i32, i32) {
    %c0_i32 = arith.constant 0 : i32
    %c0_i32_0 = arith.constant 0 : i32
    %c0_i32_1 = arith.constant 0 : i32
    return %c0_i32, %c0_i32_0 : i32, i32
  }
  func.func @transform_12(%arg0: i32) -> (i32, i32) {
    %c0_i32 = arith.constant 0 : i32
    %c0_i32_0 = arith.constant 0 : i32
    %c0_i32_1 = arith.constant 0 : i32
    return %c0_i32, %c0_i32_0 : i32, i32
  }
  func.func @transform_13(%arg0: i32) -> (i32, i32) {
    %c0_i32 = arith.constant 0 : i32
    %c0_i32_0 = arith.constant 0 : i32
    %c0_i32_1 = arith.constant 0 : i32
    return %c0_i32, %c0_i32_0 : i32, i32
  }
  func.func @transform_14(%arg0: i32) -> (i32, i32) {
    %c0_i32 = arith.constant 0 : i32
    %c0_i32_0 = arith.constant 0 : i32
    %c0_i32_1 = arith.constant 0 : i32
    return %c0_i32, %c0_i32_0 : i32, i32
  }
  func.func @transform_15(%arg0: i32) -> (i32, i32) {
    %c0_i32 = arith.constant 0 : i32
    %c0_i32_0 = arith.constant 0 : i32
    %c0_i32_1 = arith.constant 0 : i32
    return %c0_i32, %c0_i32_0 : i32, i32
  }
  func.func @transform_16(%arg0: i32) -> (i32, i32) {
    %c0_i32 = arith.constant 0 : i32
    %c0_i32_0 = arith.constant 0 : i32
    %c0_i32_1 = arith.constant 0 : i32
    return %c0_i32, %c0_i32_0 : i32, i32
  }
  func.func @transform_17(%arg0: i32) -> (i32, i32) {
    %c0_i32 = arith.constant 0 : i32
    %c0_i32_0 = arith.constant 0 : i32
    %c0_i32_1 = arith.constant 0 : i32
    return %c0_i32, %c0_i32_0 : i32, i32
  }
  func.func @transform_18(%arg0: i32) -> (i32, i32) {
    %c0_i32 = arith.constant 0 : i32
    %c0_i32_0 = arith.constant 0 : i32
    %c0_i32_1 = arith.constant 0 : i32
    return %c0_i32, %c0_i32_0 : i32, i32
  }
  func.func @transform_19(%arg0: i32) -> (i32, i32) {
    %c0_i32 = arith.constant 0 : i32
    %c0_i32_0 = arith.constant 0 : i32
    %c0_i32_1 = arith.constant 0 : i32
    return %c0_i32, %c0_i32_0 : i32, i32
  }
  func.func @transform_20(%arg0: i32) -> (i32, i32) {
    %c0_i32 = arith.constant 0 : i32
    %c0_i32_0 = arith.constant 0 : i32
    %c0_i32_1 = arith.constant 0 : i32
    return %c0_i32, %c0_i32_0 : i32, i32
  }
  func.func @transform_21(%arg0: i32) -> (i32, i32) {
    %c0_i32 = arith.constant 0 : i32
    %c0_i32_0 = arith.constant 0 : i32
    %c0_i32_1 = arith.constant 0 : i32
    return %c0_i32, %c0_i32_0 : i32, i32
  }
  func.func @transform_22(%arg0: i32) -> (i32, i32) {
    %c0_i32 = arith.constant 0 : i32
    %c0_i32_0 = arith.constant 0 : i32
    %c0_i32_1 = arith.constant 0 : i32
    return %c0_i32, %c0_i32_0 : i32, i32
  }
  func.func @transform_23(%arg0: i32) -> (i32, i32) {
    %c0_i32 = arith.constant 0 : i32
    %c0_i32_0 = arith.constant 0 : i32
    %c0_i32_1 = arith.constant 0 : i32
    return %c0_i32, %c0_i32_0 : i32, i32
  }
  func.func @transform_24(%arg0: i32) -> (i32, i32) {
    %c0_i32 = arith.constant 0 : i32
    %c0_i32_0 = arith.constant 0 : i32
    %c0_i32_1 = arith.constant 0 : i32
    return %c0_i32, %c0_i32_0 : i32, i32
  }
  func.func @transform_25(%arg0: i32) -> (i32, i32) {
    %c0_i32 = arith.constant 0 : i32
    %c0_i32_0 = arith.constant 0 : i32
    %c0_i32_1 = arith.constant 0 : i32
    return %c0_i32, %c0_i32_0 : i32, i32
  }
  func.func @transform_26(%arg0: i32) -> (i32, i32) {
    %c0_i32 = arith.constant 0 : i32
    %c0_i32_0 = arith.constant 0 : i32
    %c0_i32_1 = arith.constant 0 : i32
    return %c0_i32, %c0_i32_0 : i32, i32
  }
  func.func @transform_27(%arg0: i32) -> (i32, i32) {
    %c0_i32 = arith.constant 0 : i32
    %c0_i32_0 = arith.constant 0 : i32
    %c0_i32_1 = arith.constant 0 : i32
    return %c0_i32, %c0_i32_0 : i32, i32
  }
  func.func @transform_28(%arg0: i32) -> (i32, i32) {
    %c0_i32 = arith.constant 0 : i32
    %c0_i32_0 = arith.constant 0 : i32
    %c0_i32_1 = arith.constant 0 : i32
    return %c0_i32, %c0_i32_0 : i32, i32
  }
  func.func @transform_29(%arg0: i32) -> (i32, i32) {
    %c0_i32 = arith.constant 0 : i32
    %c0_i32_0 = arith.constant 0 : i32
    %c0_i32_1 = arith.constant 0 : i32
    return %c0_i32, %c0_i32_0 : i32, i32
  }
  func.func @transform_30(%arg0: i32) -> (i32, i32) {
    %c0_i32 = arith.constant 0 : i32
    %c0_i32_0 = arith.constant 0 : i32
    %c0_i32_1 = arith.constant 0 : i32
    return %c0_i32, %c0_i32_0 : i32, i32
  }
  func.func @transform_31(%arg0: i32) -> (i32, i32, i32) {
    %c0_i32 = arith.constant 0 : i32
    %c0_i32_0 = arith.constant 0 : i32
    %c0_i32_1 = arith.constant 0 : i32
    return %arg0, %c0_i32, %c0_i32_0 : i32, i32, i32
  }
}

</mosaic_0001>

<llo_original>
// kernel: mixer_forward.1
$region0: #{mixer_forward.1}
  #allocation0 [shape = 'u32[]', space=smem, size = 0x4, offset = 0x4, fixed_abs, tag = 'smem constant byte address 0x4 - core index']
  #allocation1 [shape = 'u32[72,128]{1,0:T(1,128)}', space=vmem, size = 0x9000, scoped, tag = 'internal scratch']
  %s0 = inlined_call_operand.smem [shape: u32[32], index: -1, kind: input, shape index: {}]
  %s1 = sld [smem:[%s0]]
  %s2 = scalar_lea.smem %s0, 1
  %s3 = sld [smem:[%s2]]
  %s4 = scalar_lea.smem %s0, 2
  %s5 = sld [smem:[%s4]]
  %s6 = scalar_lea.smem %s0, 3
  %s7 = sld [smem:[%s6]]
  %s8 = scalar_lea.smem %s0, 4
  %s9 = sld [smem:[%s8]]
  %s10 = scalar_lea.smem %s0, 5
  %s11 = sld [smem:[%s10]]
  %s12 = scalar_lea.smem %s0, 6
  %s13 = sld [smem:[%s12]]
  %s14 = scalar_lea.smem %s0, 7
  %s15 = sld [smem:[%s14]]
  %s16 = scalar_lea.smem %s0, 8
  %s17 = sld [smem:[%s16]]
  %s18 = scalar_lea.smem %s0, 9
  %s19 = sld [smem:[%s18]]
  %s20 = scalar_lea.smem %s0, 10
  %s21 = sld [smem:[%s20]]
  %s22 = scalar_lea.smem %s0, 11
  %s23 = sld [smem:[%s22]]
  %s24 = scalar_lea.smem %s0, 12
  %s25 = sld [smem:[%s24]]
  %s26 = scalar_lea.smem %s0, 13
  %s27 = sld [smem:[%s26]]
  %s28 = scalar_lea.smem %s0, 14
  %s29 = sld [smem:[%s28]]
  %s30 = scalar_lea.smem %s0, 15
  %s31 = sld [smem:[%s30]]
  %s32 = scalar_lea.smem %s0, 16
  %s33 = sld [smem:[%s32]]
  %s34 = scalar_lea.smem %s0, 17
  %s35 = sld [smem:[%s34]]
  %s36 = scalar_lea.smem %s0, 18
  %s37 = sld [smem:[%s36]]
  %s38 = scalar_lea.smem %s0, 19
  %s39 = sld [smem:[%s38]]
  %s40 = scalar_lea.smem %s0, 20
  %s41 = sld [smem:[%s40]]
  %s42 = scalar_lea.smem %s0, 21
  %s43 = sld [smem:[%s42]]
  %s44 = scalar_lea.smem %s0, 22
  %s45 = sld [smem:[%s44]]
  %s46 = scalar_lea.smem %s0, 23
  %s47 = sld [smem:[%s46]]
  %s48 = scalar_lea.smem %s0, 24
  %s49 = sld [smem:[%s48]]
  %s50 = scalar_lea.smem %s0, 25
  %s51 = sld [smem:[%s50]]
  %s52 = scalar_lea.smem %s0, 26
  %s53 = sld [smem:[%s52]]
  %s54 = scalar_lea.smem %s0, 27
  %s55 = sld [smem:[%s54]]
  %s56 = scalar_lea.smem %s0, 28
  %s57 = sld [smem:[%s56]]
  %s58 = scalar_lea.smem %s0, 29
  %s59 = sld [smem:[%s58]]
  %s60 = scalar_lea.smem %s0, 30
  %s61 = sld [smem:[%s60]]
  %s62 = scalar_lea.smem %s0, 31
  %s63 = sld [smem:[%s62]]
  %s64 = sld [smem:[#allocation0]]
  $region157: #{mixer_forward.1} parent=0
    _
  %s66 = ssub.s32 1, %s64
  %s67 = scalar_select 0, %s66, %s64
  $region1: #{mixer_forward.1} parent=0
    #allocation2 [shape = 'u8[1024]{0}', space=vmem, size = 0x400, scoped, tag = 'output window, operand 0']
    #allocation3 [shape = 's32[2]{0}', space=sflag, size = 0x8, scoped, tag = 'scoped memory for mixer_forward.1']
    %68 = vsyncpa [#allocation3], 0
    %s69 = scalar_lea.sflag [#allocation3], 1
    %70 = vsyncpa %s69, 0
    loop: start=0, step=1, limit=4
    $region2: #{mixer_forward.1} parent=1 // loop_pre_header
      _
    $region3: #{mixer_forward.1} parent=1 // loop_header
      %s72 = sphi 0, %s76
      %p73 = scmp.ge.s32.totalorder %s72, 4
      %s82 = sphi 0, %s84
      %s85 = sphi 0, %s82
      %s86 = sphi 0, %s85
      %s102 = sphi 0, %s86
      %s106 = sphi 0, %s106
      %s108 = sphi 0, %s106
      %s109 = sphi 0, %s108
      %s123 = sphi 0, %s109
      %s127 = sphi 0, %s127
      %s129 = sphi 0, %s127
      %s130 = sphi 0, %s129
      %s144 = sphi 0, %s130
      %s148 = sphi 0, %s148
      %s150 = sphi 0, %s148
      %s151 = sphi 0, %s150
      %s165 = sphi 0, %s151
      %s169 = sphi 0, %s169
      %s171 = sphi 0, %s169
      %s172 = sphi 0, %s171
      %s186 = sphi 0, %s172
      %s190 = sphi 0, %s190
      %s192 = sphi 0, %s190
      %s193 = sphi 0, %s192
      %s207 = sphi 0, %s193
      %s211 = sphi 0, %s211
      %s213 = sphi 0, %s211
      %s214 = sphi 0, %s213
      %s228 = sphi 0, %s214
      %s232 = sphi 0, %s232
      %s234 = sphi 0, %s232
      %s235 = sphi 0, %s234
      %s249 = sphi 0, %s235
      %s253 = sphi 0, %s253
      %s255 = sphi 0, %s253
      %s256 = sphi 0, %s255
      %s270 = sphi 0, %s256
      %s274 = sphi 0, %s274
      %s276 = sphi 0, %s274
      %s277 = sphi 0, %s276
      %s291 = sphi 0, %s277
      %s295 = sphi 0, %s295
      %s297 = sphi 0, %s295
      %s298 = sphi 0, %s297
      %s312 = sphi 0, %s298
      %s316 = sphi 0, %s316
      %s318 = sphi 0, %s316
      %s319 = sphi 0, %s318
      %s333 = sphi 0, %s319
      %s337 = sphi 0, %s337
      %s339 = sphi 0, %s337
      %s340 = sphi 0, %s339
      %s354 = sphi 0, %s340
      %s358 = sphi 0, %s358
      %s360 = sphi 0, %s358
      %s361 = sphi 0, %s360
      %s375 = sphi 0, %s361
      %s379 = sphi 0, %s379
      %s381 = sphi 0, %s379
      %s382 = sphi 0, %s381
      %s396 = sphi 0, %s382
      %s400 = sphi 0, %s400
      %s402 = sphi 0, %s400
      %s403 = sphi 0, %s402
      %s417 = sphi 0, %s403
      %s421 = sphi 0, %s421
      %s423 = sphi 0, %s421
      %s424 = sphi 0, %s423
      %s438 = sphi 0, %s424
      %s442 = sphi 0, %s442
      %s444 = sphi 0, %s442
      %s445 = sphi 0, %s444
      %s459 = sphi 0, %s445
      %s463 = sphi 0, %s463
      %s465 = sphi 0, %s463
      %s466 = sphi 0, %s465
      %s480 = sphi 0, %s466
      %s484 = sphi 0, %s484
      %s486 = sphi 0, %s484
      %s487 = sphi 0, %s486
      %s501 = sphi 0, %s487
      %s505 = sphi 0, %s505
      %s507 = sphi 0, %s505
      %s508 = sphi 0, %s507
      %s522 = sphi 0, %s508
      %s526 = sphi 0, %s526
      %s528 = sphi 0, %s526
      %s529 = sphi 0, %s528
      %s543 = sphi 0, %s529
      %s547 = sphi 0, %s547
      %s549 = sphi 0, %s547
      %s550 = sphi 0, %s549
      %s564 = sphi 0, %s550
      %s568 = sphi 0, %s568
      %s570 = sphi 0, %s568
      %s571 = sphi 0, %s570
      %s585 = sphi 0, %s571
      %s589 = sphi 0, %s589
      %s591 = sphi 0, %s589
      %s592 = sphi 0, %s591
      %s606 = sphi 0, %s592
      %s610 = sphi 0, %s610
      %s612 = sphi 0, %s610
      %s613 = sphi 0, %s612
      %s627 = sphi 0, %s613
      %s631 = sphi 0, %s631
      %s633 = sphi 0, %s631
      %s634 = sphi 0, %s633
      %s648 = sphi 0, %s634
      %s652 = sphi 0, %s652
      %s654 = sphi 0, %s652
      %s655 = sphi 0, %s654
      %s669 = sphi 0, %s655
      %s673 = sphi 0, %s673
      %s675 = sphi 0, %s673
      %s676 = sphi 0, %s675
      %s690 = sphi 0, %s676
      %s694 = sphi 0, %s694
      %s696 = sphi 0, %s694
      %s697 = sphi 0, %s696
      %s711 = sphi 0, %s697
      %s715 = sphi 0, %s715
      %s717 = sphi 0, %s715
      %s718 = sphi 0, %s717
      %s732 = sphi 0, %s718
      %s738 = sphi 0, %s740
      %s741 = sphi 0, %s738
      %s742 = sphi 0, %s741
      %s758 = sphi 0, %s742
    $region4: #{mixer_forward.1} parent=1 // loop_header_branch
      %75 = sbr.rel (%p73) target = $region8
    $region5: #{mixer_forward.1} parent=1 // loop_body
      %s77 = ssub.s32 %s72, 1
      %s78 = ssub.s32 %s72, 2
      %s79 = sadd.s32 %s72, 1
      %s80 = ssub.s32 %s72, %s79
      %p81 = scmp.eq.s32.totalorder %s80, 0
      %s83 = sadd.s32 %s82, 1
      %s84 = scalar_select %p81, %s82, %s83
      %p87 = pneg %p81
      %p88 = scmp.eq.s32.totalorder %s72, 1
      %p89 = por %p87, %p88
      %p90 = scmp.ne.s32.totalorder %s82, %s85
      %p91 = scmp.eq.s32.totalorder %s72, 0
      %p92 = por %p90, %p91
      %p93 = scmp.ne.s32.totalorder %s82, %s85
      %p94 = scmp.eq.s32.totalorder %s77, 1
      %p95 = por %p93, %p94
      %p96 = scmp.ne.s32.totalorder %s85, %s86
      %p97 = scmp.eq.s32.totalorder %s77, 0
      %p98 = por %p96, %p97
      %p99 = scmp.ne.s32.totalorder %s85, %s86
      %p100 = scmp.eq.s32.totalorder %s78, 1
      %p101 = por %p99, %p100
      %p103 = scmp.ne.s32.totalorder %s86, %s102
      %p104 = scmp.eq.s32.totalorder %s78, 0
      %p105 = por %p103, %p104
      %s107 = sadd.s32 %s106, 1
      %p110 = scmp.eq.s32.totalorder %s72, 1
      %p111 = scmp.ne.s32.totalorder %s106, %s108
      %p112 = scmp.eq.s32.totalorder %s72, 0
      %p113 = por %p111, %p112
      %p114 = scmp.ne.s32.totalorder %s106, %s108
      %p115 = scmp.eq.s32.totalorder %s77, 1
      %p116 = por %p114, %p115
      %p117 = scmp.ne.s32.totalorder %s108, %s109
      %p118 = scmp.eq.s32.totalorder %s77, 0
      %p119 = por %p117, %p118
      %p120 = scmp.ne.s32.totalorder %s108, %s109
      %p121 = scmp.eq.s32.totalorder %s78, 1
      %p122 = por %p120, %p121
      %p124 = scmp.ne.s32.totalorder %s109, %s123
      %p125 = scmp.eq.s32.totalorder %s78, 0
      %p126 = por %p124, %p125
      %s128 = sadd.s32 %s127, 1
      %p131 = scmp.eq.s32.totalorder %s72, 1
      %p132 = scmp.ne.s32.totalorder %s127, %s129
      %p133 = scmp.eq.s32.totalorder %s72, 0
      %p134 = por %p132, %p133
      %p135 = scmp.ne.s32.totalorder %s127, %s129
      %p136 = scmp.eq.s32.totalorder %s77, 1
      %p137 = por %p135, %p136
      %p138 = scmp.ne.s32.totalorder %s129, %s130
      %p139 = scmp.eq.s32.totalorder %s77, 0
      %p140 = por %p138, %p139
      %p141 = scmp.ne.s32.totalorder %s129, %s130
      %p142 = scmp.eq.s32.totalorder %s78, 1
      %p143 = por %p141, %p142
      %p145 = scmp.ne.s32.totalorder %s130, %s144
      %p146 = scmp.eq.s32.totalorder %s78, 0
      %p147 = por %p145, %p146
      %s149 = sadd.s32 %s148, 1
      %p152 = scmp.eq.s32.totalorder %s72, 1
      %p153 = scmp.ne.s32.totalorder %s148, %s150
      %p154 = scmp.eq.s32.totalorder %s72, 0
      %p155 = por %p153, %p154
      %p156 = scmp.ne.s32.totalorder %s148, %s150
      %p157 = scmp.eq.s32.totalorder %s77, 1
      %p158 = por %p156, %p157
      %p159 = scmp.ne.s32.totalorder %s150, %s151
      %p160 = scmp.eq.s32.totalorder %s77, 0
      %p161 = por %p159, %p160
      %p162 = scmp.ne.s32.totalorder %s150, %s151
      %p163 = scmp.eq.s32.totalorder %s78, 1
      %p164 = por %p162, %p163
      %p166 = scmp.ne.s32.totalorder %s151, %s165
      %p167 = scmp.eq.s32.totalorder %s78, 0
      %p168 = por %p166, %p167
      %s170 = sadd.s32 %s169, 1
      %p173 = scmp.eq.s32.totalorder %s72, 1
      %p174 = scmp.ne.s32.totalorder %s169, %s171
      %p175 = scmp.eq.s32.totalorder %s72, 0
      %p176 = por %p174, %p175
      %p177 = scmp.ne.s32.totalorder %s169, %s171
      %p178 = scmp.eq.s32.totalorder %s77, 1
      %p179 = por %p177, %p178
      %p180 = scmp.ne.s32.totalorder %s171, %s172
      %p181 = scmp.eq.s32.totalorder %s77, 0
      %p182 = por %p180, %p181
      %p183 = scmp.ne.s32.totalorder %s171, %s172
      %p184 = scmp.eq.s32.totalorder %s78, 1
      %p185 = por %p183, %p184
      %p187 = scmp.ne.s32.totalorder %s172, %s186
      %p188 = scmp.eq.s32.totalorder %s78, 0
      %p189 = por %p187, %p188
      %s191 = sadd.s32 %s190, 1
      %p194 = scmp.eq.s32.totalorder %s72, 1
      %p195 = scmp.ne.s32.totalorder %s190, %s192
      %p196 = scmp.eq.s32.totalorder %s72, 0
      %p197 = por %p195, %p196
      %p198 = scmp.ne.s32.totalorder %s190, %s192
      %p199 = scmp.eq.s32.totalorder %s77, 1
      %p200 = por %p198, %p199
      %p201 = scmp.ne.s32.totalorder %s192, %s193
      %p202 = scmp.eq.s32.totalorder %s77, 0
      %p203 = por %p201, %p202
      %p204 = scmp.ne.s32.totalorder %s192, %s193
      %p205 = scmp.eq.s32.totalorder %s78, 1
      %p206 = por %p204, %p205
      %p208 = scmp.ne.s32.totalorder %s193, %s207
      %p209 = scmp.eq.s32.totalorder %s78, 0
      %p210 = por %p208, %p209
      %s212 = sadd.s32 %s211, 1
      %p215 = scmp.eq.s32.totalorder %s72, 1
      %p216 = scmp.ne.s32.totalorder %s211, %s213
      %p217 = scmp.eq.s32.totalorder %s72, 0
      %p218 = por %p216, %p217
      %p219 = scmp.ne.s32.totalorder %s211, %s213
      %p220 = scmp.eq.s32.totalorder %s77, 1
      %p221 = por %p219, %p220
      %p222 = scmp.ne.s32.totalorder %s213, %s214
      %p223 = scmp.eq.s32.totalorder %s77, 0
      %p224 = por %p222, %p223
      %p225 = scmp.ne.s32.totalorder %s213, %s214
      %p226 = scmp.eq.s32.totalorder %s78, 1
      %p227 = por %p225, %p226
      %p229 = scmp.ne.s32.totalorder %s214, %s228
      %p230 = scmp.eq.s32.totalorder %s78, 0
      %p231 = por %p229, %p230
      %s233 = sadd.s32 %s232, 1
      %p236 = scmp.eq.s32.totalorder %s72, 1
      %p237 = scmp.ne.s32.totalorder %s232, %s234
      %p238 = scmp.eq.s32.totalorder %s72, 0
      %p239 = por %p237, %p238
      %p240 = scmp.ne.s32.totalorder %s232, %s234
      %p241 = scmp.eq.s32.totalorder %s77, 1
      %p242 = por %p240, %p241
      %p243 = scmp.ne.s32.totalorder %s234, %s235
      %p244 = scmp.eq.s32.totalorder %s77, 0
      %p245 = por %p243, %p244
      %p246 = scmp.ne.s32.totalorder %s234, %s235
      %p247 = scmp.eq.s32.totalorder %s78, 1
      %p248 = por %p246, %p247
      %p250 = scmp.ne.s32.totalorder %s235, %s249
      %p251 = scmp.eq.s32.totalorder %s78, 0
      %p252 = por %p250, %p251
      %s254 = sadd.s32 %s253, 1
      %p257 = scmp.eq.s32.totalorder %s72, 1
      %p258 = scmp.ne.s32.totalorder %s253, %s255
      %p259 = scmp.eq.s32.totalorder %s72, 0
      %p260 = por %p258, %p259
      %p261 = scmp.ne.s32.totalorder %s253, %s255
      %p262 = scmp.eq.s32.totalorder %s77, 1
      %p263 = por %p261, %p262
      %p264 = scmp.ne.s32.totalorder %s255, %s256
      %p265 = scmp.eq.s32.totalorder %s77, 0
      %p266 = por %p264, %p265
      %p267 = scmp.ne.s32.totalorder %s255, %s256
      %p268 = scmp.eq.s32.totalorder %s78, 1
      %p269 = por %p267, %p268
      %p271 = scmp.ne.s32.totalorder %s256, %s270
      %p272 = scmp.eq.s32.totalorder %s78, 0
      %p273 = por %p271, %p272
      %s275 = sadd.s32 %s274, 1
      %p278 = scmp.eq.s32.totalorder %s72, 1
      %p279 = scmp.ne.s32.totalorder %s274, %s276
      %p280 = scmp.eq.s32.totalorder %s72, 0
      %p281 = por %p279, %p280
      %p282 = scmp.ne.s32.totalorder %s274, %s276
      %p283 = scmp.eq.s32.totalorder %s77, 1
      %p284 = por %p282, %p283
      %p285 = scmp.ne.s32.totalorder %s276, %s277
      %p286 = scmp.eq.s32.totalorder %s77, 0
      %p287 = por %p285, %p286
      %p288 = scmp.ne.s32.totalorder %s276, %s277
      %p289 = scmp.eq.s32.totalorder %s78, 1
      %p290 = por %p288, %p289
      %p292 = scmp.ne.s32.totalorder %s277, %s291
      %p293 = scmp.eq.s32.totalorder %s78, 0
      %p294 = por %p292, %p293
      %s296 = sadd.s32 %s295, 1
      %p299 = scmp.eq.s32.totalorder %s72, 1
      %p300 = scmp.ne.s32.totalorder %s295, %s297
      %p301 = scmp.eq.s32.totalorder %s72, 0
      %p302 = por %p300, %p301
      %p303 = scmp.ne.s32.totalorder %s295, %s297
      %p304 = scmp.eq.s32.totalorder %s77, 1
      %p305 = por %p303, %p304
      %p306 = scmp.ne.s32.totalorder %s297, %s298
      %p307 = scmp.eq.s32.totalorder %s77, 0
      %p308 = por %p306, %p307
      %p309 = scmp.ne.s32.totalorder %s297, %s298
      %p310 = scmp.eq.s32.totalorder %s78, 1
      %p311 = por %p309, %p310
      %p313 = scmp.ne.s32.totalorder %s298, %s312
      %p314 = scmp.eq.s32.totalorder %s78, 0
      %p315 = por %p313, %p314
      %s317 = sadd.s32 %s316, 1
      %p320 = scmp.eq.s32.totalorder %s72, 1
      %p321 = scmp.ne.s32.totalorder %s316, %s318
      %p322 = scmp.eq.s32.totalorder %s72, 0
      %p323 = por %p321, %p322
      %p324 = scmp.ne.s32.totalorder %s316, %s318
      %p325 = scmp.eq.s32.totalorder %s77, 1
      %p326 = por %p324, %p325
      %p327 = scmp.ne.s32.totalorder %s318, %s319
      %p328 = scmp.eq.s32.totalorder %s77, 0
      %p329 = por %p327, %p328
      %p330 = scmp.ne.s32.totalorder %s318, %s319
      %p331 = scmp.eq.s32.totalorder %s78, 1
      %p332 = por %p330, %p331
      %p334 = scmp.ne.s32.totalorder %s319, %s333
      %p335 = scmp.eq.s32.totalorder %s78, 0
      %p336 = por %p334, %p335
      %s338 = sadd.s32 %s337, 1
      %p341 = scmp.eq.s32.totalorder %s72, 1
      %p342 = scmp.ne.s32.totalorder %s337, %s339
      %p343 = scmp.eq.s32.totalorder %s72, 0
      %p344 = por %p342, %p343
      %p345 = scmp.ne.s32.totalorder %s337, %s339
      %p346 = scmp.eq.s32.totalorder %s77, 1
      %p347 = por %p345, %p346
      %p348 = scmp.ne.s32.totalorder %s339, %s340
      %p349 = scmp.eq.s32.totalorder %s77, 0
      %p350 = por %p348, %p349
      %p351 = scmp.ne.s32.totalorder %s339, %s340
      %p352 = scmp.eq.s32.totalorder %s78, 1
      %p353 = por %p351, %p352
      %p355 = scmp.ne.s32.totalorder %s340, %s354
      %p356 = scmp.eq.s32.totalorder %s78, 0
      %p357 = por %p355, %p356
      %s359 = sadd.s32 %s358, 1
      %p362 = scmp.eq.s32.totalorder %s72, 1
      %p363 = scmp.ne.s32.totalorder %s358, %s360
      %p364 = scmp.eq.s32.totalorder %s72, 0
      %p365 = por %p363, %p364
      %p366 = scmp.ne.s32.totalorder %s358, %s360
      %p367 = scmp.eq.s32.totalorder %s77, 1
      %p368 = por %p366, %p367
      %p369 = scmp.ne.s32.totalorder %s360, %s361
      %p370 = scmp.eq.s32.totalorder %s77, 0
      %p371 = por %p369, %p370
      %p372 = scmp.ne.s32.totalorder %s360, %s361
      %p373 = scmp.eq.s32.totalorder %s78, 1
      %p374 = por %p372, %p373
      %p376 = scmp.ne.s32.totalorder %s361, %s375
      %p377 = scmp.eq.s32.totalorder %s78, 0
      %p378 = por %p376, %p377
      %s380 = sadd.s32 %s379, 1
      %p383 = scmp.eq.s32.totalorder %s72, 1
      %p384 = scmp.ne.s32.totalorder %s379, %s381
      %p385 = scmp.eq.s32.totalorder %s72, 0
      %p386 = por %p384, %p385
      %p387 = scmp.ne.s32.totalorder %s379, %s381
      %p388 = scmp.eq.s32.totalorder %s77, 1
      %p389 = por %p387, %p388
      %p390 = scmp.ne.s32.totalorder %s381, %s382
      %p391 = scmp.eq.s32.totalorder %s77, 0
      %p392 = por %p390, %p391
      %p393 = scmp.ne.s32.totalorder %s381, %s382
      %p394 = scmp.eq.s32.totalorder %s78, 1
      %p395 = por %p393, %p394
      %p397 = scmp.ne.s32.totalorder %s382, %s396
      %p398 = scmp.eq.s32.totalorder %s78, 0
      %p399 = por %p397, %p398
      %s401 = sadd.s32 %s400, 1
      %p404 = scmp.eq.s32.totalorder %s72, 1
      %p405 = scmp.ne.s32.totalorder %s400, %s402
      %p406 = scmp.eq.s32.totalorder %s72, 0
      %p407 = por %p405, %p406
      %p408 = scmp.ne.s32.totalorder %s400, %s402
      %p409 = scmp.eq.s32.totalorder %s77, 1
      %p410 = por %p408, %p409
      %p411 = scmp.ne.s32.totalorder %s402, %s403
      %p412 = scmp.eq.s32.totalorder %s77, 0
      %p413 = por %p411, %p412
      %p414 = scmp.ne.s32.totalorder %s402, %s403
      %p415 = scmp.eq.s32.totalorder %s78, 1
      %p416 = por %p414, %p415
      %p418 = scmp.ne.s32.totalorder %s403, %s417
      %p419 = scmp.eq.s32.totalorder %s78, 0
      %p420 = por %p418, %p419
      %s422 = sadd.s32 %s421, 1
      %p425 = scmp.eq.s32.totalorder %s72, 1
      %p426 = scmp.ne.s32.totalorder %s421, %s423
      %p427 = scmp.eq.s32.totalorder %s72, 0
      %p428 = por %p426, %p427
      %p429 = scmp.ne.s32.totalorder %s421, %s423
      %p430 = scmp.eq.s32.totalorder %s77, 1
      %p431 = por %p429, %p430
      %p432 = scmp.ne.s32.totalorder %s423, %s424
      %p433 = scmp.eq.s32.totalorder %s77, 0
      %p434 = por %p432, %p433
      %p435 = scmp.ne.s32.totalorder %s423, %s424
      %p436 = scmp.eq.s32.totalorder %s78, 1
      %p437 = por %p435, %p436
      %p439 = scmp.ne.s32.totalorder %s424, %s438
      %p440 = scmp.eq.s32.totalorder %s78, 0
      %p441 = por %p439, %p440
      %s443 = sadd.s32 %s442, 1
      %p446 = scmp.eq.s32.totalorder %s72, 1
      %p447 = scmp.ne.s32.totalorder %s442, %s444
      %p448 = scmp.eq.s32.totalorder %s72, 0
      %p449 = por %p447, %p448
      %p450 = scmp.ne.s32.totalorder %s442, %s444
      %p451 = scmp.eq.s32.totalorder %s77, 1
      %p452 = por %p450, %p451
      %p453 = scmp.ne.s32.totalorder %s444, %s445
      %p454 = scmp.eq.s32.totalorder %s77, 0
      %p455 = por %p453, %p454
      %p456 = scmp.ne.s32.totalorder %s444, %s445
      %p457 = scmp.eq.s32.totalorder %s78, 1
      %p458 = por %p456, %p457
      %p460 = scmp.ne.s32.totalorder %s445, %s459
      %p461 = scmp.eq.s32.totalorder %s78, 0
      %p462 = por %p460, %p461
      %s464 = sadd.s32 %s463, 1
      %p467 = scmp.eq.s32.totalorder %s72, 1
      %p468 = scmp.ne.s32.totalorder %s463, %s465
      %p469 = scmp.eq.s32.totalorder %s72, 0
      %p470 = por %p468, %p469
      %p471 = scmp.ne.s32.totalorder %s463, %s465
      %p472 = scmp.eq.s32.totalorder %s77, 1
      %p473 = por %p471, %p472
      %p474 = scmp.ne.s32.totalorder %s465, %s466
      %p475 = scmp.eq.s32.totalorder %s77, 0
      %p476 = por %p474, %p475
      %p477 = scmp.ne.s32.totalorder %s465, %s466
      %p478 = scmp.eq.s32.totalorder %s78, 1
      %p479 = por %p477, %p478
      %p481 = scmp.ne.s32.totalorder %s466, %s480
      %p482 = scmp.eq.s32.totalorder %s78, 0
      %p483 = por %p481, %p482
      %s485 = sadd.s32 %s484, 1
      %p488 = scmp.eq.s32.totalorder %s72, 1
      %p489 = scmp.ne.s32.totalorder %s484, %s486
      %p490 = scmp.eq.s32.totalorder %s72, 0
      %p491 = por %p489, %p490
      %p492 = scmp.ne.s32.totalorder %s484, %s486
      %p493 = scmp.eq.s32.totalorder %s77, 1
      %p494 = por %p492, %p493
      %p495 = scmp.ne.s32.totalorder %s486, %s487
      %p496 = scmp.eq.s32.totalorder %s77, 0
      %p497 = por %p495, %p496
      %p498 = scmp.ne.s32.totalorder %s486, %s487
      %p499 = scmp.eq.s32.totalorder %s78, 1
      %p500 = por %p498, %p499
      %p502 = scmp.ne.s32.totalorder %s487, %s501
      %p503 = scmp.eq.s32.totalorder %s78, 0
      %p504 = por %p502, %p503
      %s506 = sadd.s32 %s505, 1
      %p509 = scmp.eq.s32.totalorder %s72, 1
      %p510 = scmp.ne.s32.totalorder %s505, %s507
      %p511 = scmp.eq.s32.totalorder %s72, 0
      %p512 = por %p510, %p511
      %p513 = scmp.ne.s32.totalorder %s505, %s507
      %p514 = scmp.eq.s32.totalorder %s77, 1
      %p515 = por %p513, %p514
      %p516 = scmp.ne.s32.totalorder %s507, %s508
      %p517 = scmp.eq.s32.totalorder %s77, 0
      %p518 = por %p516, %p517
      %p519 = scmp.ne.s32.totalorder %s507, %s508
      %p520 = scmp.eq.s32.totalorder %s78, 1
      %p521 = por %p519, %p520
      %p523 = scmp.ne.s32.totalorder %s508, %s522
      %p524 = scmp.eq.s32.totalorder %s78, 0
      %p525 = por %p523, %p524
      %s527 = sadd.s32 %s526, 1
      %p530 = scmp.eq.s32.totalorder %s72, 1
      %p531 = scmp.ne.s32.totalorder %s526, %s528
      %p532 = scmp.eq.s32.totalorder %s72, 0
      %p533 = por %p531, %p532
      %p534 = scmp.ne.s32.totalorder %s526, %s528
      %p535 = scmp.eq.s32.totalorder %s77, 1
      %p536 = por %p534, %p535
      %p537 = scmp.ne.s32.totalorder %s528, %s529
      %p538 = scmp.eq.s32.totalorder %s77, 0
      %p539 = por %p537, %p538
      %p540 = scmp.ne.s32.totalorder %s528, %s529
      %p541 = scmp.eq.s32.totalorder %s78, 1
      %p542 = por %p540, %p541
      %p544 = scmp.ne.s32.totalorder %s529, %s543
      %p545 = scmp.eq.s32.totalorder %s78, 0
      %p546 = por %p544, %p545
      %s548 = sadd.s32 %s547, 1
      %p551 = scmp.eq.s32.totalorder %s72, 1
      %p552 = scmp.ne.s32.totalorder %s547, %s549
      %p553 = scmp.eq.s32.totalorder %s72, 0
      %p554 = por %p552, %p553
      %p555 = scmp.ne.s32.totalorder %s547, %s549
      %p556 = scmp.eq.s32.totalorder %s77, 1
      %p557 = por %p555, %p556
      %p558 = scmp.ne.s32.totalorder %s549, %s550
      %p559 = scmp.eq.s32.totalorder %s77, 0
      %p560 = por %p558, %p559
      %p561 = scmp.ne.s32.totalorder %s549, %s550
      %p562 = scmp.eq.s32.totalorder %s78, 1
      %p563 = por %p561, %p562
      %p565 = scmp.ne.s32.totalorder %s550, %s564
      %p566 = scmp.eq.s32.totalorder %s78, 0
      %p567 = por %p565, %p566
      %s569 = sadd.s32 %s568, 1
      %p572 = scmp.eq.s32.totalorder %s72, 1
      %p573 = scmp.ne.s32.totalorder %s568, %s570
      %p574 = scmp.eq.s32.totalorder %s72, 0
      %p575 = por %p573, %p574
      %p576 = scmp.ne.s32.totalorder %s568, %s570
      %p577 = scmp.eq.s32.totalorder %s77, 1
      %p578 = por %p576, %p577
      %p579 = scmp.ne.s32.totalorder %s570, %s571
      %p580 = scmp.eq.s32.totalorder %s77, 0
      %p581 = por %p579, %p580
      %p582 = scmp.ne.s32.totalorder %s570, %s571
      %p583 = scmp.eq.s32.totalorder %s78, 1
      %p584 = por %p582, %p583
      %p586 = scmp.ne.s32.totalorder %s571, %s585
      %p587 = scmp.eq.s32.totalorder %s78, 0
      %p588 = por %p586, %p587
      %s590 = sadd.s32 %s589, 1
      %p593 = scmp.eq.s32.totalorder %s72, 1
      %p594 = scmp.ne.s32.totalorder %s589, %s591
      %p595 = scmp.eq.s32.totalorder %s72, 0
      %p596 = por %p594, %p595
      %p597 = scmp.ne.s32.totalorder %s589, %s591
      %p598 = scmp.eq.s32.totalorder %s77, 1
      %p599 = por %p597, %p598
      %p600 = scmp.ne.s32.totalorder %s591, %s592
      %p601 = scmp.eq.s32.totalorder %s77, 0
      %p602 = por %p600, %p601
      %p603 = scmp.ne.s32.totalorder %s591, %s592
      %p604 = scmp.eq.s32.totalorder %s78, 1
      %p605 = por %p603, %p604
      %p607 = scmp.ne.s32.totalorder %s592, %s606
      %p608 = scmp.eq.s32.totalorder %s78, 0
      %p609 = por %p607, %p608
      %s611 = sadd.s32 %s610, 1
      %p614 = scmp.eq.s32.totalorder %s72, 1
      %p615 = scmp.ne.s32.totalorder %s610, %s612
      %p616 = scmp.eq.s32.totalorder %s72, 0
      %p617 = por %p615, %p616
      %p618 = scmp.ne.s32.totalorder %s610, %s612
      %p619 = scmp.eq.s32.totalorder %s77, 1
      %p620 = por %p618, %p619
      %p621 = scmp.ne.s32.totalorder %s612, %s613
      %p622 = scmp.eq.s32.totalorder %s77, 0
      %p623 = por %p621, %p622
      %p624 = scmp.ne.s32.totalorder %s612, %s613
      %p625 = scmp.eq.s32.totalorder %s78, 1
      %p626 = por %p624, %p625
      %p628 = scmp.ne.s32.totalorder %s613, %s627
      %p629 = scmp.eq.s32.totalorder %s78, 0
      %p630 = por %p628, %p629
      %s632 = sadd.s32 %s631, 1
      %p635 = scmp.eq.s32.totalorder %s72, 1
      %p636 = scmp.ne.s32.totalorder %s631, %s633
      %p637 = scmp.eq.s32.totalorder %s72, 0
      %p638 = por %p636, %p637
      %p639 = scmp.ne.s32.totalorder %s631, %s633
      %p640 = scmp.eq.s32.totalorder %s77, 1
      %p641 = por %p639, %p640
      %p642 = scmp.ne.s32.totalorder %s633, %s634
      %p643 = scmp.eq.s32.totalorder %s77, 0
      %p644 = por %p642, %p643
      %p645 = scmp.ne.s32.totalorder %s633, %s634
      %p646 = scmp.eq.s32.totalorder %s78, 1
      %p647 = por %p645, %p646
      %p649 = scmp.ne.s32.totalorder %s634, %s648
      %p650 = scmp.eq.s32.totalorder %s78, 0
      %p651 = por %p649, %p650
      %s653 = sadd.s32 %s652, 1
      %p656 = scmp.eq.s32.totalorder %s72, 1
      %p657 = scmp.ne.s32.totalorder %s652, %s654
      %p658 = scmp.eq.s32.totalorder %s72, 0
      %p659 = por %p657, %p658
      %p660 = scmp.ne.s32.totalorder %s652, %s654
      %p661 = scmp.eq.s32.totalorder %s77, 1
      %p662 = por %p660, %p661
      %p663 = scmp.ne.s32.totalorder %s654, %s655
      %p664 = scmp.eq.s32.totalorder %s77, 0
      %p665 = por %p663, %p664
      %p666 = scmp.ne.s32.totalorder %s654, %s655
      %p667 = scmp.eq.s32.totalorder %s78, 1
      %p668 = por %p666, %p667
      %p670 = scmp.ne.s32.totalorder %s655, %s669
      %p671 = scmp.eq.s32.totalorder %s78, 0
      %p672 = por %p670, %p671
      %s674 = sadd.s32 %s673, 1
      %p677 = scmp.eq.s32.totalorder %s72, 1
      %p678 = scmp.ne.s32.totalorder %s673, %s675
      %p679 = scmp.eq.s32.totalorder %s72, 0
      %p680 = por %p678, %p679
      %p681 = scmp.ne.s32.totalorder %s673, %s675
      %p682 = scmp.eq.s32.totalorder %s77, 1
      %p683 = por %p681, %p682
      %p684 = scmp.ne.s32.totalorder %s675, %s676
      %p685 = scmp.eq.s32.totalorder %s77, 0
      %p686 = por %p684, %p685
      %p687 = scmp.ne.s32.totalorder %s675, %s676
      %p688 = scmp.eq.s32.totalorder %s78, 1
      %p689 = por %p687, %p688
      %p691 = scmp.ne.s32.totalorder %s676, %s690
      %p692 = scmp.eq.s32.totalorder %s78, 0
      %p693 = por %p691, %p692
      %s695 = sadd.s32 %s694, 1
      %p698 = scmp.eq.s32.totalorder %s72, 1
      %p699 = scmp.ne.s32.totalorder %s694, %s696
      %p700 = scmp.eq.s32.totalorder %s72, 0
      %p701 = por %p699, %p700
      %p702 = scmp.ne.s32.totalorder %s694, %s696
      %p703 = scmp.eq.s32.totalorder %s77, 1
      %p704 = por %p702, %p703
      %p705 = scmp.ne.s32.totalorder %s696, %s697
      %p706 = scmp.eq.s32.totalorder %s77, 0
      %p707 = por %p705, %p706
      %p708 = scmp.ne.s32.totalorder %s696, %s697
      %p709 = scmp.eq.s32.totalorder %s78, 1
      %p710 = por %p708, %p709
      %p712 = scmp.ne.s32.totalorder %s697, %s711
      %p713 = scmp.eq.s32.totalorder %s78, 0
      %p714 = por %p712, %p713
      %s716 = sadd.s32 %s715, 1
      %p719 = scmp.eq.s32.totalorder %s72, 1
      %p720 = scmp.ne.s32.totalorder %s715, %s717
      %p721 = scmp.eq.s32.totalorder %s72, 0
      %p722 = por %p720, %p721
      %p723 = scmp.ne.s32.totalorder %s715, %s717
      %p724 = scmp.eq.s32.totalorder %s77, 1
      %p725 = por %p723, %p724
      %p726 = scmp.ne.s32.totalorder %s717, %s718
      %p727 = scmp.eq.s32.totalorder %s77, 0
      %p728 = por %p726, %p727
      %p729 = scmp.ne.s32.totalorder %s717, %s718
      %p730 = scmp.eq.s32.totalorder %s78, 1
      %p731 = por %p729, %p730
      %p733 = scmp.ne.s32.totalorder %s718, %s732
      %p734 = scmp.eq.s32.totalorder %s78, 0
      %p735 = por %p733, %p734
      %s736 = ssub.s32 %s72, %s79
      %p737 = scmp.eq.s32.totalorder %s736, 0
      %s739 = sadd.s32 %s738, 1
      %s740 = scalar_select %p737, %s738, %s739
      %p743 = pneg %p737
      %p744 = scmp.eq.s32.totalorder %s72, 1
      %p745 = por %p743, %p744
      %p746 = scmp.ne.s32.totalorder %s738, %s741
      %p747 = scmp.eq.s32.totalorder %s72, 0
      %p748 = por %p746, %p747
      %p749 = scmp.ne.s32.totalorder %s738, %s741
      %p750 = scmp.eq.s32.totalorder %s77, 1
      %p751 = por %p749, %p750
      %p752 = scmp.ne.s32.totalorder %s741, %s742
      %p753 = scmp.eq.s32.totalorder %s77, 0
      %p754 = por %p752, %p753
      %p755 = scmp.ne.s32.totalorder %s741, %s742
      %p756 = scmp.eq.s32.totalorder %s78, 1
      %p757 = por %p755, %p756
      %p759 = scmp.ne.s32.totalorder %s742, %s758
      %p760 = scmp.eq.s32.totalorder %s78, 0
      %p761 = por %p759, %p760
      %p762 = scmp.le.s32.totalorder 1, %s72
      %p763 = scmp.lt.s32.totalorder %s72, 3
      %p764 = pnand %p762, %p763
      %p765 = pneg %p764
      // Predicated region
      $region9: #{mixer_forward.1} parent=5 // pred_check
        _
      $region10: #{mixer_forward.1} parent=5 // pred_check_branch
        %767 = sbr.rel (%p764) target = $region12
      $region11: #{mixer_forward.1} parent=5 // pred_region
        %s768 = ssub.s32 %s72, 1
        // Predicated region
        $region13: #{mixer_forward.1} parent=11 // pred_check
          %p769 = pneg %p119
        $region14: #{mixer_forward.1} parent=11 // pred_check_branch
          %771 = sbr.rel (%p769) target = $region16
        $region15: #{mixer_forward.1} parent=11 // pred_region
          _
        $region16: #{mixer_forward.1} parent=11 // pred_fallthru
          _
        // Predicated region
        $region17: #{mixer_forward.1} parent=11 // pred_check
          %p772 = pneg %p140
        $region18: #{mixer_forward.1} parent=11 // pred_check_branch
          %774 = sbr.rel (%p772) target = $region20
        $region19: #{mixer_forward.1} parent=11 // pred_region
          _
        $region20: #{mixer_forward.1} parent=11 // pred_fallthru
          _
        // Predicated region
        $region21: #{mixer_forward.1} parent=11 // pred_check
          %p775 = pneg %p161
        $region22: #{mixer_forward.1} parent=11 // pred_check_branch
          %777 = sbr.rel (%p775) target = $region24
        $region23: #{mixer_forward.1} parent=11 // pred_region
          _
        $region24: #{mixer_forward.1} parent=11 // pred_fallthru
          _
        // Predicated region
        $region25: #{mixer_forward.1} parent=11 // pred_check
          %p778 = pneg %p182
        $region26: #{mixer_forward.1} parent=11 // pred_check_branch
          %780 = sbr.rel (%p778) target = $region28
        $region27: #{mixer_forward.1} parent=11 // pred_region
          _
        $region28: #{mixer_forward.1} parent=11 // pred_fallthru
          _
        // Predicated region
        $region29: #{mixer_forward.1} parent=11 // pred_check
          %p781 = pneg %p203
        $region30: #{mixer_forward.1} parent=11 // pred_check_branch
          %783 = sbr.rel (%p781) target = $region32
        $region31: #{mixer_forward.1} parent=11 // pred_region
          _
        $region32: #{mixer_forward.1} parent=11 // pred_fallthru
          _
        // Predicated region
        $region33: #{mixer_forward.1} parent=11 // pred_check
          %p784 = pneg %p224
        $region34: #{mixer_forward.1} parent=11 // pred_check_branch
          %786 = sbr.rel (%p784) target = $region36
        $region35: #{mixer_forward.1} parent=11 // pred_region
          _
        $region36: #{mixer_forward.1} parent=11 // pred_fallthru
          _
        // Predicated region
        $region37: #{mixer_forward.1} parent=11 // pred_check
          %p787 = pneg %p245
        $region38: #{mixer_forward.1} parent=11 // pred_check_branch
          %789 = sbr.rel (%p787) target = $region40
        $region39: #{mixer_forward.1} parent=11 // pred_region
          _
        $region40: #{mixer_forward.1} parent=11 // pred_fallthru
          _
        // Predicated region
        $region41: #{mixer_forward.1} parent=11 // pred_check
          %p790 = pneg %p266
        $region42: #{mixer_forward.1} parent=11 // pred_check_branch
          %792 = sbr.rel (%p790) target = $region44
        $region43: #{mixer_forward.1} parent=11 // pred_region
          _
        $region44: #{mixer_forward.1} parent=11 // pred_fallthru
          _
        // Predicated region
        $region45: #{mixer_forward.1} parent=11 // pred_check
          %p793 = pneg %p287
        $region46: #{mixer_forward.1} parent=11 // pred_check_branch
          %795 = sbr.rel (%p793) target = $region48
        $region47: #{mixer_forward.1} parent=11 // pred_region
          _
        $region48: #{mixer_forward.1} parent=11 // pred_fallthru
          _
        // Predicated region
        $region49: #{mixer_forward.1} parent=11 // pred_check
          %p796 = pneg %p308
        $region50: #{mixer_forward.1} parent=11 // pred_check_branch
          %798 = sbr.rel (%p796) target = $region52
        $region51: #{mixer_forward.1} parent=11 // pred_region
          _
        $region52: #{mixer_forward.1} parent=11 // pred_fallthru
          _
        // Predicated region
        $region53: #{mixer_forward.1} parent=11 // pred_check
          %p799 = pneg %p329
        $region54: #{mixer_forward.1} parent=11 // pred_check_branch
          %801 = sbr.rel (%p799) target = $region56
        $region55: #{mixer_forward.1} parent=11 // pred_region
          _
        $region56: #{mixer_forward.1} parent=11 // pred_fallthru
          _
        // Predicated region
        $region57: #{mixer_forward.1} parent=11 // pred_check
          %p802 = pneg %p350
        $region58: #{mixer_forward.1} parent=11 // pred_check_branch
          %804 = sbr.rel (%p802) target = $region60
        $region59: #{mixer_forward.1} parent=11 // pred_region
          _
        $region60: #{mixer_forward.1} parent=11 // pred_fallthru
          _
        // Predicated region
        $region61: #{mixer_forward.1} parent=11 // pred_check
          %p805 = pneg %p371
        $region62: #{mixer_forward.1} parent=11 // pred_check_branch
          %807 = sbr.rel (%p805) target = $region64
        $region63: #{mixer_forward.1} parent=11 // pred_region
          _
        $region64: #{mixer_forward.1} parent=11 // pred_fallthru
          _
        // Predicated region
        $region65: #{mixer_forward.1} parent=11 // pred_check
          %p808 = pneg %p392
        $region66: #{mixer_forward.1} parent=11 // pred_check_branch
          %810 = sbr.rel (%p808) target = $region68
        $region67: #{mixer_forward.1} parent=11 // pred_region
          _
        $region68: #{mixer_forward.1} parent=11 // pred_fallthru
          _
        // Predicated region
        $region69: #{mixer_forward.1} parent=11 // pred_check
          %p811 = pneg %p413
        $region70: #{mixer_forward.1} parent=11 // pred_check_branch
          %813 = sbr.rel (%p811) target = $region72
        $region71: #{mixer_forward.1} parent=11 // pred_region
          _
        $region72: #{mixer_forward.1} parent=11 // pred_fallthru
          _
        // Predicated region
        $region73: #{mixer_forward.1} parent=11 // pred_check
          %p814 = pneg %p434
        $region74: #{mixer_forward.1} parent=11 // pred_check_branch
          %816 = sbr.rel (%p814) target = $region76
        $region75: #{mixer_forward.1} parent=11 // pred_region
          _
        $region76: #{mixer_forward.1} parent=11 // pred_fallthru
          _
        // Predicated region
        $region77: #{mixer_forward.1} parent=11 // pred_check
          %p817 = pneg %p455
        $region78: #{mixer_forward.1} parent=11 // pred_check_branch
          %819 = sbr.rel (%p817) target = $region80
        $region79: #{mixer_forward.1} parent=11 // pred_region
          _
        $region80: #{mixer_forward.1} parent=11 // pred_fallthru
          _
        // Predicated region
        $region81: #{mixer_forward.1} parent=11 // pred_check
          %p820 = pneg %p476
        $region82: #{mixer_forward.1} parent=11 // pred_check_branch
          %822 = sbr.rel (%p820) target = $region84
        $region83: #{mixer_forward.1} parent=11 // pred_region
          _
        $region84: #{mixer_forward.1} parent=11 // pred_fallthru
          _
        // Predicated region
        $region85: #{mixer_forward.1} parent=11 // pred_check
          %p823 = pneg %p497
        $region86: #{mixer_forward.1} parent=11 // pred_check_branch
          %825 = sbr.rel (%p823) target = $region88
        $region87: #{mixer_forward.1} parent=11 // pred_region
          _
        $region88: #{mixer_forward.1} parent=11 // pred_fallthru
          _
        // Predicated region
        $region89: #{mixer_forward.1} parent=11 // pred_check
          %p826 = pneg %p518
        $region90: #{mixer_forward.1} parent=11 // pred_check_branch
          %828 = sbr.rel (%p826) target = $region92
        $region91: #{mixer_forward.1} parent=11 // pred_region
          _
        $region92: #{mixer_forward.1} parent=11 // pred_fallthru
          _
        // Predicated region
        $region93: #{mixer_forward.1} parent=11 // pred_check
          %p829 = pneg %p539
        $region94: #{mixer_forward.1} parent=11 // pred_check_branch
          %831 = sbr.rel (%p829) target = $region96
        $region95: #{mixer_forward.1} parent=11 // pred_region
          _
        $region96: #{mixer_forward.1} parent=11 // pred_fallthru
          _
        // Predicated region
        $region97: #{mixer_forward.1} parent=11 // pred_check
          %p832 = pneg %p560
        $region98: #{mixer_forward.1} parent=11 // pred_check_branch
          %834 = sbr.rel (%p832) target = $region100
        $region99: #{mixer_forward.1} parent=11 // pred_region
          _
        $region100: #{mixer_forward.1} parent=11 // pred_fallthru
          _
        // Predicated region
        $region101: #{mixer_forward.1} parent=11 // pred_check
          %p835 = pneg %p581
        $region102: #{mixer_forward.1} parent=11 // pred_check_branch
          %837 = sbr.rel (%p835) target = $region104
        $region103: #{mixer_forward.1} parent=11 // pred_region
          _
        $region104: #{mixer_forward.1} parent=11 // pred_fallthru
          _
        // Predicated region
        $region105: #{mixer_forward.1} parent=11 // pred_check
          %p838 = pneg %p602
        $region106: #{mixer_forward.1} parent=11 // pred_check_branch
          %840 = sbr.rel (%p838) target = $region108
        $region107: #{mixer_forward.1} parent=11 // pred_region
          _
        $region108: #{mixer_forward.1} parent=11 // pred_fallthru
          _
        // Predicated region
        $region109: #{mixer_forward.1} parent=11 // pred_check
          %p841 = pneg %p623
        $region110: #{mixer_forward.1} parent=11 // pred_check_branch
          %843 = sbr.rel (%p841) target = $region112
        $region111: #{mixer_forward.1} parent=11 // pred_region
          _
        $region112: #{mixer_forward.1} parent=11 // pred_fallthru
          _
        // Predicated region
        $region113: #{mixer_forward.1} parent=11 // pred_check
          %p844 = pneg %p644
        $region114: #{mixer_forward.1} parent=11 // pred_check_branch
          %846 = sbr.rel (%p844) target = $region116
        $region115: #{mixer_forward.1} parent=11 // pred_region
          _
        $region116: #{mixer_forward.1} parent=11 // pred_fallthru
          _
        // Predicated region
        $region117: #{mixer_forward.1} parent=11 // pred_check
          %p847 = pneg %p665
        $region118: #{mixer_forward.1} parent=11 // pred_check_branch
          %849 = sbr.rel (%p847) target = $region120
        $region119: #{mixer_forward.1} parent=11 // pred_region
          _
        $region120: #{mixer_forward.1} parent=11 // pred_fallthru
          _
        // Predicated region
        $region121: #{mixer_forward.1} parent=11 // pred_check
          %p850 = pneg %p686
        $region122: #{mixer_forward.1} parent=11 // pred_check_branch
          %852 = sbr.rel (%p850) target = $region124
        $region123: #{mixer_forward.1} parent=11 // pred_region
          _
        $region124: #{mixer_forward.1} parent=11 // pred_fallthru
          _
        // Predicated region
        $region125: #{mixer_forward.1} parent=11 // pred_check
          %p853 = pneg %p707
        $region126: #{mixer_forward.1} parent=11 // pred_check_branch
          %855 = sbr.rel (%p853) target = $region128
        $region127: #{mixer_forward.1} parent=11 // pred_region
          _
        $region128: #{mixer_forward.1} parent=11 // pred_fallthru
          _
        // Predicated region
        $region129: #{mixer_forward.1} parent=11 // pred_check
          %p856 = pneg %p728
        $region130: #{mixer_forward.1} parent=11 // pred_check_branch
          %858 = sbr.rel (%p856) target = $region132
        $region131: #{mixer_forward.1} parent=11 // pred_region
          _
        $region132: #{mixer_forward.1} parent=11 // pred_fallthru
          _
      $region12: #{mixer_forward.1} parent=5 // pred_fallthru
        _
      %p859 = scmp.lt.s32.totalorder %s72, 2
      // Predicated region
      $region133: #{mixer_forward.1} parent=5 // pred_check
        %p860 = pneg %p859
      $region134: #{mixer_forward.1} parent=5 // pred_check_branch
        %862 = sbr.rel (%p860) target = $region136
      $region135: #{mixer_forward.1} parent=5 // pred_region
        // Predicated region
        $region137: #{mixer_forward.1} parent=135 // pred_check
          %p863 = pneg %p92
        $region138: #{mixer_forward.1} parent=135 // pred_check_branch
          %865 = sbr.rel (%p863) target = $region140
        $region139: #{mixer_forward.1} parent=135 // pred_region
          %p866 = scmp.lt.s32.totalorder %s72, 1
          %s867 = scalar_select %p866, %s72, 1
          %s868 = smul.addr %s867, 2
          %s869 = smul.addr %s868, 8
          %s870 = scalar_lea.vmem %s1, %s869
        $region140: #{mixer_forward.1} parent=135 // pred_fallthru
          _
      $region136: #{mixer_forward.1} parent=5 // pred_fallthru
        _
      %p871 = scmp.le.s32.totalorder 1, %s72
      %p872 = scmp.lt.s32.totalorder %s72, 3
      %p873 = pnand %p871, %p872
      %p874 = pneg %p873
      // Predicated region
      $region141: #{mixer_forward.1} parent=5 // pred_check
        _
      $region142: #{mixer_forward.1} parent=5 // pred_check_branch
        %876 = sbr.rel (%p873) target = $region144
      $region143: #{mixer_forward.1} parent=5 // pred_region
        %s877 = ssub.s32 %s72, 1
        %p878 = scmp.lt.s32.totalorder %s77, 1
        %s879 = scalar_select %p878, %s77, 1
        %s880 = smul.addr %s879, 2
        %s881 = smul.addr %s880, 8
        %s882 = scalar_lea.vmem %s1, %s881
        %p883 = pneg %p98
        %p884 = pneg %p95
        %p885 = pneg %p119
        %p886 = pneg %p116
        %p887 = pneg %p140
        %p888 = pneg %p137
        %p889 = pneg %p161
        %p890 = pneg %p158
        %p891 = pneg %p182
        %p892 = pneg %p179
        %p893 = pneg %p203
        %p894 = pneg %p200
        %p895 = pneg %p224
        %p896 = pneg %p221
        %p897 = pneg %p245
        %p898 = pneg %p242
        %p899 = pneg %p266
        %p900 = pneg %p263
        %p901 = pneg %p287
        %p902 = pneg %p284
        %p903 = pneg %p308
        %p904 = pneg %p305
        %p905 = pneg %p329
        %p906 = pneg %p326
        %p907 = pneg %p350
        %p908 = pneg %p347
        %p909 = pneg %p371
        %p910 = pneg %p368
        %p911 = pneg %p392
        %p912 = pneg %p389
        %p913 = pneg %p413
        %p914 = pneg %p410
        %p915 = pneg %p434
        %p916 = pneg %p431
        %p917 = pneg %p455
        %p918 = pneg %p452
        %p919 = pneg %p476
        %p920 = pneg %p473
        %p921 = pneg %p497
        %p922 = pneg %p494
        %p923 = pneg %p518
        %p924 = pneg %p515
        %p925 = pneg %p539
        %p926 = pneg %p536
        %p927 = pneg %p560
        %p928 = pneg %p557
        %p929 = pneg %p581
        %p930 = pneg %p578
        %p931 = pneg %p602
        %p932 = pneg %p599
        %p933 = pneg %p623
        %p934 = pneg %p620
        %p935 = pneg %p644
        %p936 = pneg %p641
        %p937 = pneg %p665
        %p938 = pneg %p662
        %p939 = pneg %p686
        %p940 = pneg %p683
        %p941 = pneg %p707
        %p942 = pneg %p704
        %p943 = pneg %p728
        %p944 = pneg %p725
        %p945 = pneg %p754
        %p946 = pneg %p751
        %s947 = sand.u32 %s741, 1
        %s948 = scalar_lea.sflag [#allocation3], %s947
        %s949 = sand.u32 %s741, 1
        %s950 = scalar_lea.vmem [#allocation2], %s949
        %p951 = scmp.lt.s32.totalorder %s77, 1
        %s952 = scalar_select %p951, %s77, 1
        %s953 = smul.addr %s952, 2
        %s954 = smul.addr %s953, 8
        %s955 = scalar_lea.vmem %s1, %s954
        %v956 = vld [vmem:[%s955] sm:$0xff]
        %v957 = vld [vmem:[%s955 + $0x8] sm:$0xff]
        %v958 = vld [vmem:[%s3] sm:$0xff]
        %v959 = vld [vmem:[%s3 + $0x8] sm:$0xff]
        %v960 = vld [vmem:[%s3 + $0x10] sm:$0xff]
        %v961 = vld [vmem:[%s3 + $0x18] sm:$0xff]
        %v962 = vld [vmem:[%s3 + $0x20] sm:$0xff]
        %v963 = vld [vmem:[%s3 + $0x28] sm:$0xff]
        %v964 = vld [vmem:[%s3 + $0x30] sm:$0xff]
        %v965 = vld [vmem:[%s3 + $0x38] sm:$0xff]
        %v966 = vld [vmem:[%s5] sm:$0x1]
        %v968 = vperm.slane %v966, 0
        %vm970 = vcmask 523264
        %v972 = vsel %vm970, %v956, 0
        %v975 = vsel %vm970, %v957, 0
        %977 = vmatpush.msra.mxu0 0.0
        %978 = vmatpush.msra.mxu0 0.0
        %979 = vmatpush.msra.mxu0 0.0
        %980 = vmatpush.msra.mxu0 0.0
        %981 = vmatpush.msra.mxu0 0.0
        %982 = vmatpush.msra.mxu0 0.0
        %983 = vmatpush.msra.mxu0 0.0
        %984 = vmatpush.msra.mxu0 0.0
        %985 = vmatpush.msra.mxu0 %v965
        %986 = vmatpush.msra.mxu0 %v964
        %987 = vmatpush.msra.mxu0 %v963
        %988 = vmatpush.msra.mxu0 %v962
        %989 = vmatpush.msra.mxu0 %v961
        %990 = vmatpush.msra.mxu0 %v960
        %991 = vmatpush.msra.mxu0 %v959
        %992 = vmatpush.msra.mxu0 %v958
        %993 = vmatmul.f32.gmra.mxu0 %v972
        %v994 = vpop.f32.mrf.mxu0
        %v995 = vadd.f32 %v968, %v994
        %996 = vmatmul.f32.gmra.mxu0 %v975
        %v997 = vpop.f32.mrf.mxu0
        %v998 = vadd.f32 %v968, %v997
        %999 = vdwg.mxu0
        %v1000 = vld [vmem:[%s7] sm:$0x1]
        %v1001 = vld [vmem:[%s9] sm:$0x1]
        %1002 = vadd.xlane.f32.xlu0 %v995
        %v1003 = vpop.xlane.xlu0 %1002
        %1004 = vadd.xlane.f32.xlu0 %v998
        %v1005 = vpop.xlane.xlu0 %1004
        %v1006 = vrcp.pop 128.0
        %v1007 = vmul.f32 128.0, %v1006
        %v1008 = vsub.f32 1.0, %v1007
        %v1009 = vmul.f32 %v1006, %v1008
        %v1010 = vadd.f32 %v1006, %v1009
        %vm1011 = vweird.f32 %v1006
        %v1012 = vsel %vm1011, %v1006, %v1010
        %v1013 = vmul.f32 %v1003, %v1012
        %v1014 = vmul.f32 %v1005, %v1012
        %v1015 = vsub.f32 %v995, %v1013
        %v1016 = vsub.f32 %v998, %v1014
        %v1017 = vmul.f32 %v1015, %v1015
        %v1018 = vmul.f32 %v1016, %v1016
        %1019 = vadd.xlane.f32.xlu0 %v1017
        %v1020 = vpop.xlane.xlu0 %1019
        %1021 = vadd.xlane.f32.xlu0 %v1018
        %v1022 = vpop.xlane.xlu0 %1021
        %v1023 = vmul.f32 %v1020, %v1012
        %v1024 = vmul.f32 %v1022, %v1012
        %v1025 = vadd.f32 %v1023, 1e-05
        %v1026 = vadd.f32 %v1024, 1e-05
        %v1027 = vrsqrt.pop %v1025
        %v1028 = vmul.f32 %v1027, %v1025
        %v1029 = vmul.f32 %v1028, %v1027
        %v1030 = vmul.f32 0.5, %v1029
        %v1031 = vsub.f32 1.5, %v1030
        %v1032 = vmul.f32 %v1027, %v1031
        %vm1033 = vweird.f32 %v1025
        %vm1034 = vweird.f32 %v1027
        %vm1035 = vmor %vm1033, %vm1034
        %v1036 = vsel %vm1035, %v1027, %v1032
        %v1037 = vrsqrt.pop %v1026
        %v1038 = vmul.f32 %v1037, %v1026
        %v1039 = vmul.f32 %v1038, %v1037
        %v1040 = vmul.f32 0.5, %v1039
        %v1041 = vsub.f32 1.5, %v1040
        %v1042 = vmul.f32 %v1037, %v1041
        %vm1043 = vweird.f32 %v1026
        %vm1044 = vweird.f32 %v1037
        %vm1045 = vmor %vm1043, %vm1044
        %v1046 = vsel %vm1045, %v1037, %v1042
        %v1047 = vmul.f32 %v1015, %v1036
        %v1048 = vmul.f32 %v1016, %v1046
        %v1050 = vperm.slane %v1000, 0
        %v1052 = vmul.f32 %v1047, %v1050
        %v1053 = vmul.f32 %v1048, %v1050
        %v1055 = vperm.slane %v1001, 0
        %v1057 = vadd.f32 %v1052, %v1055
        %v1058 = vadd.f32 %v1053, %v1055
        %1059 = vxpose.xlu0.b32.start [1/16] %v1057, 128
        %1060 = vxpose.xlu0.b32.cont [2/16] %v1058, 128
        %1061 = vxpose.xlu0.b32.cont [3/16] 0.0, 128
        %1062 = vxpose.xlu0.b32.cont [4/16] 0.0, 128
        %1063 = vxpose.xlu0.b32.cont [5/16] 0.0, 128
        %1064 = vxpose.xlu0.b32.cont [6/16] 0.0, 128
        %1065 = vxpose.xlu0.b32.cont [7/16] 0.0, 128
        %1066 = vxpose.xlu0.b32.cont [8/16] 0.0, 128
        %1067 = vxpose.xlu0.b32.cont [9/16] 0.0, 128
        %1068 = vxpose.xlu0.b32.cont [10/16] 0.0, 128
        %1069 = vxpose.xlu0.b32.cont [11/16] 0.0, 128
        %1070 = vxpose.xlu0.b32.cont [12/16] 0.0, 128
        %1071 = vxpose.xlu0.b32.cont [13/16] 0.0, 128
        %1072 = vxpose.xlu0.b32.cont [14/16] 0.0, 128
        %1073 = vxpose.xlu0.b32.cont [15/16] 0.0, 128
        %1074 = vxpose.xlu0.b32.end [16/16] 0.0, 128
        %v1075 = vpop.trf.xlu0
        %v1076 = vpop.trf.xlu0
        %v1077 = vpop.trf.xlu0
        %v1078 = vpop.trf.xlu0
        %v1079 = vpop.trf.xlu0
        %v1080 = vpop.trf.xlu0
        %v1081 = vpop.trf.xlu0
        %v1082 = vpop.trf.xlu0
        %v1083 = vpop.trf.xlu0
        %v1084 = vpop.trf.xlu0
        %v1085 = vpop.trf.xlu0
        %v1086 = vpop.trf.xlu0
        %v1087 = vpop.trf.xlu0
        %v1088 = vpop.trf.xlu0
        %v1089 = vpop.trf.xlu0
        %v1090 = vpop.trf.xlu0
        %v1091 = vld [vmem:[%s11] sm:$0xff]
        %v1092 = vld [vmem:[%s11 + $0x8] sm:$0xff]
        %v1093 = vld [vmem:[%s13] sm:$0x1]
        %v1095 = vperm.slane %v1093, 0
        %vm1097 = vcmask 130048
        %v1099 = vsel %vm1097, %v1075, 0
        %v1102 = vsel %vm1097, %v1076, 0
        %v1105 = vsel %vm1097, %v1077, 0
        %v1108 = vsel %vm1097, %v1078, 0
        %v1111 = vsel %vm1097, %v1079, 0
        %v1114 = vsel %vm1097, %v1080, 0
        %v1117 = vsel %vm1097, %v1081, 0
        %v1120 = vsel %vm1097, %v1082, 0
        %v1123 = vsel %vm1097, %v1083, 0
        %v1126 = vsel %vm1097, %v1084, 0
        %v1129 = vsel %vm1097, %v1085, 0
        %v1132 = vsel %vm1097, %v1086, 0
        %v1135 = vsel %vm1097, %v1087, 0
        %v1138 = vsel %vm1097, %v1088, 0
        %v1141 = vsel %vm1097, %v1089, 0
        %v1144 = vsel %vm1097, %v1090, 0
        %1146 = vmatpush.msra.mxu0 0.0
        %1147 = vmatpush.msra.mxu0 0.0
        %1148 = vmatpush.msra.mxu0 0.0
        %1149 = vmatpush.msra.mxu0 0.0
        %1150 = vmatpush.msra.mxu0 0.0
        %1151 = vmatpush.msra.mxu0 0.0
        %1152 = vmatpush.msra.mxu0 0.0
        %1153 = vmatpush.msra.mxu0 0.0
        %1154 = vmatpush.msra.mxu0 0.0
        %1155 = vmatpush.msra.mxu0 0.0
        %1156 = vmatpush.msra.mxu0 0.0
        %1157 = vmatpush.msra.mxu0 0.0
        %1158 = vmatpush.msra.mxu0 0.0
        %1159 = vmatpush.msra.mxu0 0.0
        %1160 = vmatpush.msra.mxu0 %v1092
        %1161 = vmatpush.msra.mxu0 %v1091
        %1162 = vmatmul.f32.gmra.mxu0 %v1099
        %v1163 = vpop.f32.mrf.mxu0
        %v1164 = vadd.f32 %v1095, %v1163
        %1165 = vmatmul.f32.gmra.mxu0 %v1102
        %v1166 = vpop.f32.mrf.mxu0
        %v1167 = vadd.f32 %v1095, %v1166
        %1168 = vmatmul.f32.gmra.mxu0 %v1105
        %v1169 = vpop.f32.mrf.mxu0
        %v1170 = vadd.f32 %v1095, %v1169
        %1171 = vmatmul.f32.gmra.mxu0 %v1108
        %v1172 = vpop.f32.mrf.mxu0
        %v1173 = vadd.f32 %v1095, %v1172
        %1174 = vmatmul.f32.gmra.mxu0 %v1111
        %v1175 = vpop.f32.mrf.mxu0
        %v1176 = vadd.f32 %v1095, %v1175
        %1177 = vmatmul.f32.gmra.mxu0 %v1114
        %v1178 = vpop.f32.mrf.mxu0
        %v1179 = vadd.f32 %v1095, %v1178
        %1180 = vmatmul.f32.gmra.mxu0 %v1117
        %v1181 = vpop.f32.mrf.mxu0
        %v1182 = vadd.f32 %v1095, %v1181
        %1183 = vmatmul.f32.gmra.mxu0 %v1120
        %v1184 = vpop.f32.mrf.mxu0
        %v1185 = vadd.f32 %v1095, %v1184
        %1186 = vmatmul.f32.gmra.mxu0 %v1123
        %v1187 = vpop.f32.mrf.mxu0
        %v1188 = vadd.f32 %v1095, %v1187
        %1189 = vmatmul.f32.gmra.mxu0 %v1126
        %v1190 = vpop.f32.mrf.mxu0
        %v1191 = vadd.f32 %v1095, %v1190
        %1192 = vmatmul.f32.gmra.mxu0 %v1129
        %v1193 = vpop.f32.mrf.mxu0
        %v1194 = vadd.f32 %v1095, %v1193
        %1195 = vmatmul.f32.gmra.mxu0 %v1132
        %v1196 = vpop.f32.mrf.mxu0
        %v1197 = vadd.f32 %v1095, %v1196
        %1198 = vmatmul.f32.gmra.mxu0 %v1135
        %v1199 = vpop.f32.mrf.mxu0
        %v1200 = vadd.f32 %v1095, %v1199
        %1201 = vmatmul.f32.gmra.mxu0 %v1138
        %v1202 = vpop.f32.mrf.mxu0
        %v1203 = vadd.f32 %v1095, %v1202
        %1204 = vmatmul.f32.gmra.mxu0 %v1141
        %v1205 = vpop.f32.mrf.mxu0
        %v1206 = vadd.f32 %v1095, %v1205
        %1207 = vmatmul.f32.gmra.mxu0 %v1144
        %v1208 = vpop.f32.mrf.mxu0
        %v1209 = vadd.f32 %v1095, %v1208
        %1210 = vdwg.mxu0
        %v1211 = vand.u32 2147483647, %v1164
        %v1212 = vand.u32 2147483647, %v1167
        %v1213 = vand.u32 2147483647, %v1170
        %v1214 = vand.u32 2147483647, %v1173
        %v1215 = vand.u32 2147483647, %v1176
        %v1216 = vand.u32 2147483647, %v1179
        %v1217 = vand.u32 2147483647, %v1182
        %v1218 = vand.u32 2147483647, %v1185
        %v1219 = vand.u32 2147483647, %v1188
        %v1220 = vand.u32 2147483647, %v1191
        %v1221 = vand.u32 2147483647, %v1194
        %v1222 = vand.u32 2147483647, %v1197
        %v1223 = vand.u32 2147483647, %v1200
        %v1224 = vand.u32 2147483647, %v1203
        %v1225 = vand.u32 2147483647, %v1206
        %v1226 = vand.u32 2147483647, %v1209
        %v1227 = vmul.f32 %v1211, 0.70710677
        %v1228 = vmul.f32 %v1212, 0.70710677
        %v1229 = vmul.f32 %v1213, 0.70710677
        %v1230 = vmul.f32 %v1214, 0.70710677
        %v1231 = vmul.f32 %v1215, 0.70710677
        %v1232 = vmul.f32 %v1216, 0.70710677
        %v1233 = vmul.f32 %v1217, 0.70710677
        %v1234 = vmul.f32 %v1218, 0.70710677
        %v1235 = vmul.f32 %v1219, 0.70710677
        %v1236 = vmul.f32 %v1220, 0.70710677
        %v1237 = vmul.f32 %v1221, 0.70710677
        %v1238 = vmul.f32 %v1222, 0.70710677
        %v1239 = vmul.f32 %v1223, 0.70710677
        %v1240 = vmul.f32 %v1224, 0.70710677
        %v1241 = vmul.f32 %v1225, 0.70710677
        %v1242 = vmul.f32 %v1226, 0.70710677
        %v1243 = vmul.f32 %v1227, 0.3275911
        %v1244 = vmul.f32 %v1228, 0.3275911
        %v1245 = vmul.f32 %v1229, 0.3275911
        %v1246 = vmul.f32 %v1230, 0.3275911
        %v1247 = vmul.f32 %v1231, 0.3275911
        %v1248 = vmul.f32 %v1232, 0.3275911
        %v1249 = vmul.f32 %v1233, 0.3275911
        %v1250 = vmul.f32 %v1234, 0.3275911
        %v1251 = vmul.f32 %v1235, 0.3275911
        %v1252 = vmul.f32 %v1236, 0.3275911
        %v1253 = vmul.f32 %v1237, 0.3275911
        %v1254 = vmul.f32 %v1238, 0.3275911
        %v1255 = vmul.f32 %v1239, 0.3275911
        %v1256 = vmul.f32 %v1240, 0.3275911
        %v1257 = vmul.f32 %v1241, 0.3275911
        %v1258 = vmul.f32 %v1242, 0.3275911
        %v1259 = vadd.f32 %v1243, 1.0
        %v1260 = vadd.f32 %v1244, 1.0
        %v1261 = vadd.f32 %v1245, 1.0
        %v1262 = vadd.f32 %v1246, 1.0
        %v1263 = vadd.f32 %v1247, 1.0
        %v1264 = vadd.f32 %v1248, 1.0
        %v1265 = vadd.f32 %v1249, 1.0
        %v1266 = vadd.f32 %v1250, 1.0
        %v1267 = vadd.f32 %v1251, 1.0
        %v1268 = vadd.f32 %v1252, 1.0
        %v1269 = vadd.f32 %v1253, 1.0
        %v1270 = vadd.f32 %v1254, 1.0
        %v1271 = vadd.f32 %v1255, 1.0
        %v1272 = vadd.f32 %v1256, 1.0
        %v1273 = vadd.f32 %v1257, 1.0
        %v1274 = vadd.f32 %v1258, 1.0
        %v1275 = vrcp.pop %v1259
        %v1276 = vrcp.pop %v1260
        %v1277 = vrcp.pop %v1261
        %v1278 = vrcp.pop %v1262
        %v1279 = vrcp.pop %v1263
        %v1280 = vrcp.pop %v1264
        %v1281 = vrcp.pop %v1265
        %v1282 = vrcp.pop %v1266
        %v1283 = vrcp.pop %v1267
        %v1284 = vrcp.pop %v1268
        %v1285 = vrcp.pop %v1269
        %v1286 = vrcp.pop %v1270
        %v1287 = vrcp.pop %v1271
        %v1288 = vrcp.pop %v1272
        %v1289 = vrcp.pop %v1273
        %v1290 = vrcp.pop %v1274
        %v1291 = vmul.f32 %v1259, %v1275
        %v1292 = vmul.f32 %v1260, %v1276
        %v1293 = vmul.f32 %v1261, %v1277
        %v1294 = vmul.f32 %v1262, %v1278
        %v1295 = vmul.f32 %v1263, %v1279
        %v1296 = vmul.f32 %v1264, %v1280
        %v1297 = vmul.f32 %v1265, %v1281
        %v1298 = vmul.f32 %v1266, %v1282
        %v1299 = vmul.f32 %v1267, %v1283
        %v1300 = vmul.f32 %v1268, %v1284
        %v1301 = vmul.f32 %v1269, %v1285
        %v1302 = vmul.f32 %v1270, %v1286
        %v1303 = vmul.f32 %v1271, %v1287
        %v1304 = vmul.f32 %v1272, %v1288
        %v1305 = vmul.f32 %v1273, %v1289
        %v1306 = vmul.f32 %v1274, %v1290
        %v1307 = vsub.f32 2.0, %v1291
        %v1308 = vsub.f32 2.0, %v1292
        %v1309 = vsub.f32 2.0, %v1293
        %v1310 = vsub.f32 2.0, %v1294
        %v1311 = vsub.f32 2.0, %v1295
        %v1312 = vsub.f32 2.0, %v1296
        %v1313 = vsub.f32 2.0, %v1297
        %v1314 = vsub.f32 2.0, %v1298
        %v1315 = vsub.f32 2.0, %v1299
        %v1316 = vsub.f32 2.0, %v1300
        %v1317 = vsub.f32 2.0, %v1301
        %v1318 = vsub.f32 2.0, %v1302
        %v1319 = vsub.f32 2.0, %v1303
        %v1320 = vsub.f32 2.0, %v1304
        %v1321 = vsub.f32 2.0, %v1305
        %v1322 = vsub.f32 2.0, %v1306
        %v1323 = vmul.f32 %v1275, %v1307
        %v1324 = vmul.f32 %v1276, %v1308
        %v1325 = vmul.f32 %v1277, %v1309
        %v1326 = vmul.f32 %v1278, %v1310
        %v1327 = vmul.f32 %v1279, %v1311
        %v1328 = vmul.f32 %v1280, %v1312
        %v1329 = vmul.f32 %v1281, %v1313
        %v1330 = vmul.f32 %v1282, %v1314
        %v1331 = vmul.f32 %v1283, %v1315
        %v1332 = vmul.f32 %v1284, %v1316
        %v1333 = vmul.f32 %v1285, %v1317
        %v1334 = vmul.f32 %v1286, %v1318
        %v1335 = vmul.f32 %v1287, %v1319
        %v1336 = vmul.f32 %v1288, %v1320
        %v1337 = vmul.f32 %v1289, %v1321
        %v1338 = vmul.f32 %v1290, %v1322
        %v1339 = vmul.f32 %v1323, 1.0614054
        %v1340 = vmul.f32 %v1324, 1.0614054
        %v1341 = vmul.f32 %v1325, 1.0614054
        %v1342 = vmul.f32 %v1326, 1.0614054
        %v1343 = vmul.f32 %v1327, 1.0614054
        %v1344 = vmul.f32 %v1328, 1.0614054
        %v1345 = vmul.f32 %v1329, 1.0614054
        %v1346 = vmul.f32 %v1330, 1.0614054
        %v1347 = vmul.f32 %v1331, 1.0614054
        %v1348 = vmul.f32 %v1332, 1.0614054
        %v1349 = vmul.f32 %v1333, 1.0614054
        %v1350 = vmul.f32 %v1334, 1.0614054
        %v1351 = vmul.f32 %v1335, 1.0614054
        %v1352 = vmul.f32 %v1336, 1.0614054
        %v1353 = vmul.f32 %v1337, 1.0614054
        %v1354 = vmul.f32 %v1338, 1.0614054
        %v1355 = vadd.f32 %v1339, -1.4531521
        %v1356 = vadd.f32 %v1340, -1.4531521
        %v1357 = vadd.f32 %v1341, -1.4531521
        %v1358 = vadd.f32 %v1342, -1.4531521
        %v1359 = vadd.f32 %v1343, -1.4531521
        %v1360 = vadd.f32 %v1344, -1.4531521
        %v1361 = vadd.f32 %v1345, -1.4531521
        %v1362 = vadd.f32 %v1346, -1.4531521
        %v1363 = vadd.f32 %v1347, -1.4531521
        %v1364 = vadd.f32 %v1348, -1.4531521
        %v1365 = vadd.f32 %v1349, -1.4531521
        %v1366 = vadd.f32 %v1350, -1.4531521
        %v1367 = vadd.f32 %v1351, -1.4531521
        %v1368 = vadd.f32 %v1352, -1.4531521
        %v1369 = vadd.f32 %v1353, -1.4531521
        %v1370 = vadd.f32 %v1354, -1.4531521
        %v1371 = vmul.f32 %v1355, %v1323
        %v1372 = vmul.f32 %v1356, %v1324
        %v1373 = vmul.f32 %v1357, %v1325
        %v1374 = vmul.f32 %v1358, %v1326
        %v1375 = vmul.f32 %v1359, %v1327
        %v1376 = vmul.f32 %v1360, %v1328
        %v1377 = vmul.f32 %v1361, %v1329
        %v1378 = vmul.f32 %v1362, %v1330
        %v1379 = vmul.f32 %v1363, %v1331
        %v1380 = vmul.f32 %v1364, %v1332
        %v1381 = vmul.f32 %v1365, %v1333
        %v1382 = vmul.f32 %v1366, %v1334
        %v1383 = vmul.f32 %v1367, %v1335
        %v1384 = vmul.f32 %v1368, %v1336
        %v1385 = vmul.f32 %v1369, %v1337
        %v1386 = vmul.f32 %v1370, %v1338
        %v1387 = vadd.f32 %v1371, 1.4214138
        %v1388 = vadd.f32 %v1372, 1.4214138
        %v1389 = vadd.f32 %v1373, 1.4214138
        %v1390 = vadd.f32 %v1374, 1.4214138
        %v1391 = vadd.f32 %v1375, 1.4214138
        %v1392 = vadd.f32 %v1376, 1.4214138
        %v1393 = vadd.f32 %v1377, 1.4214138
        %v1394 = vadd.f32 %v1378, 1.4214138
        %v1395 = vadd.f32 %v1379, 1.4214138
        %v1396 = vadd.f32 %v1380, 1.4214138
        %v1397 = vadd.f32 %v1381, 1.4214138
        %v1398 = vadd.f32 %v1382, 1.4214138
        %v1399 = vadd.f32 %v1383, 1.4214138
        %v1400 = vadd.f32 %v1384, 1.4214138
        %v1401 = vadd.f32 %v1385, 1.4214138
        %v1402 = vadd.f32 %v1386, 1.4214138
        %v1403 = vmul.f32 %v1387, %v1323
        %v1404 = vmul.f32 %v1388, %v1324
        %v1405 = vmul.f32 %v1389, %v1325
        %v1406 = vmul.f32 %v1390, %v1326
        %v1407 = vmul.f32 %v1391, %v1327
        %v1408 = vmul.f32 %v1392, %v1328
        %v1409 = vmul.f32 %v1393, %v1329
        %v1410 = vmul.f32 %v1394, %v1330
        %v1411 = vmul.f32 %v1395, %v1331
        %v1412 = vmul.f32 %v1396, %v1332
        %v1413 = vmul.f32 %v1397, %v1333
        %v1414 = vmul.f32 %v1398, %v1334
        %v1415 = vmul.f32 %v1399, %v1335
        %v1416 = vmul.f32 %v1400, %v1336
        %v1417 = vmul.f32 %v1401, %v1337
        %v1418 = vmul.f32 %v1402, %v1338
        %v1419 = vadd.f32 %v1403, -0.28449672
        %v1420 = vadd.f32 %v1404, -0.28449672
        %v1421 = vadd.f32 %v1405, -0.28449672
        %v1422 = vadd.f32 %v1406, -0.28449672
        %v1423 = vadd.f32 %v1407, -0.28449672
        %v1424 = vadd.f32 %v1408, -0.28449672
        %v1425 = vadd.f32 %v1409, -0.28449672
        %v1426 = vadd.f32 %v1410, -0.28449672
        %v1427 = vadd.f32 %v1411, -0.28449672
        %v1428 = vadd.f32 %v1412, -0.28449672
        %v1429 = vadd.f32 %v1413, -0.28449672
        %v1430 = vadd.f32 %v1414, -0.28449672
        %v1431 = vadd.f32 %v1415, -0.28449672
        %v1432 = vadd.f32 %v1416, -0.28449672
        %v1433 = vadd.f32 %v1417, -0.28449672
        %v1434 = vadd.f32 %v1418, -0.28449672
        %v1435 = vmul.f32 %v1419, %v1323
        %v1436 = vmul.f32 %v1420, %v1324
        %v1437 = vmul.f32 %v1421, %v1325
        %v1438 = vmul.f32 %v1422, %v1326
        %v1439 = vmul.f32 %v1423, %v1327
        %v1440 = vmul.f32 %v1424, %v1328
        %v1441 = vmul.f32 %v1425, %v1329
        %v1442 = vmul.f32 %v1426, %v1330
        %v1443 = vmul.f32 %v1427, %v1331
        %v1444 = vmul.f32 %v1428, %v1332
        %v1445 = vmul.f32 %v1429, %v1333
        %v1446 = vmul.f32 %v1430, %v1334
        %v1447 = vmul.f32 %v1431, %v1335
        %v1448 = vmul.f32 %v1432, %v1336
        %v1449 = vmul.f32 %v1433, %v1337
        %v1450 = vmul.f32 %v1434, %v1338
        %v1451 = vadd.f32 %v1435, 0.2548296
        %v1452 = vadd.f32 %v1436, 0.2548296
        %v1453 = vadd.f32 %v1437, 0.2548296
        %v1454 = vadd.f32 %v1438, 0.2548296
        %v1455 = vadd.f32 %v1439, 0.2548296
        %v1456 = vadd.f32 %v1440, 0.2548296
        %v1457 = vadd.f32 %v1441, 0.2548296
        %v1458 = vadd.f32 %v1442, 0.2548296
        %v1459 = vadd.f32 %v1443, 0.2548296
        %v1460 = vadd.f32 %v1444, 0.2548296
        %v1461 = vadd.f32 %v1445, 0.2548296
        %v1462 = vadd.f32 %v1446, 0.2548296
        %v1463 = vadd.f32 %v1447, 0.2548296
        %v1464 = vadd.f32 %v1448, 0.2548296
        %v1465 = vadd.f32 %v1449, 0.2548296
        %v1466 = vadd.f32 %v1450, 0.2548296
        %v1467 = vmul.f32 %v1451, %v1323
        %v1468 = vmul.f32 %v1452, %v1324
        %v1469 = vmul.f32 %v1453, %v1325
        %v1470 = vmul.f32 %v1454, %v1326
        %v1471 = vmul.f32 %v1455, %v1327
        %v1472 = vmul.f32 %v1456, %v1328
        %v1473 = vmul.f32 %v1457, %v1329
        %v1474 = vmul.f32 %v1458, %v1330
        %v1475 = vmul.f32 %v1459, %v1331
        %v1476 = vmul.f32 %v1460, %v1332
        %v1477 = vmul.f32 %v1461, %v1333
        %v1478 = vmul.f32 %v1462, %v1334
        %v1479 = vmul.f32 %v1463, %v1335
        %v1480 = vmul.f32 %v1464, %v1336
        %v1481 = vmul.f32 %v1465, %v1337
        %v1482 = vmul.f32 %v1466, %v1338
        %v1483 = vsub.f32 0.0, %v1227
        %v1484 = vsub.f32 0.0, %v1228
        %v1485 = vsub.f32 0.0, %v1229
        %v1486 = vsub.f32 0.0, %v1230
        %v1487 = vsub.f32 0.0, %v1231
        %v1488 = vsub.f32 0.0, %v1232
        %v1489 = vsub.f32 0.0, %v1233
        %v1490 = vsub.f32 0.0, %v1234
        %v1491 = vsub.f32 0.0, %v1235
        %v1492 = vsub.f32 0.0, %v1236
        %v1493 = vsub.f32 0.0, %v1237
        %v1494 = vsub.f32 0.0, %v1238
        %v1495 = vsub.f32 0.0, %v1239
        %v1496 = vsub.f32 0.0, %v1240
        %v1497 = vsub.f32 0.0, %v1241
        %v1498 = vsub.f32 0.0, %v1242
        %v1499 = vmul.f32 %v1483, %v1227
        %v1500 = vmul.f32 %v1484, %v1228
        %v1501 = vmul.f32 %v1485, %v1229
        %v1502 = vmul.f32 %v1486, %v1230
        %v1503 = vmul.f32 %v1487, %v1231
        %v1504 = vmul.f32 %v1488, %v1232
        %v1505 = vmul.f32 %v1489, %v1233
        %v1506 = vmul.f32 %v1490, %v1234
        %v1507 = vmul.f32 %v1491, %v1235
        %v1508 = vmul.f32 %v1492, %v1236
        %v1509 = vmul.f32 %v1493, %v1237
        %v1510 = vmul.f32 %v1494, %v1238
        %v1511 = vmul.f32 %v1495, %v1239
        %v1512 = vmul.f32 %v1496, %v1240
        %v1513 = vmul.f32 %v1497, %v1241
        %v1514 = vmul.f32 %v1498, %v1242
        %v1515 = vmul.f32 %v1499, 1.442695
        %v1516 = vpow.pop %v1515
        %v1517 = vmul.f32 %v1500, 1.442695
        %v1518 = vpow.pop %v1517
        %v1519 = vmul.f32 %v1501, 1.442695
        %v1520 = vpow.pop %v1519
        %v1521 = vmul.f32 %v1502, 1.442695
        %v1522 = vpow.pop %v1521
        %v1523 = vmul.f32 %v1503, 1.442695
        %v1524 = vpow.pop %v1523
        %v1525 = vmul.f32 %v1504, 1.442695
        %v1526 = vpow.pop %v1525
        %v1527 = vmul.f32 %v1505, 1.442695
        %v1528 = vpow.pop %v1527
        %v1529 = vmul.f32 %v1506, 1.442695
        %v1530 = vpow.pop %v1529
        %v1531 = vmul.f32 %v1507, 1.442695
        %v1532 = vpow.pop %v1531
        %v1533 = vmul.f32 %v1508, 1.442695
        %v1534 = vpow.pop %v1533
        %v1535 = vmul.f32 %v1509, 1.442695
        %v1536 = vpow.pop %v1535
        %v1537 = vmul.f32 %v1510, 1.442695
        %v1538 = vpow.pop %v1537
        %v1539 = vmul.f32 %v1511, 1.442695
        %v1540 = vpow.pop %v1539
        %v1541 = vmul.f32 %v1512, 1.442695
        %v1542 = vpow.pop %v1541
        %v1543 = vmul.f32 %v1513, 1.442695
        %v1544 = vpow.pop %v1543
        %v1545 = vmul.f32 %v1514, 1.442695
        %v1546 = vpow.pop %v1545
        %v1547 = vmul.f32 %v1467, %v1516
        %v1548 = vmul.f32 %v1468, %v1518
        %v1549 = vmul.f32 %v1469, %v1520
        %v1550 = vmul.f32 %v1470, %v1522
        %v1551 = vmul.f32 %v1471, %v1524
        %v1552 = vmul.f32 %v1472, %v1526
        %v1553 = vmul.f32 %v1473, %v1528
        %v1554 = vmul.f32 %v1474, %v1530
        %v1555 = vmul.f32 %v1475, %v1532
        %v1556 = vmul.f32 %v1476, %v1534
        %v1557 = vmul.f32 %v1477, %v1536
        %v1558 = vmul.f32 %v1478, %v1538
        %v1559 = vmul.f32 %v1479, %v1540
        %v1560 = vmul.f32 %v1480, %v1542
        %v1561 = vmul.f32 %v1481, %v1544
        %v1562 = vmul.f32 %v1482, %v1546
        %v1563 = vsub.f32 1.0, %v1547
        %v1564 = vsub.f32 1.0, %v1548
        %v1565 = vsub.f32 1.0, %v1549
        %v1566 = vsub.f32 1.0, %v1550
        %v1567 = vsub.f32 1.0, %v1551
        %v1568 = vsub.f32 1.0, %v1552
        %v1569 = vsub.f32 1.0, %v1553
        %v1570 = vsub.f32 1.0, %v1554
        %v1571 = vsub.f32 1.0, %v1555
        %v1572 = vsub.f32 1.0, %v1556
        %v1573 = vsub.f32 1.0, %v1557
        %v1574 = vsub.f32 1.0, %v1558
        %v1575 = vsub.f32 1.0, %v1559
        %v1576 = vsub.f32 1.0, %v1560
        %v1577 = vsub.f32 1.0, %v1561
        %v1578 = vsub.f32 1.0, %v1562
        %vm1579 = vcmp.ge.f32.partialorder %v1164, 0.0
        %vm1580 = vcmp.ge.f32.partialorder %v1167, 0.0
        %vm1581 = vcmp.ge.f32.partialorder %v1170, 0.0
        %vm1582 = vcmp.ge.f32.partialorder %v1173, 0.0
        %vm1583 = vcmp.ge.f32.partialorder %v1176, 0.0
        %vm1584 = vcmp.ge.f32.partialorder %v1179, 0.0
        %vm1585 = vcmp.ge.f32.partialorder %v1182, 0.0
        %vm1586 = vcmp.ge.f32.partialorder %v1185, 0.0
        %vm1587 = vcmp.ge.f32.partialorder %v1188, 0.0
        %vm1588 = vcmp.ge.f32.partialorder %v1191, 0.0
        %vm1589 = vcmp.ge.f32.partialorder %v1194, 0.0
        %vm1590 = vcmp.ge.f32.partialorder %v1197, 0.0
        %vm1591 = vcmp.ge.f32.partialorder %v1200, 0.0
        %vm1592 = vcmp.ge.f32.partialorder %v1203, 0.0
        %vm1593 = vcmp.ge.f32.partialorder %v1206, 0.0
        %vm1594 = vcmp.ge.f32.partialorder %v1209, 0.0
        %v1595 = vsub.f32 0.0, %v1563
        %v1596 = vsub.f32 0.0, %v1564
        %v1597 = vsub.f32 0.0, %v1565
        %v1598 = vsub.f32 0.0, %v1566
        %v1599 = vsub.f32 0.0, %v1567
        %v1600 = vsub.f32 0.0, %v1568
        %v1601 = vsub.f32 0.0, %v1569
        %v1602 = vsub.f32 0.0, %v1570
        %v1603 = vsub.f32 0.0, %v1571
        %v1604 = vsub.f32 0.0, %v1572
        %v1605 = vsub.f32 0.0, %v1573
        %v1606 = vsub.f32 0.0, %v1574
        %v1607 = vsub.f32 0.0, %v1575
        %v1608 = vsub.f32 0.0, %v1576
        %v1609 = vsub.f32 0.0, %v1577
        %v1610 = vsub.f32 0.0, %v1578
        %v1611 = vsel %vm1579, %v1563, %v1595
        %v1612 = vsel %vm1580, %v1564, %v1596
        %v1613 = vsel %vm1581, %v1565, %v1597
        %v1614 = vsel %vm1582, %v1566, %v1598
        %v1615 = vsel %vm1583, %v1567, %v1599
        %v1616 = vsel %vm1584, %v1568, %v1600
        %v1617 = vsel %vm1585, %v1569, %v1601
        %v1618 = vsel %vm1586, %v1570, %v1602
        %v1619 = vsel %vm1587, %v1571, %v1603
        %v1620 = vsel %vm1588, %v1572, %v1604
        %v1621 = vsel %vm1589, %v1573, %v1605
        %v1622 = vsel %vm1590, %v1574, %v1606
        %v1623 = vsel %vm1591, %v1575, %v1607
        %v1624 = vsel %vm1592, %v1576, %v1608
        %v1625 = vsel %vm1593, %v1577, %v1609
        %v1626 = vsel %vm1594, %v1578, %v1610
        %v1627 = vadd.f32 %v1611, 1.0
        %v1628 = vadd.f32 %v1612, 1.0
        %v1629 = vadd.f32 %v1613, 1.0
        %v1630 = vadd.f32 %v1614, 1.0
        %v1631 = vadd.f32 %v1615, 1.0
        %v1632 = vadd.f32 %v1616, 1.0
        %v1633 = vadd.f32 %v1617, 1.0
        %v1634 = vadd.f32 %v1618, 1.0
        %v1635 = vadd.f32 %v1619, 1.0
        %v1636 = vadd.f32 %v1620, 1.0
        %v1637 = vadd.f32 %v1621, 1.0
        %v1638 = vadd.f32 %v1622, 1.0
        %v1639 = vadd.f32 %v1623, 1.0
        %v1640 = vadd.f32 %v1624, 1.0
        %v1641 = vadd.f32 %v1625, 1.0
        %v1642 = vadd.f32 %v1626, 1.0
        %v1643 = vmul.f32 %v1627, 0.5
        %v1644 = vmul.f32 %v1628, 0.5
        %v1645 = vmul.f32 %v1629, 0.5
        %v1646 = vmul.f32 %v1630, 0.5
        %v1647 = vmul.f32 %v1631, 0.5
        %v1648 = vmul.f32 %v1632, 0.5
        %v1649 = vmul.f32 %v1633, 0.5
        %v1650 = vmul.f32 %v1634, 0.5
        %v1651 = vmul.f32 %v1635, 0.5
        %v1652 = vmul.f32 %v1636, 0.5
        %v1653 = vmul.f32 %v1637, 0.5
        %v1654 = vmul.f32 %v1638, 0.5
        %v1655 = vmul.f32 %v1639, 0.5
        %v1656 = vmul.f32 %v1640, 0.5
        %v1657 = vmul.f32 %v1641, 0.5
        %v1658 = vmul.f32 %v1642, 0.5
        %v1659 = vmul.f32 %v1164, %v1643
        %v1660 = vmul.f32 %v1167, %v1644
        %v1661 = vmul.f32 %v1170, %v1645
        %v1662 = vmul.f32 %v1173, %v1646
        %v1663 = vmul.f32 %v1176, %v1647
        %v1664 = vmul.f32 %v1179, %v1648
        %v1665 = vmul.f32 %v1182, %v1649
        %v1666 = vmul.f32 %v1185, %v1650
        %v1667 = vmul.f32 %v1188, %v1651
        %v1668 = vmul.f32 %v1191, %v1652
        %v1669 = vmul.f32 %v1194, %v1653
        %v1670 = vmul.f32 %v1197, %v1654
        %v1671 = vmul.f32 %v1200, %v1655
        %v1672 = vmul.f32 %v1203, %v1656
        %v1673 = vmul.f32 %v1206, %v1657
        %v1674 = vmul.f32 %v1209, %v1658
        %v1675 = vld [vmem:[%s15] sm:$0xff]
        %v1676 = vld [vmem:[%s15 + $0x8] sm:$0xff]
        %v1677 = vld [vmem:[%s15 + $0x10] sm:$0xff]
        %v1678 = vld [vmem:[%s15 + $0x18] sm:$0xff]
        %v1679 = vld [vmem:[%s15 + $0x20] sm:$0xff]
        %v1680 = vld [vmem:[%s15 + $0x28] sm:$0xff]
        %v1681 = vld [vmem:[%s15 + $0x30] sm:$0xff]
        %v1682 = vld [vmem:[%s15 + $0x38] sm:$0xff]
        %v1683 = vld [vmem:[%s15 + $0x40] sm:$0xff]
        %v1684 = vld [vmem:[%s15 + $0x48] sm:$0xff]
        %v1685 = vld [vmem:[%s15 + $0x50] sm:$0xff]
        %v1686 = vld [vmem:[%s15 + $0x58] sm:$0xff]
        %v1687 = vld [vmem:[%s15 + $0x60] sm:$0xff]
        %v1688 = vld [vmem:[%s15 + $0x68] sm:$0xff]
        %v1689 = vld [vmem:[%s15 + $0x70] sm:$0xff]
        %v1690 = vld [vmem:[%s15 + $0x78] sm:$0xff]
        %v1691 = vld [vmem:[%s17] sm:$0x1]
        %v1693 = vperm.slane %v1691, 0
        %1695 = vmatpush.msra.mxu0 %v1690
        %1696 = vmatpush.msra.mxu0 %v1689
        %1697 = vmatpush.msra.mxu0 %v1688
        %1698 = vmatpush.msra.mxu0 %v1687
        %1699 = vmatpush.msra.mxu0 %v1686
        %1700 = vmatpush.msra.mxu0 %v1685
        %1701 = vmatpush.msra.mxu0 %v1684
        %1702 = vmatpush.msra.mxu0 %v1683
        %1703 = vmatpush.msra.mxu0 %v1682
        %1704 = vmatpush.msra.mxu0 %v1681
        %1705 = vmatpush.msra.mxu0 %v1680
        %1706 = vmatpush.msra.mxu0 %v1679
        %1707 = vmatpush.msra.mxu0 %v1678
        %1708 = vmatpush.msra.mxu0 %v1677
        %1709 = vmatpush.msra.mxu0 %v1676
        %1710 = vmatpush.msra.mxu0 %v1675
        %1711 = vmatmul.f32.gmra.mxu0 %v1659
        %v1712 = vpop.f32.mrf.mxu0
        %v1713 = vadd.f32 %v1693, %v1712
        %1714 = vmatmul.f32.gmra.mxu0 %v1660
        %v1715 = vpop.f32.mrf.mxu0
        %v1716 = vadd.f32 %v1693, %v1715
        %1717 = vmatmul.f32.gmra.mxu0 %v1661
        %v1718 = vpop.f32.mrf.mxu0
        %v1719 = vadd.f32 %v1693, %v1718
        %1720 = vmatmul.f32.gmra.mxu0 %v1662
        %v1721 = vpop.f32.mrf.mxu0
        %v1722 = vadd.f32 %v1693, %v1721
        %1723 = vmatmul.f32.gmra.mxu0 %v1663
        %v1724 = vpop.f32.mrf.mxu0
        %v1725 = vadd.f32 %v1693, %v1724
        %1726 = vmatmul.f32.gmra.mxu0 %v1664
        %v1727 = vpop.f32.mrf.mxu0
        %v1728 = vadd.f32 %v1693, %v1727
        %1729 = vmatmul.f32.gmra.mxu0 %v1665
        %v1730 = vpop.f32.mrf.mxu0
        %v1731 = vadd.f32 %v1693, %v1730
        %1732 = vmatmul.f32.gmra.mxu0 %v1666
        %v1733 = vpop.f32.mrf.mxu0
        %v1734 = vadd.f32 %v1693, %v1733
        %1735 = vmatmul.f32.gmra.mxu0 %v1667
        %v1736 = vpop.f32.mrf.mxu0
        %v1737 = vadd.f32 %v1693, %v1736
        %1738 = vmatmul.f32.gmra.mxu0 %v1668
        %v1739 = vpop.f32.mrf.mxu0
        %v1740 = vadd.f32 %v1693, %v1739
        %1741 = vmatmul.f32.gmra.mxu0 %v1669
        %v1742 = vpop.f32.mrf.mxu0
        %v1743 = vadd.f32 %v1693, %v1742
        %1744 = vmatmul.f32.gmra.mxu0 %v1670
        %v1745 = vpop.f32.mrf.mxu0
        %v1746 = vadd.f32 %v1693, %v1745
        %1747 = vmatmul.f32.gmra.mxu0 %v1671
        %v1748 = vpop.f32.mrf.mxu0
        %v1749 = vadd.f32 %v1693, %v1748
        %1750 = vmatmul.f32.gmra.mxu0 %v1672
        %v1751 = vpop.f32.mrf.mxu0
        %v1752 = vadd.f32 %v1693, %v1751
        %1753 = vmatmul.f32.gmra.mxu0 %v1673
        %v1754 = vpop.f32.mrf.mxu0
        %v1755 = vadd.f32 %v1693, %v1754
        %1756 = vmatmul.f32.gmra.mxu0 %v1674
        %v1757 = vpop.f32.mrf.mxu0
        %v1758 = vadd.f32 %v1693, %v1757
        %1759 = vdwg.mxu0
        %1760 = vxpose.xlu0.b32.start [1/16] %v1713, 128
        %1761 = vxpose.xlu0.b32.cont [2/16] %v1716, 128
        %1762 = vxpose.xlu0.b32.cont [3/16] %v1719, 128
        %1763 = vxpose.xlu0.b32.cont [4/16] %v1722, 128
        %1764 = vxpose.xlu0.b32.cont [5/16] %v1725, 128
        %1765 = vxpose.xlu0.b32.cont [6/16] %v1728, 128
        %1766 = vxpose.xlu0.b32.cont [7/16] %v1731, 128
        %1767 = vxpose.xlu0.b32.cont [8/16] %v1734, 128
        %1768 = vxpose.xlu0.b32.cont [9/16] %v1737, 128
        %1769 = vxpose.xlu0.b32.cont [10/16] %v1740, 128
        %1770 = vxpose.xlu0.b32.cont [11/16] %v1743, 128
        %1771 = vxpose.xlu0.b32.cont [12/16] %v1746, 128
        %1772 = vxpose.xlu0.b32.cont [13/16] %v1749, 128
        %1773 = vxpose.xlu0.b32.cont [14/16] %v1752, 128
        %1774 = vxpose.xlu0.b32.cont [15/16] %v1755, 128
        %1775 = vxpose.xlu0.b32.end [16/16] %v1758, 128
        %v1776 = vpop.trf.xlu0
        %v1777 = vpop.trf.xlu0
        %v1778 = vpop.trf.xlu0
        %v1779 = vpop.trf.xlu0
        %v1780 = vpop.trf.xlu0
        %v1781 = vpop.trf.xlu0
        %v1782 = vpop.trf.xlu0
        %v1783 = vpop.trf.xlu0
        %v1784 = vpop.trf.xlu0
        %v1785 = vpop.trf.xlu0
        %v1786 = vpop.trf.xlu0
        %v1787 = vpop.trf.xlu0
        %v1788 = vpop.trf.xlu0
        %v1789 = vpop.trf.xlu0
        %v1790 = vpop.trf.xlu0
        %v1791 = vpop.trf.xlu0
        %v1792 = vadd.f32 %v995, %v1776
        %v1793 = vadd.f32 %v998, %v1777
        %v1794 = vld [vmem:[%s19] sm:$0x1]
        %v1795 = vld [vmem:[%s21] sm:$0x1]
        %1796 = vadd.xlane.f32.xlu0 %v1792
        %v1797 = vpop.xlane.xlu0 %1796
        %1798 = vadd.xlane.f32.xlu0 %v1793
        %v1799 = vpop.xlane.xlu0 %1798
        %v1800 = vmul.f32 %v1797, %v1012
        %v1801 = vmul.f32 %v1799, %v1012
        %v1802 = vsub.f32 %v1792, %v1800
        %v1803 = vsub.f32 %v1793, %v1801
        %v1804 = vmul.f32 %v1802, %v1802
        %v1805 = vmul.f32 %v1803, %v1803
        %1806 = vadd.xlane.f32.xlu0 %v1804
        %v1807 = vpop.xlane.xlu0 %1806
        %1808 = vadd.xlane.f32.xlu0 %v1805
        %v1809 = vpop.xlane.xlu0 %1808
        %v1810 = vmul.f32 %v1807, %v1012
        %v1811 = vmul.f32 %v1809, %v1012
        %v1812 = vadd.f32 %v1810, 1e-05
        %v1813 = vadd.f32 %v1811, 1e-05
        %v1814 = vrsqrt.pop %v1812
        %v1815 = vmul.f32 %v1814, %v1812
        %v1816 = vmul.f32 %v1815, %v1814
        %v1817 = vmul.f32 0.5, %v1816
        %v1818 = vsub.f32 1.5, %v1817
        %v1819 = vmul.f32 %v1814, %v1818
        %vm1820 = vweird.f32 %v1812
        %vm1821 = vweird.f32 %v1814
        %vm1822 = vmor %vm1820, %vm1821
        %v1823 = vsel %vm1822, %v1814, %v1819
        %v1824 = vrsqrt.pop %v1813
        %v1825 = vmul.f32 %v1824, %v1813
        %v1826 = vmul.f32 %v1825, %v1824
        %v1827 = vmul.f32 0.5, %v1826
        %v1828 = vsub.f32 1.5, %v1827
        %v1829 = vmul.f32 %v1824, %v1828
        %vm1830 = vweird.f32 %v1813
        %vm1831 = vweird.f32 %v1824
        %vm1832 = vmor %vm1830, %vm1831
        %v1833 = vsel %vm1832, %v1824, %v1829
        %v1834 = vmul.f32 %v1802, %v1823
        %v1835 = vmul.f32 %v1803, %v1833
        %v1837 = vperm.slane %v1794, 0
        %v1839 = vmul.f32 %v1834, %v1837
        %v1840 = vmul.f32 %v1835, %v1837
        %v1842 = vperm.slane %v1795, 0
        %v1844 = vadd.f32 %v1839, %v1842
        %v1845 = vadd.f32 %v1840, %v1842
        %v1846 = vld [vmem:[%s23] sm:$0xff]
        %v1847 = vld [vmem:[%s23 + $0x8] sm:$0xff]
        %v1848 = vld [vmem:[%s23 + $0x10] sm:$0xff]
        %v1849 = vld [vmem:[%s23 + $0x18] sm:$0xff]
        %v1850 = vld [vmem:[%s23 + $0x20] sm:$0xff]
        %v1851 = vld [vmem:[%s23 + $0x28] sm:$0xff]
        %v1852 = vld [vmem:[%s23 + $0x30] sm:$0xff]
        %v1853 = vld [vmem:[%s23 + $0x38] sm:$0xff]
        %v1854 = vld [vmem:[%s23 + $0x40] sm:$0xff]
        %v1855 = vld [vmem:[%s23 + $0x48] sm:$0xff]
        %v1856 = vld [vmem:[%s23 + $0x50] sm:$0xff]
        %v1857 = vld [vmem:[%s23 + $0x58] sm:$0xff]
        %v1858 = vld [vmem:[%s23 + $0x60] sm:$0xff]
        %v1859 = vld [vmem:[%s23 + $0x68] sm:$0xff]
        %v1860 = vld [vmem:[%s23 + $0x70] sm:$0xff]
        %v1861 = vld [vmem:[%s23 + $0x78] sm:$0xff]
        %v1862 = vld [vmem:[%s25] sm:$0x1]
        %v1864 = vperm.slane %v1862, 0
        %1866 = vmatpush.msra.mxu0 %v1861
        %1867 = vmatpush.msra.mxu0 %v1860
        %1868 = vmatpush.msra.mxu0 %v1859
        %1869 = vmatpush.msra.mxu0 %v1858
        %1870 = vmatpush.msra.mxu0 %v1857
        %1871 = vmatpush.msra.mxu0 %v1856
        %1872 = vmatpush.msra.mxu0 %v1855
        %1873 = vmatpush.msra.mxu0 %v1854
        %1874 = vmatpush.msra.mxu0 %v1853
        %1875 = vmatpush.msra.mxu0 %v1852
        %1876 = vmatpush.msra.mxu0 %v1851
        %1877 = vmatpush.msra.mxu0 %v1850
        %1878 = vmatpush.msra.mxu0 %v1849
        %1879 = vmatpush.msra.mxu0 %v1848
        %1880 = vmatpush.msra.mxu0 %v1847
        %1881 = vmatpush.msra.mxu0 %v1846
        %1882 = vmatmul.f32.gmra.mxu0 %v1844
        %v1883 = vpop.f32.mrf.mxu0
        %v1884 = vadd.f32 %v1864, %v1883
        %1885 = vmatmul.f32.gmra.mxu0 %v1845
        %v1886 = vpop.f32.mrf.mxu0
        %v1887 = vadd.f32 %v1864, %v1886
        %1888 = vdwg.mxu0
        %v1889 = vand.u32 2147483647, %v1884
        %v1890 = vand.u32 2147483647, %v1887
        %v1891 = vmul.f32 %v1889, 0.70710677
        %v1892 = vmul.f32 %v1890, 0.70710677
        %v1893 = vmul.f32 %v1891, 0.3275911
        %v1894 = vmul.f32 %v1892, 0.3275911
        %v1895 = vadd.f32 %v1893, 1.0
        %v1896 = vadd.f32 %v1894, 1.0
        %v1897 = vrcp.pop %v1895
        %v1898 = vrcp.pop %v1896
        %v1899 = vmul.f32 %v1895, %v1897
        %v1900 = vmul.f32 %v1896, %v1898
        %v1901 = vsub.f32 2.0, %v1899
        %v1902 = vsub.f32 2.0, %v1900
        %v1903 = vmul.f32 %v1897, %v1901
        %v1904 = vmul.f32 %v1898, %v1902
        %v1905 = vmul.f32 %v1903, 1.0614054
        %v1906 = vmul.f32 %v1904, 1.0614054
        %v1907 = vadd.f32 %v1905, -1.4531521
        %v1908 = vadd.f32 %v1906, -1.4531521
        %v1909 = vmul.f32 %v1907, %v1903
        %v1910 = vmul.f32 %v1908, %v1904
        %v1911 = vadd.f32 %v1909, 1.4214138
        %v1912 = vadd.f32 %v1910, 1.4214138
        %v1913 = vmul.f32 %v1911, %v1903
        %v1914 = vmul.f32 %v1912, %v1904
        %v1915 = vadd.f32 %v1913, -0.28449672
        %v1916 = vadd.f32 %v1914, -0.28449672
        %v1917 = vmul.f32 %v1915, %v1903
        %v1918 = vmul.f32 %v1916, %v1904
        %v1919 = vadd.f32 %v1917, 0.2548296
        %v1920 = vadd.f32 %v1918, 0.2548296
        %v1921 = vmul.f32 %v1919, %v1903
        %v1922 = vmul.f32 %v1920, %v1904
        %v1923 = vsub.f32 0.0, %v1891
        %v1924 = vsub.f32 0.0, %v1892
        %v1925 = vmul.f32 %v1923, %v1891
        %v1926 = vmul.f32 %v1924, %v1892
        %v1927 = vmul.f32 %v1925, 1.442695
        %v1928 = vpow.pop %v1927
        %v1929 = vmul.f32 %v1926, 1.442695
        %v1930 = vpow.pop %v1929
        %v1931 = vmul.f32 %v1921, %v1928
        %v1932 = vmul.f32 %v1922, %v1930
        %v1933 = vsub.f32 1.0, %v1931
        %v1934 = vsub.f32 1.0, %v1932
        %vm1935 = vcmp.ge.f32.partialorder %v1884, 0.0
        %vm1936 = vcmp.ge.f32.partialorder %v1887, 0.0
        %v1937 = vsub.f32 0.0, %v1933
        %v1938 = vsub.f32 0.0, %v1934
        %v1939 = vsel %vm1935, %v1933, %v1937
        %v1940 = vsel %vm1936, %v1934, %v1938
        %v1941 = vadd.f32 %v1939, 1.0
        %v1942 = vadd.f32 %v1940, 1.0
        %v1943 = vmul.f32 %v1941, 0.5
        %v1944 = vmul.f32 %v1942, 0.5
        %v1945 = vmul.f32 %v1884, %v1943
        %v1946 = vmul.f32 %v1887, %v1944
        %v1947 = vld [vmem:[%s27] sm:$0xff]
        %v1948 = vld [vmem:[%s27 + $0x8] sm:$0xff]
        %v1949 = vld [vmem:[%s27 + $0x10] sm:$0xff]
        %v1950 = vld [vmem:[%s27 + $0x18] sm:$0xff]
        %v1951 = vld [vmem:[%s27 + $0x20] sm:$0xff]
        %v1952 = vld [vmem:[%s27 + $0x28] sm:$0xff]
        %v1953 = vld [vmem:[%s27 + $0x30] sm:$0xff]
        %v1954 = vld [vmem:[%s27 + $0x38] sm:$0xff]
        %v1955 = vld [vmem:[%s27 + $0x40] sm:$0xff]
        %v1956 = vld [vmem:[%s27 + $0x48] sm:$0xff]
        %v1957 = vld [vmem:[%s27 + $0x50] sm:$0xff]
        %v1958 = vld [vmem:[%s27 + $0x58] sm:$0xff]
        %v1959 = vld [vmem:[%s27 + $0x60] sm:$0xff]
        %v1960 = vld [vmem:[%s27 + $0x68] sm:$0xff]
        %v1961 = vld [vmem:[%s27 + $0x70] sm:$0xff]
        %v1962 = vld [vmem:[%s27 + $0x78] sm:$0xff]
        %v1963 = vld [vmem:[%s29] sm:$0x1]
        %v1965 = vperm.slane %v1963, 0
        %1967 = vmatpush.msra.mxu0 %v1962
        %1968 = vmatpush.msra.mxu0 %v1961
        %1969 = vmatpush.msra.mxu0 %v1960
        %1970 = vmatpush.msra.mxu0 %v1959
        %1971 = vmatpush.msra.mxu0 %v1958
        %1972 = vmatpush.msra.mxu0 %v1957
        %1973 = vmatpush.msra.mxu0 %v1956
        %1974 = vmatpush.msra.mxu0 %v1955
        %1975 = vmatpush.msra.mxu0 %v1954
        %1976 = vmatpush.msra.mxu0 %v1953
        %1977 = vmatpush.msra.mxu0 %v1952
        %1978 = vmatpush.msra.mxu0 %v1951
        %1979 = vmatpush.msra.mxu0 %v1950
        %1980 = vmatpush.msra.mxu0 %v1949
        %1981 = vmatpush.msra.mxu0 %v1948
        %1982 = vmatpush.msra.mxu0 %v1947
        %1983 = vmatmul.f32.gmra.mxu0 %v1945
        %v1984 = vpop.f32.mrf.mxu0
        %v1985 = vadd.f32 %v1965, %v1984
        %1986 = vmatmul.f32.gmra.mxu0 %v1946
        %v1987 = vpop.f32.mrf.mxu0
        %v1988 = vadd.f32 %v1965, %v1987
        %1989 = vdwg.mxu0
        %v1990 = vadd.f32 %v1792, %v1985
        %v1991 = vadd.f32 %v1793, %v1988
        %v1992 = vld [vmem:[%s31] sm:$0x1]
        %v1993 = vld [vmem:[%s33] sm:$0x1]
        %1994 = vadd.xlane.f32.xlu0 %v1990
        %v1995 = vpop.xlane.xlu0 %1994
        %1996 = vadd.xlane.f32.xlu0 %v1991
        %v1997 = vpop.xlane.xlu0 %1996
        %v1998 = vmul.f32 %v1995, %v1012
        %v1999 = vmul.f32 %v1997, %v1012
        %v2000 = vsub.f32 %v1990, %v1998
        %v2001 = vsub.f32 %v1991, %v1999
        %v2002 = vmul.f32 %v2000, %v2000
        %v2003 = vmul.f32 %v2001, %v2001
        %2004 = vadd.xlane.f32.xlu0 %v2002
        %v2005 = vpop.xlane.xlu0 %2004
        %2006 = vadd.xlane.f32.xlu0 %v2003
        %v2007 = vpop.xlane.xlu0 %2006
        %v2008 = vmul.f32 %v2005, %v1012
        %v2009 = vmul.f32 %v2007, %v1012
        %v2010 = vadd.f32 %v2008, 1e-05
        %v2011 = vadd.f32 %v2009, 1e-05
        %v2012 = vrsqrt.pop %v2010
        %v2013 = vmul.f32 %v2012, %v2010
        %v2014 = vmul.f32 %v2013, %v2012
        %v2015 = vmul.f32 0.5, %v2014
        %v2016 = vsub.f32 1.5, %v2015
        %v2017 = vmul.f32 %v2012, %v2016
        %vm2018 = vweird.f32 %v2010
        %vm2019 = vweird.f32 %v2012
        %vm2020 = vmor %vm2018, %vm2019
        %v2021 = vsel %vm2020, %v2012, %v2017
        %v2022 = vrsqrt.pop %v2011
        %v2023 = vmul.f32 %v2022, %v2011
        %v2024 = vmul.f32 %v2023, %v2022
        %v2025 = vmul.f32 0.5, %v2024
        %v2026 = vsub.f32 1.5, %v2025
        %v2027 = vmul.f32 %v2022, %v2026
        %vm2028 = vweird.f32 %v2011
        %vm2029 = vweird.f32 %v2022
        %vm2030 = vmor %vm2028, %vm2029
        %v2031 = vsel %vm2030, %v2022, %v2027
        %v2032 = vmul.f32 %v2000, %v2021
        %v2033 = vmul.f32 %v2001, %v2031
        %v2035 = vperm.slane %v1992, 0
        %v2037 = vmul.f32 %v2032, %v2035
        %v2038 = vmul.f32 %v2033, %v2035
        %v2040 = vperm.slane %v1993, 0
        %v2042 = vadd.f32 %v2037, %v2040
        %v2043 = vadd.f32 %v2038, %v2040
        %2044 = vxpose.xlu0.b32.start [1/16] %v2042, 128
        %2045 = vxpose.xlu0.b32.cont [2/16] %v2043, 128
        %2046 = vxpose.xlu0.b32.cont [3/16] 0.0, 128
        %2047 = vxpose.xlu0.b32.cont [4/16] 0.0, 128
        %2048 = vxpose.xlu0.b32.cont [5/16] 0.0, 128
        %2049 = vxpose.xlu0.b32.cont [6/16] 0.0, 128
        %2050 = vxpose.xlu0.b32.cont [7/16] 0.0, 128
        %2051 = vxpose.xlu0.b32.cont [8/16] 0.0, 128
        %2052 = vxpose.xlu0.b32.cont [9/16] 0.0, 128
        %2053 = vxpose.xlu0.b32.cont [10/16] 0.0, 128
        %2054 = vxpose.xlu0.b32.cont [11/16] 0.0, 128
        %2055 = vxpose.xlu0.b32.cont [12/16] 0.0, 128
        %2056 = vxpose.xlu0.b32.cont [13/16] 0.0, 128
        %2057 = vxpose.xlu0.b32.cont [14/16] 0.0, 128
        %2058 = vxpose.xlu0.b32.cont [15/16] 0.0, 128
        %2059 = vxpose.xlu0.b32.end [16/16] 0.0, 128
        %v2060 = vpop.trf.xlu0
        %v2061 = vpop.trf.xlu0
        %v2062 = vpop.trf.xlu0
        %v2063 = vpop.trf.xlu0
        %v2064 = vpop.trf.xlu0
        %v2065 = vpop.trf.xlu0
        %v2066 = vpop.trf.xlu0
        %v2067 = vpop.trf.xlu0
        %v2068 = vpop.trf.xlu0
        %v2069 = vpop.trf.xlu0
        %v2070 = vpop.trf.xlu0
        %v2071 = vpop.trf.xlu0
        %v2072 = vpop.trf.xlu0
        %v2073 = vpop.trf.xlu0
        %v2074 = vpop.trf.xlu0
        %v2075 = vpop.trf.xlu0
        %v2076 = vld [vmem:[%s35] sm:$0xff]
        %v2077 = vld [vmem:[%s35 + $0x8] sm:$0xff]
        %v2078 = vld [vmem:[%s37] sm:$0x1]
        %v2080 = vperm.slane %v2078, 0
        %v2083 = vsel %vm1097, %v2060, 0
        %v2086 = vsel %vm1097, %v2061, 0
        %v2089 = vsel %vm1097, %v2062, 0
        %v2092 = vsel %vm1097, %v2063, 0
        %v2095 = vsel %vm1097, %v2064, 0
        %v2098 = vsel %vm1097, %v2065, 0
        %v2101 = vsel %vm1097, %v2066, 0
        %v2104 = vsel %vm1097, %v2067, 0
        %v2107 = vsel %vm1097, %v2068, 0
        %v2110 = vsel %vm1097, %v2069, 0
        %v2113 = vsel %vm1097, %v2070, 0
        %v2116 = vsel %vm1097, %v2071, 0
        %v2119 = vsel %vm1097, %v2072, 0
        %v2122 = vsel %vm1097, %v2073, 0
        %v2125 = vsel %vm1097, %v2074, 0
        %v2128 = vsel %vm1097, %v2075, 0
        %2130 = vmatpush.msra.mxu0 0.0
        %2131 = vmatpush.msra.mxu0 0.0
        %2132 = vmatpush.msra.mxu0 0.0
        %2133 = vmatpush.msra.mxu0 0.0
        %2134 = vmatpush.msra.mxu0 0.0
        %2135 = vmatpush.msra.mxu0 0.0
        %2136 = vmatpush.msra.mxu0 0.0
        %2137 = vmatpush.msra.mxu0 0.0
        %2138 = vmatpush.msra.mxu0 0.0
        %2139 = vmatpush.msra.mxu0 0.0
        %2140 = vmatpush.msra.mxu0 0.0
        %2141 = vmatpush.msra.mxu0 0.0
        %2142 = vmatpush.msra.mxu0 0.0
        %2143 = vmatpush.msra.mxu0 0.0
        %2144 = vmatpush.msra.mxu0 %v2077
        %2145 = vmatpush.msra.mxu0 %v2076
        %2146 = vmatmul.f32.gmra.mxu0 %v2083
        %v2147 = vpop.f32.mrf.mxu0
        %v2148 = vadd.f32 %v2080, %v2147
        %2149 = vmatmul.f32.gmra.mxu0 %v2086
        %v2150 = vpop.f32.mrf.mxu0
        %v2151 = vadd.f32 %v2080, %v2150
        %2152 = vmatmul.f32.gmra.mxu0 %v2089
        %v2153 = vpop.f32.mrf.mxu0
        %v2154 = vadd.f32 %v2080, %v2153
        %2155 = vmatmul.f32.gmra.mxu0 %v2092
        %v2156 = vpop.f32.mrf.mxu0
        %v2157 = vadd.f32 %v2080, %v2156
        %2158 = vmatmul.f32.gmra.mxu0 %v2095
        %v2159 = vpop.f32.mrf.mxu0
        %v2160 = vadd.f32 %v2080, %v2159
        %2161 = vmatmul.f32.gmra.mxu0 %v2098
        %v2162 = vpop.f32.mrf.mxu0
        %v2163 = vadd.f32 %v2080, %v2162
        %2164 = vmatmul.f32.gmra.mxu0 %v2101
        %v2165 = vpop.f32.mrf.mxu0
        %v2166 = vadd.f32 %v2080, %v2165
        %2167 = vmatmul.f32.gmra.mxu0 %v2104
        %v2168 = vpop.f32.mrf.mxu0
        %v2169 = vadd.f32 %v2080, %v2168
        %2170 = vmatmul.f32.gmra.mxu0 %v2107
        %v2171 = vpop.f32.mrf.mxu0
        %v2172 = vadd.f32 %v2080, %v2171
        %2173 = vmatmul.f32.gmra.mxu0 %v2110
        %v2174 = vpop.f32.mrf.mxu0
        %v2175 = vadd.f32 %v2080, %v2174
        %2176 = vmatmul.f32.gmra.mxu0 %v2113
        %v2177 = vpop.f32.mrf.mxu0
        %v2178 = vadd.f32 %v2080, %v2177
        %2179 = vmatmul.f32.gmra.mxu0 %v2116
        %v2180 = vpop.f32.mrf.mxu0
        %v2181 = vadd.f32 %v2080, %v2180
        %2182 = vmatmul.f32.gmra.mxu0 %v2119
        %v2183 = vpop.f32.mrf.mxu0
        %v2184 = vadd.f32 %v2080, %v2183
        %2185 = vmatmul.f32.gmra.mxu0 %v2122
        %v2186 = vpop.f32.mrf.mxu0
        %v2187 = vadd.f32 %v2080, %v2186
        %2188 = vmatmul.f32.gmra.mxu0 %v2125
        %v2189 = vpop.f32.mrf.mxu0
        %v2190 = vadd.f32 %v2080, %v2189
        %2191 = vmatmul.f32.gmra.mxu0 %v2128
        %v2192 = vpop.f32.mrf.mxu0
        %v2193 = vadd.f32 %v2080, %v2192
        %2194 = vdwg.mxu0
        %v2195 = vand.u32 2147483647, %v2148
        %v2196 = vand.u32 2147483647, %v2151
        %v2197 = vand.u32 2147483647, %v2154
        %v2198 = vand.u32 2147483647, %v2157
        %v2199 = vand.u32 2147483647, %v2160
        %v2200 = vand.u32 2147483647, %v2163
        %v2201 = vand.u32 2147483647, %v2166
        %v2202 = vand.u32 2147483647, %v2169
        %v2203 = vand.u32 2147483647, %v2172
        %v2204 = vand.u32 2147483647, %v2175
        %v2205 = vand.u32 2147483647, %v2178
        %v2206 = vand.u32 2147483647, %v2181
        %v2207 = vand.u32 2147483647, %v2184
        %v2208 = vand.u32 2147483647, %v2187
        %v2209 = vand.u32 2147483647, %v2190
        %v2210 = vand.u32 2147483647, %v2193
        %v2211 = vmul.f32 %v2195, 0.70710677
        %v2212 = vmul.f32 %v2196, 0.70710677
        %v2213 = vmul.f32 %v2197, 0.70710677
        %v2214 = vmul.f32 %v2198, 0.70710677
        %v2215 = vmul.f32 %v2199, 0.70710677
        %v2216 = vmul.f32 %v2200, 0.70710677
        %v2217 = vmul.f32 %v2201, 0.70710677
        %v2218 = vmul.f32 %v2202, 0.70710677
        %v2219 = vmul.f32 %v2203, 0.70710677
        %v2220 = vmul.f32 %v2204, 0.70710677
        %v2221 = vmul.f32 %v2205, 0.70710677
        %v2222 = vmul.f32 %v2206, 0.70710677
        %v2223 = vmul.f32 %v2207, 0.70710677
        %v2224 = vmul.f32 %v2208, 0.70710677
        %v2225 = vmul.f32 %v2209, 0.70710677
        %v2226 = vmul.f32 %v2210, 0.70710677
        %v2227 = vmul.f32 %v2211, 0.3275911
        %v2228 = vmul.f32 %v2212, 0.3275911
        %v2229 = vmul.f32 %v2213, 0.3275911
        %v2230 = vmul.f32 %v2214, 0.3275911
        %v2231 = vmul.f32 %v2215, 0.3275911
        %v2232 = vmul.f32 %v2216, 0.3275911
        %v2233 = vmul.f32 %v2217, 0.3275911
        %v2234 = vmul.f32 %v2218, 0.3275911
        %v2235 = vmul.f32 %v2219, 0.3275911
        %v2236 = vmul.f32 %v2220, 0.3275911
        %v2237 = vmul.f32 %v2221, 0.3275911
        %v2238 = vmul.f32 %v2222, 0.3275911
        %v2239 = vmul.f32 %v2223, 0.3275911
        %v2240 = vmul.f32 %v2224, 0.3275911
        %v2241 = vmul.f32 %v2225, 0.3275911
        %v2242 = vmul.f32 %v2226, 0.3275911
        %v2243 = vadd.f32 %v2227, 1.0
        %v2244 = vadd.f32 %v2228, 1.0
        %v2245 = vadd.f32 %v2229, 1.0
        %v2246 = vadd.f32 %v2230, 1.0
        %v2247 = vadd.f32 %v2231, 1.0
        %v2248 = vadd.f32 %v2232, 1.0
        %v2249 = vadd.f32 %v2233, 1.0
        %v2250 = vadd.f32 %v2234, 1.0
        %v2251 = vadd.f32 %v2235, 1.0
        %v2252 = vadd.f32 %v2236, 1.0
        %v2253 = vadd.f32 %v2237, 1.0
        %v2254 = vadd.f32 %v2238, 1.0
        %v2255 = vadd.f32 %v2239, 1.0
        %v2256 = vadd.f32 %v2240, 1.0
        %v2257 = vadd.f32 %v2241, 1.0
        %v2258 = vadd.f32 %v2242, 1.0
        %v2259 = vrcp.pop %v2243
        %v2260 = vrcp.pop %v2244
        %v2261 = vrcp.pop %v2245
        %v2262 = vrcp.pop %v2246
        %v2263 = vrcp.pop %v2247
        %v2264 = vrcp.pop %v2248
        %v2265 = vrcp.pop %v2249
        %v2266 = vrcp.pop %v2250
        %v2267 = vrcp.pop %v2251
        %v2268 = vrcp.pop %v2252
        %v2269 = vrcp.pop %v2253
        %v2270 = vrcp.pop %v2254
        %v2271 = vrcp.pop %v2255
        %v2272 = vrcp.pop %v2256
        %v2273 = vrcp.pop %v2257
        %v2274 = vrcp.pop %v2258
        %v2275 = vmul.f32 %v2243, %v2259
        %v2276 = vmul.f32 %v2244, %v2260
        %v2277 = vmul.f32 %v2245, %v2261
        %v2278 = vmul.f32 %v2246, %v2262
        %v2279 = vmul.f32 %v2247, %v2263
        %v2280 = vmul.f32 %v2248, %v2264
        %v2281 = vmul.f32 %v2249, %v2265
        %v2282 = vmul.f32 %v2250, %v2266
        %v2283 = vmul.f32 %v2251, %v2267
        %v2284 = vmul.f32 %v2252, %v2268
        %v2285 = vmul.f32 %v2253, %v2269
        %v2286 = vmul.f32 %v2254, %v2270
        %v2287 = vmul.f32 %v2255, %v2271
        %v2288 = vmul.f32 %v2256, %v2272
        %v2289 = vmul.f32 %v2257, %v2273
        %v2290 = vmul.f32 %v2258, %v2274
        %v2291 = vsub.f32 2.0, %v2275
        %v2292 = vsub.f32 2.0, %v2276
        %v2293 = vsub.f32 2.0, %v2277
        %v2294 = vsub.f32 2.0, %v2278
        %v2295 = vsub.f32 2.0, %v2279
        %v2296 = vsub.f32 2.0, %v2280
        %v2297 = vsub.f32 2.0, %v2281
        %v2298 = vsub.f32 2.0, %v2282
        %v2299 = vsub.f32 2.0, %v2283
        %v2300 = vsub.f32 2.0, %v2284
        %v2301 = vsub.f32 2.0, %v2285
        %v2302 = vsub.f32 2.0, %v2286
        %v2303 = vsub.f32 2.0, %v2287
        %v2304 = vsub.f32 2.0, %v2288
        %v2305 = vsub.f32 2.0, %v2289
        %v2306 = vsub.f32 2.0, %v2290
        %v2307 = vmul.f32 %v2259, %v2291
        %v2308 = vmul.f32 %v2260, %v2292
        %v2309 = vmul.f32 %v2261, %v2293
        %v2310 = vmul.f32 %v2262, %v2294
        %v2311 = vmul.f32 %v2263, %v2295
        %v2312 = vmul.f32 %v2264, %v2296
        %v2313 = vmul.f32 %v2265, %v2297
        %v2314 = vmul.f32 %v2266, %v2298
        %v2315 = vmul.f32 %v2267, %v2299
        %v2316 = vmul.f32 %v2268, %v2300
        %v2317 = vmul.f32 %v2269, %v2301
        %v2318 = vmul.f32 %v2270, %v2302
        %v2319 = vmul.f32 %v2271, %v2303
        %v2320 = vmul.f32 %v2272, %v2304
        %v2321 = vmul.f32 %v2273, %v2305
        %v2322 = vmul.f32 %v2274, %v2306
        %v2323 = vmul.f32 %v2307, 1.0614054
        %v2324 = vmul.f32 %v2308, 1.0614054
        %v2325 = vmul.f32 %v2309, 1.0614054
        %v2326 = vmul.f32 %v2310, 1.0614054
        %v2327 = vmul.f32 %v2311, 1.0614054
        %v2328 = vmul.f32 %v2312, 1.0614054
        %v2329 = vmul.f32 %v2313, 1.0614054
        %v2330 = vmul.f32 %v2314, 1.0614054
        %v2331 = vmul.f32 %v2315, 1.0614054
        %v2332 = vmul.f32 %v2316, 1.0614054
        %v2333 = vmul.f32 %v2317, 1.0614054
        %v2334 = vmul.f32 %v2318, 1.0614054
        %v2335 = vmul.f32 %v2319, 1.0614054
        %v2336 = vmul.f32 %v2320, 1.0614054
        %v2337 = vmul.f32 %v2321, 1.0614054
        %v2338 = vmul.f32 %v2322, 1.0614054
        %v2339 = vadd.f32 %v2323, -1.4531521
        %v2340 = vadd.f32 %v2324, -1.4531521
        %v2341 = vadd.f32 %v2325, -1.4531521
        %v2342 = vadd.f32 %v2326, -1.4531521
        %v2343 = vadd.f32 %v2327, -1.4531521
        %v2344 = vadd.f32 %v2328, -1.4531521
        %v2345 = vadd.f32 %v2329, -1.4531521
        %v2346 = vadd.f32 %v2330, -1.4531521
        %v2347 = vadd.f32 %v2331, -1.4531521
        %v2348 = vadd.f32 %v2332, -1.4531521
        %v2349 = vadd.f32 %v2333, -1.4531521
        %v2350 = vadd.f32 %v2334, -1.4531521
        %v2351 = vadd.f32 %v2335, -1.4531521
        %v2352 = vadd.f32 %v2336, -1.4531521
        %v2353 = vadd.f32 %v2337, -1.4531521
        %v2354 = vadd.f32 %v2338, -1.4531521
        %v2355 = vmul.f32 %v2339, %v2307
        %v2356 = vmul.f32 %v2340, %v2308
        %v2357 = vmul.f32 %v2341, %v2309
        %v2358 = vmul.f32 %v2342, %v2310
        %v2359 = vmul.f32 %v2343, %v2311
        %v2360 = vmul.f32 %v2344, %v2312
        %v2361 = vmul.f32 %v2345, %v2313
        %v2362 = vmul.f32 %v2346, %v2314
        %v2363 = vmul.f32 %v2347, %v2315
        %v2364 = vmul.f32 %v2348, %v2316
        %v2365 = vmul.f32 %v2349, %v2317
        %v2366 = vmul.f32 %v2350, %v2318
        %v2367 = vmul.f32 %v2351, %v2319
        %v2368 = vmul.f32 %v2352, %v2320
        %v2369 = vmul.f32 %v2353, %v2321
        %v2370 = vmul.f32 %v2354, %v2322
        %v2371 = vadd.f32 %v2355, 1.4214138
        %v2372 = vadd.f32 %v2356, 1.4214138
        %v2373 = vadd.f32 %v2357, 1.4214138
        %v2374 = vadd.f32 %v2358, 1.4214138
        %v2375 = vadd.f32 %v2359, 1.4214138
        %v2376 = vadd.f32 %v2360, 1.4214138
        %v2377 = vadd.f32 %v2361, 1.4214138
        %v2378 = vadd.f32 %v2362, 1.4214138
        %v2379 = vadd.f32 %v2363, 1.4214138
        %v2380 = vadd.f32 %v2364, 1.4214138
        %v2381 = vadd.f32 %v2365, 1.4214138
        %v2382 = vadd.f32 %v2366, 1.4214138
        %v2383 = vadd.f32 %v2367, 1.4214138
        %v2384 = vadd.f32 %v2368, 1.4214138
        %v2385 = vadd.f32 %v2369, 1.4214138
        %v2386 = vadd.f32 %v2370, 1.4214138
        %v2387 = vmul.f32 %v2371, %v2307
        %v2388 = vmul.f32 %v2372, %v2308
        %v2389 = vmul.f32 %v2373, %v2309
        %v2390 = vmul.f32 %v2374, %v2310
        %v2391 = vmul.f32 %v2375, %v2311
        %v2392 = vmul.f32 %v2376, %v2312
        %v2393 = vmul.f32 %v2377, %v2313
        %v2394 = vmul.f32 %v2378, %v2314
        %v2395 = vmul.f32 %v2379, %v2315
        %v2396 = vmul.f32 %v2380, %v2316
        %v2397 = vmul.f32 %v2381, %v2317
        %v2398 = vmul.f32 %v2382, %v2318
        %v2399 = vmul.f32 %v2383, %v2319
        %v2400 = vmul.f32 %v2384, %v2320
        %v2401 = vmul.f32 %v2385, %v2321
        %v2402 = vmul.f32 %v2386, %v2322
        %v2403 = vadd.f32 %v2387, -0.28449672
        %v2404 = vadd.f32 %v2388, -0.28449672
        %v2405 = vadd.f32 %v2389, -0.28449672
        %v2406 = vadd.f32 %v2390, -0.28449672
        %v2407 = vadd.f32 %v2391, -0.28449672
        %v2408 = vadd.f32 %v2392, -0.28449672
        %v2409 = vadd.f32 %v2393, -0.28449672
        %v2410 = vadd.f32 %v2394, -0.28449672
        %v2411 = vadd.f32 %v2395, -0.28449672
        %v2412 = vadd.f32 %v2396, -0.28449672
        %v2413 = vadd.f32 %v2397, -0.28449672
        %v2414 = vadd.f32 %v2398, -0.28449672
        %v2415 = vadd.f32 %v2399, -0.28449672
        %v2416 = vadd.f32 %v2400, -0.28449672
        %v2417 = vadd.f32 %v2401, -0.28449672
        %v2418 = vadd.f32 %v2402, -0.28449672
        %v2419 = vmul.f32 %v2403, %v2307
        %v2420 = vmul.f32 %v2404, %v2308
        %v2421 = vmul.f32 %v2405, %v2309
        %v2422 = vmul.f32 %v2406, %v2310
        %v2423 = vmul.f32 %v2407, %v2311
        %v2424 = vmul.f32 %v2408, %v2312
        %v2425 = vmul.f32 %v2409, %v2313
        %v2426 = vmul.f32 %v2410, %v2314
        %v2427 = vmul.f32 %v2411, %v2315
        %v2428 = vmul.f32 %v2412, %v2316
        %v2429 = vmul.f32 %v2413, %v2317
        %v2430 = vmul.f32 %v2414, %v2318
        %v2431 = vmul.f32 %v2415, %v2319
        %v2432 = vmul.f32 %v2416, %v2320
        %v2433 = vmul.f32 %v2417, %v2321
        %v2434 = vmul.f32 %v2418, %v2322
        %v2435 = vadd.f32 %v2419, 0.2548296
        %v2436 = vadd.f32 %v2420, 0.2548296
        %v2437 = vadd.f32 %v2421, 0.2548296
        %v2438 = vadd.f32 %v2422, 0.2548296
        %v2439 = vadd.f32 %v2423, 0.2548296
        %v2440 = vadd.f32 %v2424, 0.2548296
        %v2441 = vadd.f32 %v2425, 0.2548296
        %v2442 = vadd.f32 %v2426, 0.2548296
        %v2443 = vadd.f32 %v2427, 0.2548296
        %v2444 = vadd.f32 %v2428, 0.2548296
        %v2445 = vadd.f32 %v2429, 0.2548296
        %v2446 = vadd.f32 %v2430, 0.2548296
        %v2447 = vadd.f32 %v2431, 0.2548296
        %v2448 = vadd.f32 %v2432, 0.2548296
        %v2449 = vadd.f32 %v2433, 0.2548296
        %v2450 = vadd.f32 %v2434, 0.2548296
        %v2451 = vmul.f32 %v2435, %v2307
        %v2452 = vmul.f32 %v2436, %v2308
        %v2453 = vmul.f32 %v2437, %v2309
        %v2454 = vmul.f32 %v2438, %v2310
        %v2455 = vmul.f32 %v2439, %v2311
        %v2456 = vmul.f32 %v2440, %v2312
        %v2457 = vmul.f32 %v2441, %v2313
        %v2458 = vmul.f32 %v2442, %v2314
        %v2459 = vmul.f32 %v2443, %v2315
        %v2460 = vmul.f32 %v2444, %v2316
        %v2461 = vmul.f32 %v2445, %v2317
        %v2462 = vmul.f32 %v2446, %v2318
        %v2463 = vmul.f32 %v2447, %v2319
        %v2464 = vmul.f32 %v2448, %v2320
        %v2465 = vmul.f32 %v2449, %v2321
        %v2466 = vmul.f32 %v2450, %v2322
        %v2467 = vsub.f32 0.0, %v2211
        %v2468 = vsub.f32 0.0, %v2212
        %v2469 = vsub.f32 0.0, %v2213
        %v2470 = vsub.f32 0.0, %v2214
        %v2471 = vsub.f32 0.0, %v2215
        %v2472 = vsub.f32 0.0, %v2216
        %v2473 = vsub.f32 0.0, %v2217
        %v2474 = vsub.f32 0.0, %v2218
        %v2475 = vsub.f32 0.0, %v2219
        %v2476 = vsub.f32 0.0, %v2220
        %v2477 = vsub.f32 0.0, %v2221
        %v2478 = vsub.f32 0.0, %v2222
        %v2479 = vsub.f32 0.0, %v2223
        %v2480 = vsub.f32 0.0, %v2224
        %v2481 = vsub.f32 0.0, %v2225
        %v2482 = vsub.f32 0.0, %v2226
        %v2483 = vmul.f32 %v2467, %v2211
        %v2484 = vmul.f32 %v2468, %v2212
        %v2485 = vmul.f32 %v2469, %v2213
        %v2486 = vmul.f32 %v2470, %v2214
        %v2487 = vmul.f32 %v2471, %v2215
        %v2488 = vmul.f32 %v2472, %v2216
        %v2489 = vmul.f32 %v2473, %v2217
        %v2490 = vmul.f32 %v2474, %v2218
        %v2491 = vmul.f32 %v2475, %v2219
        %v2492 = vmul.f32 %v2476, %v2220
        %v2493 = vmul.f32 %v2477, %v2221
        %v2494 = vmul.f32 %v2478, %v2222
        %v2495 = vmul.f32 %v2479, %v2223
        %v2496 = vmul.f32 %v2480, %v2224
        %v2497 = vmul.f32 %v2481, %v2225
        %v2498 = vmul.f32 %v2482, %v2226
        %v2499 = vmul.f32 %v2483, 1.442695
        %v2500 = vpow.pop %v2499
        %v2501 = vmul.f32 %v2484, 1.442695
        %v2502 = vpow.pop %v2501
        %v2503 = vmul.f32 %v2485, 1.442695
        %v2504 = vpow.pop %v2503
        %v2505 = vmul.f32 %v2486, 1.442695
        %v2506 = vpow.pop %v2505
        %v2507 = vmul.f32 %v2487, 1.442695
        %v2508 = vpow.pop %v2507
        %v2509 = vmul.f32 %v2488, 1.442695
        %v2510 = vpow.pop %v2509
        %v2511 = vmul.f32 %v2489, 1.442695
        %v2512 = vpow.pop %v2511
        %v2513 = vmul.f32 %v2490, 1.442695
        %v2514 = vpow.pop %v2513
        %v2515 = vmul.f32 %v2491, 1.442695
        %v2516 = vpow.pop %v2515
        %v2517 = vmul.f32 %v2492, 1.442695
        %v2518 = vpow.pop %v2517
        %v2519 = vmul.f32 %v2493, 1.442695
        %v2520 = vpow.pop %v2519
        %v2521 = vmul.f32 %v2494, 1.442695
        %v2522 = vpow.pop %v2521
        %v2523 = vmul.f32 %v2495, 1.442695
        %v2524 = vpow.pop %v2523
        %v2525 = vmul.f32 %v2496, 1.442695
        %v2526 = vpow.pop %v2525
        %v2527 = vmul.f32 %v2497, 1.442695
        %v2528 = vpow.pop %v2527
        %v2529 = vmul.f32 %v2498, 1.442695
        %v2530 = vpow.pop %v2529
        %v2531 = vmul.f32 %v2451, %v2500
        %v2532 = vmul.f32 %v2452, %v2502
        %v2533 = vmul.f32 %v2453, %v2504
        %v2534 = vmul.f32 %v2454, %v2506
        %v2535 = vmul.f32 %v2455, %v2508
        %v2536 = vmul.f32 %v2456, %v2510
        %v2537 = vmul.f32 %v2457, %v2512
        %v2538 = vmul.f32 %v2458, %v2514
        %v2539 = vmul.f32 %v2459, %v2516
        %v2540 = vmul.f32 %v2460, %v2518
        %v2541 = vmul.f32 %v2461, %v2520
        %v2542 = vmul.f32 %v2462, %v2522
        %v2543 = vmul.f32 %v2463, %v2524
        %v2544 = vmul.f32 %v2464, %v2526
        %v2545 = vmul.f32 %v2465, %v2528
        %v2546 = vmul.f32 %v2466, %v2530
        %v2547 = vsub.f32 1.0, %v2531
        %v2548 = vsub.f32 1.0, %v2532
        %v2549 = vsub.f32 1.0, %v2533
        %v2550 = vsub.f32 1.0, %v2534
        %v2551 = vsub.f32 1.0, %v2535
        %v2552 = vsub.f32 1.0, %v2536
        %v2553 = vsub.f32 1.0, %v2537
        %v2554 = vsub.f32 1.0, %v2538
        %v2555 = vsub.f32 1.0, %v2539
        %v2556 = vsub.f32 1.0, %v2540
        %v2557 = vsub.f32 1.0, %v2541
        %v2558 = vsub.f32 1.0, %v2542
        %v2559 = vsub.f32 1.0, %v2543
        %v2560 = vsub.f32 1.0, %v2544
        %v2561 = vsub.f32 1.0, %v2545
        %v2562 = vsub.f32 1.0, %v2546
        %vm2563 = vcmp.ge.f32.partialorder %v2148, 0.0
        %vm2564 = vcmp.ge.f32.partialorder %v2151, 0.0
        %vm2565 = vcmp.ge.f32.partialorder %v2154, 0.0
        %vm2566 = vcmp.ge.f32.partialorder %v2157, 0.0
        %vm2567 = vcmp.ge.f32.partialorder %v2160, 0.0
        %vm2568 = vcmp.ge.f32.partialorder %v2163, 0.0
        %vm2569 = vcmp.ge.f32.partialorder %v2166, 0.0
        %vm2570 = vcmp.ge.f32.partialorder %v2169, 0.0
        %vm2571 = vcmp.ge.f32.partialorder %v2172, 0.0
        %vm2572 = vcmp.ge.f32.partialorder %v2175, 0.0
        %vm2573 = vcmp.ge.f32.partialorder %v2178, 0.0
        %vm2574 = vcmp.ge.f32.partialorder %v2181, 0.0
        %vm2575 = vcmp.ge.f32.partialorder %v2184, 0.0
        %vm2576 = vcmp.ge.f32.partialorder %v2187, 0.0
        %vm2577 = vcmp.ge.f32.partialorder %v2190, 0.0
        %vm2578 = vcmp.ge.f32.partialorder %v2193, 0.0
        %v2579 = vsub.f32 0.0, %v2547
        %v2580 = vsub.f32 0.0, %v2548
        %v2581 = vsub.f32 0.0, %v2549
        %v2582 = vsub.f32 0.0, %v2550
        %v2583 = vsub.f32 0.0, %v2551
        %v2584 = vsub.f32 0.0, %v2552
        %v2585 = vsub.f32 0.0, %v2553
        %v2586 = vsub.f32 0.0, %v2554
        %v2587 = vsub.f32 0.0, %v2555
        %v2588 = vsub.f32 0.0, %v2556
        %v2589 = vsub.f32 0.0, %v2557
        %v2590 = vsub.f32 0.0, %v2558
        %v2591 = vsub.f32 0.0, %v2559
        %v2592 = vsub.f32 0.0, %v2560
        %v2593 = vsub.f32 0.0, %v2561
        %v2594 = vsub.f32 0.0, %v2562
        %v2595 = vsel %vm2563, %v2547, %v2579
        %v2596 = vsel %vm2564, %v2548, %v2580
        %v2597 = vsel %vm2565, %v2549, %v2581
        %v2598 = vsel %vm2566, %v2550, %v2582
        %v2599 = vsel %vm2567, %v2551, %v2583
        %v2600 = vsel %vm2568, %v2552, %v2584
        %v2601 = vsel %vm2569, %v2553, %v2585
        %v2602 = vsel %vm2570, %v2554, %v2586
        %v2603 = vsel %vm2571, %v2555, %v2587
        %v2604 = vsel %vm2572, %v2556, %v2588
        %v2605 = vsel %vm2573, %v2557, %v2589
        %v2606 = vsel %vm2574, %v2558, %v2590
        %v2607 = vsel %vm2575, %v2559, %v2591
        %v2608 = vsel %vm2576, %v2560, %v2592
        %v2609 = vsel %vm2577, %v2561, %v2593
        %v2610 = vsel %vm2578, %v2562, %v2594
        %v2611 = vadd.f32 %v2595, 1.0
        %v2612 = vadd.f32 %v2596, 1.0
        %v2613 = vadd.f32 %v2597, 1.0
        %v2614 = vadd.f32 %v2598, 1.0
        %v2615 = vadd.f32 %v2599, 1.0
        %v2616 = vadd.f32 %v2600, 1.0
        %v2617 = vadd.f32 %v2601, 1.0
        %v2618 = vadd.f32 %v2602, 1.0
        %v2619 = vadd.f32 %v2603, 1.0
        %v2620 = vadd.f32 %v2604, 1.0
        %v2621 = vadd.f32 %v2605, 1.0
        %v2622 = vadd.f32 %v2606, 1.0
        %v2623 = vadd.f32 %v2607, 1.0
        %v2624 = vadd.f32 %v2608, 1.0
        %v2625 = vadd.f32 %v2609, 1.0
        %v2626 = vadd.f32 %v2610, 1.0
        %v2627 = vmul.f32 %v2611, 0.5
        %v2628 = vmul.f32 %v2612, 0.5
        %v2629 = vmul.f32 %v2613, 0.5
        %v2630 = vmul.f32 %v2614, 0.5
        %v2631 = vmul.f32 %v2615, 0.5
        %v2632 = vmul.f32 %v2616, 0.5
        %v2633 = vmul.f32 %v2617, 0.5
        %v2634 = vmul.f32 %v2618, 0.5
        %v2635 = vmul.f32 %v2619, 0.5
        %v2636 = vmul.f32 %v2620, 0.5
        %v2637 = vmul.f32 %v2621, 0.5
        %v2638 = vmul.f32 %v2622, 0.5
        %v2639 = vmul.f32 %v2623, 0.5
        %v2640 = vmul.f32 %v2624, 0.5
        %v2641 = vmul.f32 %v2625, 0.5
        %v2642 = vmul.f32 %v2626, 0.5
        %v2643 = vmul.f32 %v2148, %v2627
        %v2644 = vmul.f32 %v2151, %v2628
        %v2645 = vmul.f32 %v2154, %v2629
        %v2646 = vmul.f32 %v2157, %v2630
        %v2647 = vmul.f32 %v2160, %v2631
        %v2648 = vmul.f32 %v2163, %v2632
        %v2649 = vmul.f32 %v2166, %v2633
        %v2650 = vmul.f32 %v2169, %v2634
        %v2651 = vmul.f32 %v2172, %v2635
        %v2652 = vmul.f32 %v2175, %v2636
        %v2653 = vmul.f32 %v2178, %v2637
        %v2654 = vmul.f32 %v2181, %v2638
        %v2655 = vmul.f32 %v2184, %v2639
        %v2656 = vmul.f32 %v2187, %v2640
        %v2657 = vmul.f32 %v2190, %v2641
        %v2658 = vmul.f32 %v2193, %v2642
        %v2659 = vld [vmem:[%s39] sm:$0xff]
        %v2660 = vld [vmem:[%s39 + $0x8] sm:$0xff]
        %v2661 = vld [vmem:[%s39 + $0x10] sm:$0xff]
        %v2662 = vld [vmem:[%s39 + $0x18] sm:$0xff]
        %v2663 = vld [vmem:[%s39 + $0x20] sm:$0xff]
        %v2664 = vld [vmem:[%s39 + $0x28] sm:$0xff]
        %v2665 = vld [vmem:[%s39 + $0x30] sm:$0xff]
        %v2666 = vld [vmem:[%s39 + $0x38] sm:$0xff]
        %v2667 = vld [vmem:[%s39 + $0x40] sm:$0xff]
        %v2668 = vld [vmem:[%s39 + $0x48] sm:$0xff]
        %v2669 = vld [vmem:[%s39 + $0x50] sm:$0xff]
        %v2670 = vld [vmem:[%s39 + $0x58] sm:$0xff]
        %v2671 = vld [vmem:[%s39 + $0x60] sm:$0xff]
        %v2672 = vld [vmem:[%s39 + $0x68] sm:$0xff]
        %v2673 = vld [vmem:[%s39 + $0x70] sm:$0xff]
        %v2674 = vld [vmem:[%s39 + $0x78] sm:$0xff]
        %v2675 = vld [vmem:[%s41] sm:$0x1]
        %v2677 = vperm.slane %v2675, 0
        %2679 = vmatpush.msra.mxu0 %v2674
        %2680 = vmatpush.msra.mxu0 %v2673
        %2681 = vmatpush.msra.mxu0 %v2672
        %2682 = vmatpush.msra.mxu0 %v2671
        %2683 = vmatpush.msra.mxu0 %v2670
        %2684 = vmatpush.msra.mxu0 %v2669
        %2685 = vmatpush.msra.mxu0 %v2668
        %2686 = vmatpush.msra.mxu0 %v2667
        %2687 = vmatpush.msra.mxu0 %v2666
        %2688 = vmatpush.msra.mxu0 %v2665
        %2689 = vmatpush.msra.mxu0 %v2664
        %2690 = vmatpush.msra.mxu0 %v2663
        %2691 = vmatpush.msra.mxu0 %v2662
        %2692 = vmatpush.msra.mxu0 %v2661
        %2693 = vmatpush.msra.mxu0 %v2660
        %2694 = vmatpush.msra.mxu0 %v2659
        %2695 = vmatmul.f32.gmra.mxu0 %v2643
        %v2696 = vpop.f32.mrf.mxu0
        %v2697 = vadd.f32 %v2677, %v2696
        %2698 = vmatmul.f32.gmra.mxu0 %v2644
        %v2699 = vpop.f32.mrf.mxu0
        %v2700 = vadd.f32 %v2677, %v2699
        %2701 = vmatmul.f32.gmra.mxu0 %v2645
        %v2702 = vpop.f32.mrf.mxu0
        %v2703 = vadd.f32 %v2677, %v2702
        %2704 = vmatmul.f32.gmra.mxu0 %v2646
        %v2705 = vpop.f32.mrf.mxu0
        %v2706 = vadd.f32 %v2677, %v2705
        %2707 = vmatmul.f32.gmra.mxu0 %v2647
        %v2708 = vpop.f32.mrf.mxu0
        %v2709 = vadd.f32 %v2677, %v2708
        %2710 = vmatmul.f32.gmra.mxu0 %v2648
        %v2711 = vpop.f32.mrf.mxu0
        %v2712 = vadd.f32 %v2677, %v2711
        %2713 = vmatmul.f32.gmra.mxu0 %v2649
        %v2714 = vpop.f32.mrf.mxu0
        %v2715 = vadd.f32 %v2677, %v2714
        %2716 = vmatmul.f32.gmra.mxu0 %v2650
        %v2717 = vpop.f32.mrf.mxu0
        %v2718 = vadd.f32 %v2677, %v2717
        %2719 = vmatmul.f32.gmra.mxu0 %v2651
        %v2720 = vpop.f32.mrf.mxu0
        %v2721 = vadd.f32 %v2677, %v2720
        %2722 = vmatmul.f32.gmra.mxu0 %v2652
        %v2723 = vpop.f32.mrf.mxu0
        %v2724 = vadd.f32 %v2677, %v2723
        %2725 = vmatmul.f32.gmra.mxu0 %v2653
        %v2726 = vpop.f32.mrf.mxu0
        %v2727 = vadd.f32 %v2677, %v2726
        %2728 = vmatmul.f32.gmra.mxu0 %v2654
        %v2729 = vpop.f32.mrf.mxu0
        %v2730 = vadd.f32 %v2677, %v2729
        %2731 = vmatmul.f32.gmra.mxu0 %v2655
        %v2732 = vpop.f32.mrf.mxu0
        %v2733 = vadd.f32 %v2677, %v2732
        %2734 = vmatmul.f32.gmra.mxu0 %v2656
        %v2735 = vpop.f32.mrf.mxu0
        %v2736 = vadd.f32 %v2677, %v2735
        %2737 = vmatmul.f32.gmra.mxu0 %v2657
        %v2738 = vpop.f32.mrf.mxu0
        %v2739 = vadd.f32 %v2677, %v2738
        %2740 = vmatmul.f32.gmra.mxu0 %v2658
        %v2741 = vpop.f32.mrf.mxu0
        %v2742 = vadd.f32 %v2677, %v2741
        %2743 = vdwg.mxu0
        %2744 = vxpose.xlu0.b32.start [1/16] %v2697, 128
        %2745 = vxpose.xlu0.b32.cont [2/16] %v2700, 128
        %2746 = vxpose.xlu0.b32.cont [3/16] %v2703, 128
        %2747 = vxpose.xlu0.b32.cont [4/16] %v2706, 128
        %2748 = vxpose.xlu0.b32.cont [5/16] %v2709, 128
        %2749 = vxpose.xlu0.b32.cont [6/16] %v2712, 128
        %2750 = vxpose.xlu0.b32.cont [7/16] %v2715, 128
        %2751 = vxpose.xlu0.b32.cont [8/16] %v2718, 128
        %2752 = vxpose.xlu0.b32.cont [9/16] %v2721, 128
        %2753 = vxpose.xlu0.b32.cont [10/16] %v2724, 128
        %2754 = vxpose.xlu0.b32.cont [11/16] %v2727, 128
        %2755 = vxpose.xlu0.b32.cont [12/16] %v2730, 128
        %2756 = vxpose.xlu0.b32.cont [13/16] %v2733, 128
        %2757 = vxpose.xlu0.b32.cont [14/16] %v2736, 128
        %2758 = vxpose.xlu0.b32.cont [15/16] %v2739, 128
        %2759 = vxpose.xlu0.b32.end [16/16] %v2742, 128
        %v2760 = vpop.trf.xlu0
        %v2761 = vpop.trf.xlu0
        %v2762 = vpop.trf.xlu0
        %v2763 = vpop.trf.xlu0
        %v2764 = vpop.trf.xlu0
        %v2765 = vpop.trf.xlu0
        %v2766 = vpop.trf.xlu0
        %v2767 = vpop.trf.xlu0
        %v2768 = vpop.trf.xlu0
        %v2769 = vpop.trf.xlu0
        %v2770 = vpop.trf.xlu0
        %v2771 = vpop.trf.xlu0
        %v2772 = vpop.trf.xlu0
        %v2773 = vpop.trf.xlu0
        %v2774 = vpop.trf.xlu0
        %v2775 = vpop.trf.xlu0
        %v2776 = vadd.f32 %v1990, %v2760
        %v2777 = vadd.f32 %v1991, %v2761
        %v2778 = vld [vmem:[%s43] sm:$0x1]
        %v2779 = vld [vmem:[%s45] sm:$0x1]
        %2780 = vadd.xlane.f32.xlu0 %v2776
        %v2781 = vpop.xlane.xlu0 %2780
        %2782 = vadd.xlane.f32.xlu0 %v2777
        %v2783 = vpop.xlane.xlu0 %2782
        %v2784 = vmul.f32 %v2781, %v1012
        %v2785 = vmul.f32 %v2783, %v1012
        %v2786 = vsub.f32 %v2776, %v2784
        %v2787 = vsub.f32 %v2777, %v2785
        %v2788 = vmul.f32 %v2786, %v2786
        %v2789 = vmul.f32 %v2787, %v2787
        %2790 = vadd.xlane.f32.xlu0 %v2788
        %v2791 = vpop.xlane.xlu0 %2790
        %2792 = vadd.xlane.f32.xlu0 %v2789
        %v2793 = vpop.xlane.xlu0 %2792
        %v2794 = vmul.f32 %v2791, %v1012
        %v2795 = vmul.f32 %v2793, %v1012
        %v2796 = vadd.f32 %v2794, 1e-05
        %v2797 = vadd.f32 %v2795, 1e-05
        %v2798 = vrsqrt.pop %v2796
        %v2799 = vmul.f32 %v2798, %v2796
        %v2800 = vmul.f32 %v2799, %v2798
        %v2801 = vmul.f32 0.5, %v2800
        %v2802 = vsub.f32 1.5, %v2801
        %v2803 = vmul.f32 %v2798, %v2802
        %vm2804 = vweird.f32 %v2796
        %vm2805 = vweird.f32 %v2798
        %vm2806 = vmor %vm2804, %vm2805
        %v2807 = vsel %vm2806, %v2798, %v2803
        %v2808 = vrsqrt.pop %v2797
        %v2809 = vmul.f32 %v2808, %v2797
        %v2810 = vmul.f32 %v2809, %v2808
        %v2811 = vmul.f32 0.5, %v2810
        %v2812 = vsub.f32 1.5, %v2811
        %v2813 = vmul.f32 %v2808, %v2812
        %vm2814 = vweird.f32 %v2797
        %vm2815 = vweird.f32 %v2808
        %vm2816 = vmor %vm2814, %vm2815
        %v2817 = vsel %vm2816, %v2808, %v2813
        %v2818 = vmul.f32 %v2786, %v2807
        %v2819 = vmul.f32 %v2787, %v2817
        %v2821 = vperm.slane %v2778, 0
        %v2823 = vmul.f32 %v2818, %v2821
        %v2824 = vmul.f32 %v2819, %v2821
        %v2826 = vperm.slane %v2779, 0
        %v2828 = vadd.f32 %v2823, %v2826
        %v2829 = vadd.f32 %v2824, %v2826
        %v2830 = vld [vmem:[%s47] sm:$0xff]
        %v2831 = vld [vmem:[%s47 + $0x8] sm:$0xff]
        %v2832 = vld [vmem:[%s47 + $0x10] sm:$0xff]
        %v2833 = vld [vmem:[%s47 + $0x18] sm:$0xff]
        %v2834 = vld [vmem:[%s47 + $0x20] sm:$0xff]
        %v2835 = vld [vmem:[%s47 + $0x28] sm:$0xff]
        %v2836 = vld [vmem:[%s47 + $0x30] sm:$0xff]
        %v2837 = vld [vmem:[%s47 + $0x38] sm:$0xff]
        %v2838 = vld [vmem:[%s47 + $0x40] sm:$0xff]
        %v2839 = vld [vmem:[%s47 + $0x48] sm:$0xff]
        %v2840 = vld [vmem:[%s47 + $0x50] sm:$0xff]
        %v2841 = vld [vmem:[%s47 + $0x58] sm:$0xff]
        %v2842 = vld [vmem:[%s47 + $0x60] sm:$0xff]
        %v2843 = vld [vmem:[%s47 + $0x68] sm:$0xff]
        %v2844 = vld [vmem:[%s47 + $0x70] sm:$0xff]
        %v2845 = vld [vmem:[%s47 + $0x78] sm:$0xff]
        %v2846 = vld [vmem:[%s49] sm:$0x1]
        %v2848 = vperm.slane %v2846, 0
        %2850 = vmatpush.msra.mxu0 %v2845
        %2851 = vmatpush.msra.mxu0 %v2844
        %2852 = vmatpush.msra.mxu0 %v2843
        %2853 = vmatpush.msra.mxu0 %v2842
        %2854 = vmatpush.msra.mxu0 %v2841
        %2855 = vmatpush.msra.mxu0 %v2840
        %2856 = vmatpush.msra.mxu0 %v2839
        %2857 = vmatpush.msra.mxu0 %v2838
        %2858 = vmatpush.msra.mxu0 %v2837
        %2859 = vmatpush.msra.mxu0 %v2836
        %2860 = vmatpush.msra.mxu0 %v2835
        %2861 = vmatpush.msra.mxu0 %v2834
        %2862 = vmatpush.msra.mxu0 %v2833
        %2863 = vmatpush.msra.mxu0 %v2832
        %2864 = vmatpush.msra.mxu0 %v2831
        %2865 = vmatpush.msra.mxu0 %v2830
        %2866 = vmatmul.f32.gmra.mxu0 %v2828
        %v2867 = vpop.f32.mrf.mxu0
        %v2868 = vadd.f32 %v2848, %v2867
        %2869 = vmatmul.f32.gmra.mxu0 %v2829
        %v2870 = vpop.f32.mrf.mxu0
        %v2871 = vadd.f32 %v2848, %v2870
        %2872 = vdwg.mxu0
        %v2873 = vand.u32 2147483647, %v2868
        %v2874 = vand.u32 2147483647, %v2871
        %v2875 = vmul.f32 %v2873, 0.70710677
        %v2876 = vmul.f32 %v2874, 0.70710677
        %v2877 = vmul.f32 %v2875, 0.3275911
        %v2878 = vmul.f32 %v2876, 0.3275911
        %v2879 = vadd.f32 %v2877, 1.0
        %v2880 = vadd.f32 %v2878, 1.0
        %v2881 = vrcp.pop %v2879
        %v2882 = vrcp.pop %v2880
        %v2883 = vmul.f32 %v2879, %v2881
        %v2884 = vmul.f32 %v2880, %v2882
        %v2885 = vsub.f32 2.0, %v2883
        %v2886 = vsub.f32 2.0, %v2884
        %v2887 = vmul.f32 %v2881, %v2885
        %v2888 = vmul.f32 %v2882, %v2886
        %v2889 = vmul.f32 %v2887, 1.0614054
        %v2890 = vmul.f32 %v2888, 1.0614054
        %v2891 = vadd.f32 %v2889, -1.4531521
        %v2892 = vadd.f32 %v2890, -1.4531521
        %v2893 = vmul.f32 %v2891, %v2887
        %v2894 = vmul.f32 %v2892, %v2888
        %v2895 = vadd.f32 %v2893, 1.4214138
        %v2896 = vadd.f32 %v2894, 1.4214138
        %v2897 = vmul.f32 %v2895, %v2887
        %v2898 = vmul.f32 %v2896, %v2888
        %v2899 = vadd.f32 %v2897, -0.28449672
        %v2900 = vadd.f32 %v2898, -0.28449672
        %v2901 = vmul.f32 %v2899, %v2887
        %v2902 = vmul.f32 %v2900, %v2888
        %v2903 = vadd.f32 %v2901, 0.2548296
        %v2904 = vadd.f32 %v2902, 0.2548296
        %v2905 = vmul.f32 %v2903, %v2887
        %v2906 = vmul.f32 %v2904, %v2888
        %v2907 = vsub.f32 0.0, %v2875
        %v2908 = vsub.f32 0.0, %v2876
        %v2909 = vmul.f32 %v2907, %v2875
        %v2910 = vmul.f32 %v2908, %v2876
        %v2911 = vmul.f32 %v2909, 1.442695
        %v2912 = vpow.pop %v2911
        %v2913 = vmul.f32 %v2910, 1.442695
        %v2914 = vpow.pop %v2913
        %v2915 = vmul.f32 %v2905, %v2912
        %v2916 = vmul.f32 %v2906, %v2914
        %v2917 = vsub.f32 1.0, %v2915
        %v2918 = vsub.f32 1.0, %v2916
        %vm2919 = vcmp.ge.f32.partialorder %v2868, 0.0
        %vm2920 = vcmp.ge.f32.partialorder %v2871, 0.0
        %v2921 = vsub.f32 0.0, %v2917
        %v2922 = vsub.f32 0.0, %v2918
        %v2923 = vsel %vm2919, %v2917, %v2921
        %v2924 = vsel %vm2920, %v2918, %v2922
        %v2925 = vadd.f32 %v2923, 1.0
        %v2926 = vadd.f32 %v2924, 1.0
        %v2927 = vmul.f32 %v2925, 0.5
        %v2928 = vmul.f32 %v2926, 0.5
        %v2929 = vmul.f32 %v2868, %v2927
        %v2930 = vmul.f32 %v2871, %v2928
        %v2931 = vld [vmem:[%s51] sm:$0xff]
        %v2932 = vld [vmem:[%s51 + $0x8] sm:$0xff]
        %v2933 = vld [vmem:[%s51 + $0x10] sm:$0xff]
        %v2934 = vld [vmem:[%s51 + $0x18] sm:$0xff]
        %v2935 = vld [vmem:[%s51 + $0x20] sm:$0xff]
        %v2936 = vld [vmem:[%s51 + $0x28] sm:$0xff]
        %v2937 = vld [vmem:[%s51 + $0x30] sm:$0xff]
        %v2938 = vld [vmem:[%s51 + $0x38] sm:$0xff]
        %v2939 = vld [vmem:[%s51 + $0x40] sm:$0xff]
        %v2940 = vld [vmem:[%s51 + $0x48] sm:$0xff]
        %v2941 = vld [vmem:[%s51 + $0x50] sm:$0xff]
        %v2942 = vld [vmem:[%s51 + $0x58] sm:$0xff]
        %v2943 = vld [vmem:[%s51 + $0x60] sm:$0xff]
        %v2944 = vld [vmem:[%s51 + $0x68] sm:$0xff]
        %v2945 = vld [vmem:[%s51 + $0x70] sm:$0xff]
        %v2946 = vld [vmem:[%s51 + $0x78] sm:$0xff]
        %v2947 = vld [vmem:[%s53] sm:$0x1]
        %v2949 = vperm.slane %v2947, 0
        %2951 = vmatpush.msra.mxu0 %v2946
        %2952 = vmatpush.msra.mxu0 %v2945
        %2953 = vmatpush.msra.mxu0 %v2944
        %2954 = vmatpush.msra.mxu0 %v2943
        %2955 = vmatpush.msra.mxu0 %v2942
        %2956 = vmatpush.msra.mxu0 %v2941
        %2957 = vmatpush.msra.mxu0 %v2940
        %2958 = vmatpush.msra.mxu0 %v2939
        %2959 = vmatpush.msra.mxu0 %v2938
        %2960 = vmatpush.msra.mxu0 %v2937
        %2961 = vmatpush.msra.mxu0 %v2936
        %2962 = vmatpush.msra.mxu0 %v2935
        %2963 = vmatpush.msra.mxu0 %v2934
        %2964 = vmatpush.msra.mxu0 %v2933
        %2965 = vmatpush.msra.mxu0 %v2932
        %2966 = vmatpush.msra.mxu0 %v2931
        %2967 = vmatmul.f32.gmra.mxu0 %v2929
        %v2968 = vpop.f32.mrf.mxu0
        %v2969 = vadd.f32 %v2949, %v2968
        %2970 = vmatmul.f32.gmra.mxu0 %v2930
        %v2971 = vpop.f32.mrf.mxu0
        %v2972 = vadd.f32 %v2949, %v2971
        %2973 = vdwg.mxu0
        %v2974 = vadd.f32 %v2776, %v2969
        %v2975 = vadd.f32 %v2777, %v2972
        %v2976 = vld [vmem:[%s55] sm:$0x1]
        %v2977 = vld [vmem:[%s57] sm:$0x1]
        %2978 = vadd.xlane.f32.xlu0 %v2974
        %v2979 = vpop.xlane.xlu0 %2978
        %2980 = vadd.xlane.f32.xlu0 %v2975
        %v2981 = vpop.xlane.xlu0 %2980
        %v2982 = vmul.f32 %v2979, %v1012
        %v2983 = vmul.f32 %v2981, %v1012
        %v2984 = vsub.f32 %v2974, %v2982
        %v2985 = vsub.f32 %v2975, %v2983
        %v2986 = vmul.f32 %v2984, %v2984
        %v2987 = vmul.f32 %v2985, %v2985
        %2988 = vadd.xlane.f32.xlu0 %v2986
        %v2989 = vpop.xlane.xlu0 %2988
        %2990 = vadd.xlane.f32.xlu0 %v2987
        %v2991 = vpop.xlane.xlu0 %2990
        %v2992 = vmul.f32 %v2989, %v1012
        %v2993 = vmul.f32 %v2991, %v1012
        %v2994 = vadd.f32 %v2992, 1e-05
        %v2995 = vadd.f32 %v2993, 1e-05
        %v2996 = vrsqrt.pop %v2994
        %v2997 = vmul.f32 %v2996, %v2994
        %v2998 = vmul.f32 %v2997, %v2996
        %v2999 = vmul.f32 0.5, %v2998
        %v3000 = vsub.f32 1.5, %v2999
        %v3001 = vmul.f32 %v2996, %v3000
        %vm3002 = vweird.f32 %v2994
        %vm3003 = vweird.f32 %v2996
        %vm3004 = vmor %vm3002, %vm3003
        %v3005 = vsel %vm3004, %v2996, %v3001
        %v3006 = vrsqrt.pop %v2995
        %v3007 = vmul.f32 %v3006, %v2995
        %v3008 = vmul.f32 %v3007, %v3006
        %v3009 = vmul.f32 0.5, %v3008
        %v3010 = vsub.f32 1.5, %v3009
        %v3011 = vmul.f32 %v3006, %v3010
        %vm3012 = vweird.f32 %v2995
        %vm3013 = vweird.f32 %v3006
        %vm3014 = vmor %vm3012, %vm3013
        %v3015 = vsel %vm3014, %v3006, %v3011
        %v3016 = vmul.f32 %v2984, %v3005
        %v3017 = vmul.f32 %v2985, %v3015
        %v3019 = vperm.slane %v2976, 0
        %v3021 = vmul.f32 %v3016, %v3019
        %v3022 = vmul.f32 %v3017, %v3019
        %v3024 = vperm.slane %v2977, 0
        %v3026 = vadd.f32 %v3021, %v3024
        %v3027 = vadd.f32 %v3022, %v3024
        %v3028 = vadd.f32 %v3026, %v3027
        %v3029 = vrot.slane %v3028, 4
        %v3030 = vadd.f32 %v3028, %v3029
        %v3031 = vrot.slane %v3030, 2
        %v3032 = vadd.f32 %v3030, %v3031
        %v3033 = vrot.slane %v3032, 1
        %v3034 = vadd.f32 %v3032, %v3033
        %v3035 = vrcp.pop 16.0
        %v3036 = vmul.f32 16.0, %v3035
        %v3037 = vsub.f32 1.0, %v3036
        %v3038 = vmul.f32 %v3035, %v3037
        %v3039 = vadd.f32 %v3035, %v3038
        %vm3040 = vweird.f32 %v3035
        %v3041 = vsel %vm3040, %v3035, %v3039
        %v3042 = vmul.f32 %v3034, %v3041
        %v3043 = vld [vmem:[%s59] sm:$0xff]
        %v3044 = vld [vmem:[%s59 + $0x8] sm:$0xff]
        %v3045 = vld [vmem:[%s59 + $0x10] sm:$0xff]
        %v3046 = vld [vmem:[%s59 + $0x18] sm:$0xff]
        %v3047 = vld [vmem:[%s59 + $0x20] sm:$0xff]
        %v3048 = vld [vmem:[%s59 + $0x28] sm:$0xff]
        %v3049 = vld [vmem:[%s59 + $0x30] sm:$0xff]
        %v3050 = vld [vmem:[%s59 + $0x38] sm:$0xff]
        %v3051 = vld [vmem:[%s59 + $0x40] sm:$0xff]
        %v3052 = vld [vmem:[%s59 + $0x48] sm:$0xff]
        %v3053 = vld [vmem:[%s59 + $0x50] sm:$0xff]
        %v3054 = vld [vmem:[%s59 + $0x58] sm:$0xff]
        %v3055 = vld [vmem:[%s59 + $0x60] sm:$0xff]
        %v3056 = vld [vmem:[%s59 + $0x68] sm:$0xff]
        %v3057 = vld [vmem:[%s59 + $0x70] sm:$0xff]
        %v3058 = vld [vmem:[%s59 + $0x78] sm:$0xff]
        %v3059 = vld [vmem:[%s61] sm:$0x1]
        %3060 = vmatpush.msra.mxu0 %v3058
        %3061 = vmatpush.msra.mxu0 %v3057
        %3062 = vmatpush.msra.mxu0 %v3056
        %3063 = vmatpush.msra.mxu0 %v3055
        %3064 = vmatpush.msra.mxu0 %v3054
        %3065 = vmatpush.msra.mxu0 %v3053
        %3066 = vmatpush.msra.mxu0 %v3052
        %3067 = vmatpush.msra.mxu0 %v3051
        %3068 = vmatpush.msra.mxu0 %v3050
        %3069 = vmatpush.msra.mxu0 %v3049
        %3070 = vmatpush.msra.mxu0 %v3048
        %3071 = vmatpush.msra.mxu0 %v3047
        %3072 = vmatpush.msra.mxu0 %v3046
        %3073 = vmatpush.msra.mxu0 %v3045
        %3074 = vmatpush.msra.mxu0 %v3044
        %3075 = vmatpush.msra.mxu0 %v3043
        %3076 = vmatmul.f32.gmra.mxu0 %v3042
        %v3077 = vpop.f32.mrf.mxu0
        %v3078 = vadd.f32 %v3059, %v3077
        %3079 = vdwg.mxu0
        %vm3080 = vcmask 1040384
        %v3081 = vsel %vm3080, %v3078, -inf
        %3082 = vmax.xlane.f32.xlu0 %v3081
        %v3083 = vpop.xlane.xlu0 %3082
        %v3084 = vsub.f32 %v3078, %v3083
        %v3085 = vmul.f32 %v3084, 1.442695
        %v3086 = vpow.pop %v3085
        %v3087 = vsel %vm3080, %v3086, 0.0
        %3088 = vadd.xlane.f32.xlu0 %v3087
        %v3089 = vpop.xlane.xlu0 %3088
        %v3090 = vlog2.pop %v3089
        %v3091 = vmul.f32 %v3090, 0.6931472
        %v3092 = vsub.f32 %v3084, %v3091
        %3093 = vst [vmem:[%s950] sm:$0x1] %v3092
        %s3094 = sand.u32 %s741, 1
        %s3095 = scalar_lea.sflag [#allocation3], %s3094
        %s3096 = sand.u32 %s741, 1
        %s3097 = scalar_lea.vmem [#allocation2], %s3096
        // Predicated region
        $region145: #{mixer_forward.1} parent=143 // pred_check
          %p3098 = pneg %p751
        $region146: #{mixer_forward.1} parent=143 // pred_check_branch
          %3100 = sbr.rel (%p3098) target = $region148
        $region147: #{mixer_forward.1} parent=143 // pred_region
          %3102 = vsyncadd %s3095, 0
          %s3103 = scalar_lea.hbm %s63, %s77
          %s3105 = sshll.u32 %s3097, 4
          %s3106 = int_to_ptr.vmem [resolvable:$true] %s3105
          %s3107 = sshll.u32 %s3103, 4
          %s3108 = int_to_ptr.hbm [resolvable:$true] %s3107
          %3110 = dma.vmem_to_hbm [thread:$0]  %s3106, 16, %s3108, %s3095
        $region148: #{mixer_forward.1} parent=143 // pred_fallthru
          _
      $region144: #{mixer_forward.1} parent=5 // pred_fallthru
        _
      %p3111 = scmp.le.s32.totalorder 2, %s72
      // Predicated region
      $region149: #{mixer_forward.1} parent=5 // pred_check
        %p3112 = pneg %p3111
      $region150: #{mixer_forward.1} parent=5 // pred_check_branch
        %3114 = sbr.rel (%p3112) target = $region152
      $region151: #{mixer_forward.1} parent=5 // pred_region
        %s3115 = ssub.s32 %s72, 2
        // Predicated region
        $region153: #{mixer_forward.1} parent=151 // pred_check
          %p3116 = pneg %p757
        $region154: #{mixer_forward.1} parent=151 // pred_check_branch
          %3118 = sbr.rel (%p3116) target = $region156
        $region155: #{mixer_forward.1} parent=151 // pred_region
          %s3119 = sand.u32 %s742, 1
          %s3120 = scalar_lea.sflag [#allocation3], %s3119
          %s3121 = sand.u32 %s742, 1
          %s3122 = scalar_lea.vmem [#allocation2], %s3121
          %3124 = dma.done %s3120, 16
        $region156: #{mixer_forward.1} parent=151 // pred_fallthru
          _
      $region152: #{mixer_forward.1} parent=5 // pred_fallthru
        _
    $region6: #{mixer_forward.1} parent=1 // loop_footer
      %s76 = sadd.s32 1, %s72
    $region7: #{mixer_forward.1} parent=1 // loop_footer_branch
      %71 = sbr.rel target = $region3
    $region8: #{mixer_forward.1} parent=1 // loop_exit
      _
    %3125 = vsyncpa [#allocation3], 1
    %s3126 = scalar_lea.sflag [#allocation3], 1
    %3127 = vsyncpa %s3126, 1

</llo_original>
